<compile_context>
chip_gen: v5e
topology: v5e:2x2
jax: 0.10.0
libtpu: 0.0.40
codegen_flags: <defaults>
</compile_context>

<pallas_src>
import functools

import jax
import jax.numpy as jnp
from jax import lax
from jax.experimental import pallas as pl
from jax.experimental.pallas import tpu as pltpu

_LANE = 128


def _fused_plaincnn_kernel(x_ref, w1_ref, b1_ref, w2_ref, b2_ref, o_ref,
                           pad1, pad2, *, H, W, Cin, nf, Sh, Cp):
    """in_conv(3x3 SAME)+ReLU -> (identity reconstruct) -> out_conv(3x3 SAME)
    for one H-strip of one image.

    Grid: (N, H // Sh); strip s produces output rows [s*Sh, (s+1)*Sh).

    x_ref : (1, H, W, Cin)   bf16  whole image (resident across the strip axis)
    w1_ref: (9, Cin, nf)     bf16  per-tap in_conv weights (t = dy*3 + dx)
    b1_ref: (1, nf)          f32
    w2_ref: (9, nf, Cp)      bf16  per-tap out_conv weights, Cout padded to Cp
    b2_ref: (1, Cp)          f32
    o_ref : (1, Sh*W, Cp)    bf16  lane-dense flat output strip
    pad1  : VMEM (Sh+4, W+2, Cin) bf16  input strip + 2-row / 1-col halo
    pad2  : VMEM (Sh+2, W+2, nf)  bf16  layer-1 act strip + 1-row / 1-col halo
    """
    s = pl.program_id(1)
    ns = pl.num_programs(1)
    r0 = pl.multiple_of(s * Sh, Sh)            # first output row of this strip

    # ---- stage input strip (+halo) into pad1; zero ONLY the halo ring ------
    # pad1 local row p  <->  global input row  r0 - 2 + p
    # pad1 local col c  <->  global input col  c - 1
    zcol1 = jnp.zeros((Sh + 4, 1, Cin), pad1.dtype)
    pad1[:, 0:1, :] = zcol1                         # left  W-halo column
    pad1[:, W + 1:W + 2, :] = zcol1                 # right W-halo column
    pad1[2:Sh + 2, 1:W + 1, :] = x_ref[0, pl.ds(r0, Sh), :, :]

    @pl.when(s > 0)
    def _():                                        # top halo rows from image
        pad1[0:2, 1:W + 1, :] = x_ref[0, pl.ds(r0 - 2, 2), :, :]

    @pl.when(s == 0)
    def _():                                        # top halo rows = zero pad
        pad1[0:2, :, :] = jnp.zeros((2, W + 2, Cin), pad1.dtype)

    @pl.when(s < ns - 1)
    def _():                                        # bottom halo rows from image
        pad1[Sh + 2:Sh + 4, 1:W + 1, :] = x_ref[0, pl.ds(r0 + Sh, 2), :, :]

    @pl.when(s == ns - 1)
    def _():                                        # bottom halo rows = zero pad
        pad1[Sh + 2:Sh + 4, :, :] = jnp.zeros((2, W + 2, Cin), pad1.dtype)

    # ---- layer 1: in_conv + ReLU as 9 accumulating K=Cin MXU matmuls -------
    # Computes Sh+2 activation rows (the strip plus one halo row each side).
    M1 = (Sh + 2) * W
    acc1 = jnp.zeros((M1, nf), jnp.float32)
    for t in range(9):
        dy, dx = divmod(t, 3)
        lhs = pad1[dy:dy + Sh + 2, dx:dx + W, :].reshape(M1, Cin)
        acc1 = acc1 + jnp.dot(lhs, w1_ref[t],
                              preferred_element_type=jnp.float32)
    act1 = jnp.maximum(acc1 + b1_ref[...], 0.0)     # f32 bias + ReLU (VPU)

    # TODO(synk): self.reconstruct (nb=5 OFAE blocks) — the OFAE class is not
    # defined in the provided source, so it is passed through as identity here.

    # ---- stage layer-1 activation into pad2; zero ONLY the halo ring -------
    # pad2 local row q  <->  global activation row  r0 - 1 + q
    zcol2 = jnp.zeros((Sh + 2, 1, nf), pad2.dtype)
    pad2[:, 0:1, :] = zcol2
    pad2[:, W + 1:W + 2, :] = zcol2
    pad2[:, 1:W + 1, :] = act1.astype(pad2.dtype).reshape(Sh + 2, W, nf)

    @pl.when(s == 0)
    def _():                                        # activation row -1 = zero pad
        pad2[0:1, :, :] = jnp.zeros((1, W + 2, nf), pad2.dtype)

    @pl.when(s == ns - 1)
    def _():                                        # activation row H = zero pad
        pad2[Sh + 1:Sh + 2, :, :] = jnp.zeros((1, W + 2, nf), pad2.dtype)

    # ---- layer 2: out_conv as 9 accumulating K=nf MXU matmuls --------------
    M2 = Sh * W
    acc2 = jnp.zeros((M2, Cp), jnp.float32)
    for t in range(9):
        dy, dx = divmod(t, 3)
        lhs = pad2[dy:dy + Sh, dx:dx + W, :].reshape(M2, nf)
        acc2 = acc2 + jnp.dot(lhs, w2_ref[t],
                              preferred_element_type=jnp.float32)
    o_ref[0] = (acc2 + b2_ref[...]).astype(o_ref.dtype)   # bf16 writeback


def plain_cnn_pallas(x_nhwc, w1, b1, w2, b2, *, out_nc, strip_rows=8):
    """Fused PlainCNN forward; NHWC input, returns flat (N, H*W, Cp) bf16."""
    N, H, W, Cin = x_nhwc.shape
    nf = w1.shape[2]
    Cp = w2.shape[2]

    Sh = min(strip_rows, H)
    assert H % Sh == 0, (H, Sh)
    ns = H // Sh

    kernel = functools.partial(_fused_plaincnn_kernel,
                               H=H, W=W, Cin=Cin, nf=nf, Sh=Sh, Cp=Cp)

    # Real FLOPs (out_nc, not the padded Cp) and actual HBM traffic of the call.
    flops = 2 * N * H * W * 9 * (Cin * nf + nf * out_nc)
    bytes_accessed = (x_nhwc.size * 2 + w1.size * 2 + w2.size * 2
                      + (b1.size + b2.size) * 4 + N * H * W * Cp * 2)

    return pl.pallas_call(
        kernel,
        out_shape=jax.ShapeDtypeStruct((N, H * W, Cp), jnp.bfloat16),
        grid=(N, ns),
        in_specs=[
            # Whole image stays resident across the strip axis (index ignores s).
            pl.BlockSpec((1, H, W, Cin), lambda n, s: (n, 0, 0, 0)),
            pl.BlockSpec((9, Cin, nf), lambda n, s: (0, 0, 0)),
            pl.BlockSpec((1, nf), lambda n, s: (0, 0)),
            pl.BlockSpec((9, nf, Cp), lambda n, s: (0, 0, 0)),
            pl.BlockSpec((1, Cp), lambda n, s: (0, 0)),
        ],
        out_specs=pl.BlockSpec((1, Sh * W, Cp), lambda n, s: (n, s, 0)),
        scratch_shapes=[
            pltpu.VMEM((Sh + 4, W + 2, Cin), jnp.bfloat16),
            pltpu.VMEM((Sh + 2, W + 2, nf), jnp.bfloat16),
        ],
        compiler_params=pltpu.CompilerParams(
            # Both axes independent: strips give v7x's 2 cores work even at N=1.
            dimension_semantics=("parallel", "parallel"),
            # ~48 MiB: well under v7x's 64 MiB physical VMEM, raised vs. the
            # v5e/v6e scoped defaults; actual usage at strip sizes is far lower.
            vmem_limit_bytes=48 * 1024 * 1024,
        ),
        cost_estimate=pl.CostEstimate(
            flops=flops, transcendentals=0, bytes_accessed=bytes_accessed),
    )(x_nhwc.astype(jnp.bfloat16),
      w1.astype(jnp.bfloat16),
      b1.reshape(1, -1).astype(jnp.float32),
      w2.astype(jnp.bfloat16),
      b2.reshape(1, -1).astype(jnp.float32))


def _flatten_conv_weight(w_oihw):
    """(Cout, Cin, 3, 3) PyTorch layout -> (9, Cin, Cout), tap t = dy*3 + dx."""
    cout, cin = w_oihw.shape[0], w_oihw.shape[1]
    return jnp.transpose(w_oihw, (2, 3, 1, 0)).reshape(9, cin, cout)


def init_plain_cnn_params(key, in_nc=64, nf=64, out_nc=3):
    """Deterministic synthetic params in PyTorch Conv2d layout (Cout, Cin, 3, 3)."""
    k1, k2, k3, k4 = jax.random.split(key, 4)
    w_in = jax.random.normal(k1, (nf, in_nc, 3, 3), jnp.float32) / (3.0 * in_nc ** 0.5)
    b_in = 0.01 * jax.random.normal(k2, (nf,), jnp.float32)
    w_out = jax.random.normal(k3, (out_nc, nf, 3, 3), jnp.float32) / (3.0 * nf ** 0.5)
    b_out = 0.01 * jax.random.normal(k4, (out_nc,), jnp.float32)
    return dict(w_in=w_in, b_in=b_in, w_out=w_out, b_out=b_out)


@jax.jit
def plain_cnn_forward(x_nchw, params):
    """PlainCNN.forward: in_conv (conv3x3 + ReLU) -> reconstruct -> out_conv."""
    N, _, H, W = x_nchw.shape
    out_nc = params["w_out"].shape[0]

    w1 = _flatten_conv_weight(params["w_in"])                    # (9, Cin, nf)
    w2 = _flatten_conv_weight(params["w_out"])                   # (9, nf, out_nc)
    # Pad out_conv channels to a full 128-lane width for lane-dense stores.
    cp = ((out_nc + _LANE - 1) // _LANE) * _LANE
    w2p = jnp.pad(w2, ((0, 0), (0, 0), (0, cp - out_nc)))
    b2p = jnp.pad(params["b_out"], (0, cp - out_nc))

    # Cast to bf16 BEFORE the layout transpose: halves that wrapper HBM pass.
    x = jnp.transpose(x_nchw.astype(jnp.bfloat16), (0, 2, 3, 1))  # NCHW -> NHWC
    y = plain_cnn_pallas(x, w1, params["b_in"], w2p, b2p, out_nc=out_nc)
    y = y[:, :, :out_nc].astype(jnp.float32).reshape(N, H, W, out_nc)
    return jnp.transpose(y, (0, 3, 1, 2))                         # NHWC -> NCHW


def _ref_forward(x_nchw, params):
    """Pure-JAX reference (lax.conv, bf16 matmul inputs / f32 accumulation)."""
    def conv(x, w_oihw, b, relu):
        w_hwio = jnp.transpose(w_oihw, (2, 3, 1, 0))
        y = lax.conv_general_dilated(
            x.astype(jnp.bfloat16), w_hwio.astype(jnp.bfloat16),
            window_strides=(1, 1), padding="SAME",
            dimension_numbers=("NHWC", "HWIO", "NHWC"),
            preferred_element_type=jnp.float32)
        y = y + b
        return jnp.maximum(y, 0.0) if relu else y

    x = jnp.transpose(x_nchw, (0, 2, 3, 1))
    x = conv(x, params["w_in"], params["b_in"], True)
    x = conv(x, params["w_out"], params["b_out"], False)
    return jnp.transpose(x, (0, 3, 1, 2))


if __name__ == "__main__":
    key = jax.random.PRNGKey(0)
    kx, kp = jax.random.split(key)

    N, C, H, W = 2, 64, 16, 16          # in_nc=64 per module default, small spatial
    x = jax.random.normal(kx, (N, C, H, W), jnp.float32)
    params = init_plain_cnn_params(kp, in_nc=C, nf=64, out_nc=3)

    out = jax.block_until_ready(plain_cnn_forward(x, params))
    assert out.shape == (N, 3, H, W), out.shape

    ref = _ref_forward(x, params)
    # bf16 matmul inputs on both sides + bf16 kernel output -> loosened tol.
    max_err = float(jnp.max(jnp.abs(out - ref)))
    assert jnp.allclose(out, ref, atol=1e-2, rtol=1e-2), max_err

    print("KERNEL_OK")
</pallas_src>

<mosaic_0001>
module attributes {stable_mosaic.version = 11 : i64} {
  func.func @_fused_plaincnn_kernel(%arg0: i32, %arg1: i32, %arg2: memref<1x16x16x64xbf16, #tpu.memory_space<vmem>>, %arg3: memref<9x64x64xbf16, #tpu.memory_space<vmem>>, %arg4: memref<1x64xf32, #tpu.memory_space<vmem>>, %arg5: memref<9x64x128xbf16, #tpu.memory_space<vmem>>, %arg6: memref<1x128xf32, #tpu.memory_space<vmem>>, %arg7: memref<1x128x128xbf16, #tpu.memory_space<vmem>>, %arg8: memref<12x18x64xbf16, #tpu.memory_space<vmem>>, %arg9: memref<10x18x64xbf16, #tpu.memory_space<vmem>>) attributes {dimension_semantics = [#tpu.dimension_semantics<parallel>, #tpu.dimension_semantics<parallel>], iteration_bounds = array<i64: 2, 2>, scalar_prefetch = 0 : i64, scratch_operands = 2 : i64, tpu.core_type = #tpu.core_type<tc>, window_params = [{transform_indices = @transform_0, window_bounds = array<i64: 1, 16, 16, 64>}, {pipeline_mode = #tpu.pipeline_mode<synchronous>, transform_indices = @transform_1, window_bounds = array<i64: 9, 64, 64>}, {pipeline_mode = #tpu.pipeline_mode<synchronous>, transform_indices = @transform_2, window_bounds = array<i64: 1, 64>}, {pipeline_mode = #tpu.pipeline_mode<synchronous>, transform_indices = @transform_3, window_bounds = array<i64: 9, 64, 128>}, {pipeline_mode = #tpu.pipeline_mode<synchronous>, transform_indices = @transform_4, window_bounds = array<i64: 1, 128>}, {transform_indices = @transform_5, window_bounds = array<i64: 1, 128, 128>}]} {
    %c8_i32 = arith.constant 8 : i32
    %0 = arith.muli %arg1, %c8_i32 : i32
    %1 = tpu.assume_multiple %0, 8 : i32
    %cst = arith.constant 0.000000e+00 : bf16
    %2 = vector.broadcast %cst : bf16 to vector<12x1x64xbf16>
    %c0 = arith.constant 0 : index
    %c0_0 = arith.constant 0 : index
    %c0_1 = arith.constant 0 : index
    %3 = vector.load %arg8[%c0, %c0_0, %c0_1] : memref<12x18x64xbf16, #tpu.memory_space<vmem>>, vector<12x1x64xbf16>
    tpu.vector_store %arg8[%c0, %c0_0, %c0_1], %2 {strides = array<i32>} : memref<12x18x64xbf16, #tpu.memory_space<vmem>>, vector<12x1x64xbf16>,
    %c0_2 = arith.constant 0 : index
    %c17 = arith.constant 17 : index
    %c0_3 = arith.constant 0 : index
    %4 = vector.load %arg8[%c0_2, %c17, %c0_3] : memref<12x18x64xbf16, #tpu.memory_space<vmem>>, vector<12x1x64xbf16>
    tpu.vector_store %arg8[%c0_2, %c17, %c0_3], %2 {strides = array<i32>} : memref<12x18x64xbf16, #tpu.memory_space<vmem>>, vector<12x1x64xbf16>,
    %c0_4 = arith.constant 0 : index
    %5 = arith.index_cast %1 : i32 to index
    %c0_5 = arith.constant 0 : index
    %c0_6 = arith.constant 0 : index
    %6 = vector.load %arg2[%c0_4, %5, %c0_5, %c0_6] : memref<1x16x16x64xbf16, #tpu.memory_space<vmem>>, vector<1x8x16x64xbf16>
    %7 = vector.shape_cast %6 : vector<1x8x16x64xbf16> to vector<8x16x64xbf16>
    %c2 = arith.constant 2 : index
    %c1 = arith.constant 1 : index
    %c0_7 = arith.constant 0 : index
    %8 = vector.load %arg8[%c2, %c1, %c0_7] : memref<12x18x64xbf16, #tpu.memory_space<vmem>>, vector<8x16x64xbf16>
    tpu.vector_store %arg8[%c2, %c1, %c0_7], %7 {strides = array<i32>} : memref<12x18x64xbf16, #tpu.memory_space<vmem>>, vector<8x16x64xbf16>,
    %c0_i32 = arith.constant 0 : i32
    %9 = arith.cmpi sgt, %arg1, %c0_i32 : i32
    %10 = arith.extui %9 : i1 to i32
    %c0_i32_8 = arith.constant 0 : i32
    %11 = arith.cmpi ne, %10, %c0_i32_8 : i32
    scf.if %11 {
      %c2_i32 = arith.constant 2 : i32
      %155 = arith.subi %1, %c2_i32 : i32
      %c0_158 = arith.constant 0 : index
      %156 = arith.index_cast %155 : i32 to index
      %c0_159 = arith.constant 0 : index
      %c0_160 = arith.constant 0 : index
      %157 = vector.load %arg2[%c0_158, %156, %c0_159, %c0_160] : memref<1x16x16x64xbf16, #tpu.memory_space<vmem>>, vector<1x2x16x64xbf16>
      %158 = vector.shape_cast %157 : vector<1x2x16x64xbf16> to vector<2x16x64xbf16>
      %c0_161 = arith.constant 0 : index
      %c1_162 = arith.constant 1 : index
      %c0_163 = arith.constant 0 : index
      %159 = vector.load %arg8[%c0_161, %c1_162, %c0_163] : memref<12x18x64xbf16, #tpu.memory_space<vmem>>, vector<2x16x64xbf16>
      tpu.vector_store %arg8[%c0_161, %c1_162, %c0_163], %158 {strides = array<i32>} : memref<12x18x64xbf16, #tpu.memory_space<vmem>>, vector<2x16x64xbf16>,
    } else {
    }
    %c0_i32_9 = arith.constant 0 : i32
    %12 = arith.cmpi eq, %arg1, %c0_i32_9 : i32
    %13 = arith.extui %12 : i1 to i32
    %c0_i32_10 = arith.constant 0 : i32
    %14 = arith.cmpi ne, %13, %c0_i32_10 : i32
    scf.if %14 {
      %cst_158 = arith.constant 0.000000e+00 : bf16
      %155 = vector.broadcast %cst_158 : bf16 to vector<2x18x64xbf16>
      %c0_159 = arith.constant 0 : index
      %c0_160 = arith.constant 0 : index
      %c0_161 = arith.constant 0 : index
      %156 = vector.load %arg8[%c0_159, %c0_160, %c0_161] : memref<12x18x64xbf16, #tpu.memory_space<vmem>>, vector<2x18x64xbf16>
      tpu.vector_store %arg8[%c0_159, %c0_160, %c0_161], %155 {strides = array<i32>} : memref<12x18x64xbf16, #tpu.memory_space<vmem>>, vector<2x18x64xbf16>,
    } else {
    }
    %c1_i32 = arith.constant 1 : i32
    %15 = arith.cmpi slt, %arg1, %c1_i32 : i32
    %16 = arith.extui %15 : i1 to i32
    %c0_i32_11 = arith.constant 0 : i32
    %17 = arith.cmpi ne, %16, %c0_i32_11 : i32
    scf.if %17 {
      %c8_i32_158 = arith.constant 8 : i32
      %155 = arith.addi %1, %c8_i32_158 : i32
      %c0_159 = arith.constant 0 : index
      %156 = arith.index_cast %155 : i32 to index
      %c0_160 = arith.constant 0 : index
      %c0_161 = arith.constant 0 : index
      %157 = vector.load %arg2[%c0_159, %156, %c0_160, %c0_161] : memref<1x16x16x64xbf16, #tpu.memory_space<vmem>>, vector<1x2x16x64xbf16>
      %158 = vector.shape_cast %157 : vector<1x2x16x64xbf16> to vector<2x16x64xbf16>
      %c10 = arith.constant 10 : index
      %c1_162 = arith.constant 1 : index
      %c0_163 = arith.constant 0 : index
      %159 = vector.load %arg8[%c10, %c1_162, %c0_163] : memref<12x18x64xbf16, #tpu.memory_space<vmem>>, vector<2x16x64xbf16>
      tpu.vector_store %arg8[%c10, %c1_162, %c0_163], %158 {strides = array<i32>} : memref<12x18x64xbf16, #tpu.memory_space<vmem>>, vector<2x16x64xbf16>,
    } else {
    }
    %c1_i32_12 = arith.constant 1 : i32
    %18 = arith.cmpi eq, %arg1, %c1_i32_12 : i32
    %19 = arith.extui %18 : i1 to i32
    %c0_i32_13 = arith.constant 0 : i32
    %20 = arith.cmpi ne, %19, %c0_i32_13 : i32
    scf.if %20 {
      %cst_158 = arith.constant 0.000000e+00 : bf16
      %155 = vector.broadcast %cst_158 : bf16 to vector<2x18x64xbf16>
      %c10 = arith.constant 10 : index
      %c0_159 = arith.constant 0 : index
      %c0_160 = arith.constant 0 : index
      %156 = vector.load %arg8[%c10, %c0_159, %c0_160] : memref<12x18x64xbf16, #tpu.memory_space<vmem>>, vector<2x18x64xbf16>
      tpu.vector_store %arg8[%c10, %c0_159, %c0_160], %155 {strides = array<i32>} : memref<12x18x64xbf16, #tpu.memory_space<vmem>>, vector<2x18x64xbf16>,
    } else {
    }
    %cst_14 = arith.constant 0.000000e+00 : f32
    %21 = vector.broadcast %cst_14 : f32 to vector<160x64xf32>
    %c0_15 = arith.constant 0 : index
    %c0_16 = arith.constant 0 : index
    %c0_17 = arith.constant 0 : index
    %22 = vector.load %arg8[%c0_15, %c0_16, %c0_17] : memref<12x18x64xbf16, #tpu.memory_space<vmem>>, vector<10x16x64xbf16>
    %23 = vector.shape_cast %22 : vector<10x16x64xbf16> to vector<160x64xbf16>
    %c0_18 = arith.constant 0 : index
    %c0_19 = arith.constant 0 : index
    %c0_20 = arith.constant 0 : index
    %24 = vector.load %arg3[%c0_18, %c0_19, %c0_20] : memref<9x64x64xbf16, #tpu.memory_space<vmem>>, vector<1x64x64xbf16>
    %25 = vector.shape_cast %24 : vector<1x64x64xbf16> to vector<64x64xbf16>
    %cst_21 = arith.constant dense<0.000000e+00> : vector<160x64xf32>
    %26 = tpu.matmul %23, %25, %cst_21 {dimension_numbers = #tpu.dot_dimension_numbers<[1], [0], [0], [1], [0, 0, 1, 1], [], []>} : vector<160x64xbf16>, vector<64x64xbf16>, vector<160x64xf32> -> vector<160x64xf32>
    %27 = arith.addf %21, %26 : vector<160x64xf32>
    %c0_22 = arith.constant 0 : index
    %c1_23 = arith.constant 1 : index
    %c0_24 = arith.constant 0 : index
    %28 = vector.load %arg8[%c0_22, %c1_23, %c0_24] : memref<12x18x64xbf16, #tpu.memory_space<vmem>>, vector<10x16x64xbf16>
    %29 = vector.shape_cast %28 : vector<10x16x64xbf16> to vector<160x64xbf16>
    %c1_25 = arith.constant 1 : index
    %c0_26 = arith.constant 0 : index
    %c0_27 = arith.constant 0 : index
    %30 = vector.load %arg3[%c1_25, %c0_26, %c0_27] : memref<9x64x64xbf16, #tpu.memory_space<vmem>>, vector<1x64x64xbf16>
    %31 = vector.shape_cast %30 : vector<1x64x64xbf16> to vector<64x64xbf16>
    %cst_28 = arith.constant dense<0.000000e+00> : vector<160x64xf32>
    %32 = tpu.matmul %29, %31, %cst_28 {dimension_numbers = #tpu.dot_dimension_numbers<[1], [0], [0], [1], [0, 0, 1, 1], [], []>} : vector<160x64xbf16>, vector<64x64xbf16>, vector<160x64xf32> -> vector<160x64xf32>
    %33 = arith.addf %27, %32 : vector<160x64xf32>
    %c0_29 = arith.constant 0 : index
    %c2_30 = arith.constant 2 : index
    %c0_31 = arith.constant 0 : index
    %34 = vector.load %arg8[%c0_29, %c2_30, %c0_31] : memref<12x18x64xbf16, #tpu.memory_space<vmem>>, vector<10x16x64xbf16>
    %35 = vector.shape_cast %34 : vector<10x16x64xbf16> to vector<160x64xbf16>
    %c2_32 = arith.constant 2 : index
    %c0_33 = arith.constant 0 : index
    %c0_34 = arith.constant 0 : index
    %36 = vector.load %arg3[%c2_32, %c0_33, %c0_34] : memref<9x64x64xbf16, #tpu.memory_space<vmem>>, vector<1x64x64xbf16>
    %37 = vector.shape_cast %36 : vector<1x64x64xbf16> to vector<64x64xbf16>
    %cst_35 = arith.constant dense<0.000000e+00> : vector<160x64xf32>
    %38 = tpu.matmul %35, %37, %cst_35 {dimension_numbers = #tpu.dot_dimension_numbers<[1], [0], [0], [1], [0, 0, 1, 1], [], []>} : vector<160x64xbf16>, vector<64x64xbf16>, vector<160x64xf32> -> vector<160x64xf32>
    %39 = arith.addf %33, %38 : vector<160x64xf32>
    %c1_36 = arith.constant 1 : index
    %c0_37 = arith.constant 0 : index
    %c0_38 = arith.constant 0 : index
    %40 = vector.load %arg8[%c1_36, %c0_37, %c0_38] : memref<12x18x64xbf16, #tpu.memory_space<vmem>>, vector<10x16x64xbf16>
    %41 = vector.shape_cast %40 : vector<10x16x64xbf16> to vector<160x64xbf16>
    %c3 = arith.constant 3 : index
    %c0_39 = arith.constant 0 : index
    %c0_40 = arith.constant 0 : index
    %42 = vector.load %arg3[%c3, %c0_39, %c0_40] : memref<9x64x64xbf16, #tpu.memory_space<vmem>>, vector<1x64x64xbf16>
    %43 = vector.shape_cast %42 : vector<1x64x64xbf16> to vector<64x64xbf16>
    %cst_41 = arith.constant dense<0.000000e+00> : vector<160x64xf32>
    %44 = tpu.matmul %41, %43, %cst_41 {dimension_numbers = #tpu.dot_dimension_numbers<[1], [0], [0], [1], [0, 0, 1, 1], [], []>} : vector<160x64xbf16>, vector<64x64xbf16>, vector<160x64xf32> -> vector<160x64xf32>
    %45 = arith.addf %39, %44 : vector<160x64xf32>
    %c1_42 = arith.constant 1 : index
    %c1_43 = arith.constant 1 : index
    %c0_44 = arith.constant 0 : index
    %46 = vector.load %arg8[%c1_42, %c1_43, %c0_44] : memref<12x18x64xbf16, #tpu.memory_space<vmem>>, vector<10x16x64xbf16>
    %47 = vector.shape_cast %46 : vector<10x16x64xbf16> to vector<160x64xbf16>
    %c4 = arith.constant 4 : index
    %c0_45 = arith.constant 0 : index
    %c0_46 = arith.constant 0 : index
    %48 = vector.load %arg3[%c4, %c0_45, %c0_46] : memref<9x64x64xbf16, #tpu.memory_space<vmem>>, vector<1x64x64xbf16>
    %49 = vector.shape_cast %48 : vector<1x64x64xbf16> to vector<64x64xbf16>
    %cst_47 = arith.constant dense<0.000000e+00> : vector<160x64xf32>
    %50 = tpu.matmul %47, %49, %cst_47 {dimension_numbers = #tpu.dot_dimension_numbers<[1], [0], [0], [1], [0, 0, 1, 1], [], []>} : vector<160x64xbf16>, vector<64x64xbf16>, vector<160x64xf32> -> vector<160x64xf32>
    %51 = arith.addf %45, %50 : vector<160x64xf32>
    %c1_48 = arith.constant 1 : index
    %c2_49 = arith.constant 2 : index
    %c0_50 = arith.constant 0 : index
    %52 = vector.load %arg8[%c1_48, %c2_49, %c0_50] : memref<12x18x64xbf16, #tpu.memory_space<vmem>>, vector<10x16x64xbf16>
    %53 = vector.shape_cast %52 : vector<10x16x64xbf16> to vector<160x64xbf16>
    %c5 = arith.constant 5 : index
    %c0_51 = arith.constant 0 : index
    %c0_52 = arith.constant 0 : index
    %54 = vector.load %arg3[%c5, %c0_51, %c0_52] : memref<9x64x64xbf16, #tpu.memory_space<vmem>>, vector<1x64x64xbf16>
    %55 = vector.shape_cast %54 : vector<1x64x64xbf16> to vector<64x64xbf16>
    %cst_53 = arith.constant dense<0.000000e+00> : vector<160x64xf32>
    %56 = tpu.matmul %53, %55, %cst_53 {dimension_numbers = #tpu.dot_dimension_numbers<[1], [0], [0], [1], [0, 0, 1, 1], [], []>} : vector<160x64xbf16>, vector<64x64xbf16>, vector<160x64xf32> -> vector<160x64xf32>
    %57 = arith.addf %51, %56 : vector<160x64xf32>
    %c2_54 = arith.constant 2 : index
    %c0_55 = arith.constant 0 : index
    %c0_56 = arith.constant 0 : index
    %58 = vector.load %arg8[%c2_54, %c0_55, %c0_56] : memref<12x18x64xbf16, #tpu.memory_space<vmem>>, vector<10x16x64xbf16>
    %59 = vector.shape_cast %58 : vector<10x16x64xbf16> to vector<160x64xbf16>
    %c6 = arith.constant 6 : index
    %c0_57 = arith.constant 0 : index
    %c0_58 = arith.constant 0 : index
    %60 = vector.load %arg3[%c6, %c0_57, %c0_58] : memref<9x64x64xbf16, #tpu.memory_space<vmem>>, vector<1x64x64xbf16>
    %61 = vector.shape_cast %60 : vector<1x64x64xbf16> to vector<64x64xbf16>
    %cst_59 = arith.constant dense<0.000000e+00> : vector<160x64xf32>
    %62 = tpu.matmul %59, %61, %cst_59 {dimension_numbers = #tpu.dot_dimension_numbers<[1], [0], [0], [1], [0, 0, 1, 1], [], []>} : vector<160x64xbf16>, vector<64x64xbf16>, vector<160x64xf32> -> vector<160x64xf32>
    %63 = arith.addf %57, %62 : vector<160x64xf32>
    %c2_60 = arith.constant 2 : index
    %c1_61 = arith.constant 1 : index
    %c0_62 = arith.constant 0 : index
    %64 = vector.load %arg8[%c2_60, %c1_61, %c0_62] : memref<12x18x64xbf16, #tpu.memory_space<vmem>>, vector<10x16x64xbf16>
    %65 = vector.shape_cast %64 : vector<10x16x64xbf16> to vector<160x64xbf16>
    %c7 = arith.constant 7 : index
    %c0_63 = arith.constant 0 : index
    %c0_64 = arith.constant 0 : index
    %66 = vector.load %arg3[%c7, %c0_63, %c0_64] : memref<9x64x64xbf16, #tpu.memory_space<vmem>>, vector<1x64x64xbf16>
    %67 = vector.shape_cast %66 : vector<1x64x64xbf16> to vector<64x64xbf16>
    %cst_65 = arith.constant dense<0.000000e+00> : vector<160x64xf32>
    %68 = tpu.matmul %65, %67, %cst_65 {dimension_numbers = #tpu.dot_dimension_numbers<[1], [0], [0], [1], [0, 0, 1, 1], [], []>} : vector<160x64xbf16>, vector<64x64xbf16>, vector<160x64xf32> -> vector<160x64xf32>
    %69 = arith.addf %63, %68 : vector<160x64xf32>
    %c2_66 = arith.constant 2 : index
    %c2_67 = arith.constant 2 : index
    %c0_68 = arith.constant 0 : index
    %70 = vector.load %arg8[%c2_66, %c2_67, %c0_68] : memref<12x18x64xbf16, #tpu.memory_space<vmem>>, vector<10x16x64xbf16>
    %71 = vector.shape_cast %70 : vector<10x16x64xbf16> to vector<160x64xbf16>
    %c8 = arith.constant 8 : index
    %c0_69 = arith.constant 0 : index
    %c0_70 = arith.constant 0 : index
    %72 = vector.load %arg3[%c8, %c0_69, %c0_70] : memref<9x64x64xbf16, #tpu.memory_space<vmem>>, vector<1x64x64xbf16>
    %73 = vector.shape_cast %72 : vector<1x64x64xbf16> to vector<64x64xbf16>
    %cst_71 = arith.constant dense<0.000000e+00> : vector<160x64xf32>
    %74 = tpu.matmul %71, %73, %cst_71 {dimension_numbers = #tpu.dot_dimension_numbers<[1], [0], [0], [1], [0, 0, 1, 1], [], []>} : vector<160x64xbf16>, vector<64x64xbf16>, vector<160x64xf32> -> vector<160x64xf32>
    %75 = arith.addf %69, %74 : vector<160x64xf32>
    %c0_72 = arith.constant 0 : index
    %c0_73 = arith.constant 0 : index
    %76 = vector.load %arg4[%c0_72, %c0_73] : memref<1x64xf32, #tpu.memory_space<vmem>>, vector<1x64xf32>
    %77 = vector.broadcast %76 : vector<1x64xf32> to vector<160x64xf32>
    %78 = arith.addf %75, %77 : vector<160x64xf32>
    %cst_74 = arith.constant 0.000000e+00 : f32
    %79 = vector.broadcast %cst_74 : f32 to vector<160x64xf32>
    %80 = arith.maximumf %78, %79 : vector<160x64xf32>
    %cst_75 = arith.constant 0.000000e+00 : bf16
    %81 = vector.broadcast %cst_75 : bf16 to vector<10x1x64xbf16>
    %c0_76 = arith.constant 0 : index
    %c0_77 = arith.constant 0 : index
    %c0_78 = arith.constant 0 : index
    %82 = vector.load %arg9[%c0_76, %c0_77, %c0_78] : memref<10x18x64xbf16, #tpu.memory_space<vmem>>, vector<10x1x64xbf16>
    tpu.vector_store %arg9[%c0_76, %c0_77, %c0_78], %81 {strides = array<i32>} : memref<10x18x64xbf16, #tpu.memory_space<vmem>>, vector<10x1x64xbf16>,
    %c0_79 = arith.constant 0 : index
    %c17_80 = arith.constant 17 : index
    %c0_81 = arith.constant 0 : index
    %83 = vector.load %arg9[%c0_79, %c17_80, %c0_81] : memref<10x18x64xbf16, #tpu.memory_space<vmem>>, vector<10x1x64xbf16>
    tpu.vector_store %arg9[%c0_79, %c17_80, %c0_81], %81 {strides = array<i32>} : memref<10x18x64xbf16, #tpu.memory_space<vmem>>, vector<10x1x64xbf16>,
    %84 = arith.truncf %80 : vector<160x64xf32> to vector<160x64xbf16>
    %85 = vector.shape_cast %84 : vector<160x64xbf16> to vector<10x16x64xbf16>
    %c0_82 = arith.constant 0 : index
    %c1_83 = arith.constant 1 : index
    %c0_84 = arith.constant 0 : index
    %86 = vector.load %arg9[%c0_82, %c1_83, %c0_84] : memref<10x18x64xbf16, #tpu.memory_space<vmem>>, vector<10x16x64xbf16>
    tpu.vector_store %arg9[%c0_82, %c1_83, %c0_84], %85 {strides = array<i32>} : memref<10x18x64xbf16, #tpu.memory_space<vmem>>, vector<10x16x64xbf16>,
    %c0_i32_85 = arith.constant 0 : i32
    %87 = arith.cmpi eq, %arg1, %c0_i32_85 : i32
    %88 = arith.extui %87 : i1 to i32
    %c0_i32_86 = arith.constant 0 : i32
    %89 = arith.cmpi ne, %88, %c0_i32_86 : i32
    scf.if %89 {
      %cst_158 = arith.constant 0.000000e+00 : bf16
      %155 = vector.broadcast %cst_158 : bf16 to vector<1x18x64xbf16>
      %c0_159 = arith.constant 0 : index
      %c0_160 = arith.constant 0 : index
      %c0_161 = arith.constant 0 : index
      %156 = vector.load %arg9[%c0_159, %c0_160, %c0_161] : memref<10x18x64xbf16, #tpu.memory_space<vmem>>, vector<1x18x64xbf16>
      tpu.vector_store %arg9[%c0_159, %c0_160, %c0_161], %155 {strides = array<i32>} : memref<10x18x64xbf16, #tpu.memory_space<vmem>>, vector<1x18x64xbf16>,
    } else {
    }
    %c1_i32_87 = arith.constant 1 : i32
    %90 = arith.cmpi eq, %arg1, %c1_i32_87 : i32
    %91 = arith.extui %90 : i1 to i32
    %c0_i32_88 = arith.constant 0 : i32
    %92 = arith.cmpi ne, %91, %c0_i32_88 : i32
    scf.if %92 {
      %cst_158 = arith.constant 0.000000e+00 : bf16
      %155 = vector.broadcast %cst_158 : bf16 to vector<1x18x64xbf16>
      %c9 = arith.constant 9 : index
      %c0_159 = arith.constant 0 : index
      %c0_160 = arith.constant 0 : index
      %156 = vector.load %arg9[%c9, %c0_159, %c0_160] : memref<10x18x64xbf16, #tpu.memory_space<vmem>>, vector<1x18x64xbf16>
      tpu.vector_store %arg9[%c9, %c0_159, %c0_160], %155 {strides = array<i32>} : memref<10x18x64xbf16, #tpu.memory_space<vmem>>, vector<1x18x64xbf16>,
    } else {
    }
    %cst_89 = arith.constant 0.000000e+00 : f32
    %93 = vector.broadcast %cst_89 : f32 to vector<128x128xf32>
    %c0_90 = arith.constant 0 : index
    %c0_91 = arith.constant 0 : index
    %c0_92 = arith.constant 0 : index
    %94 = vector.load %arg9[%c0_90, %c0_91, %c0_92] : memref<10x18x64xbf16, #tpu.memory_space<vmem>>, vector<8x16x64xbf16>
    %95 = vector.shape_cast %94 : vector<8x16x64xbf16> to vector<128x64xbf16>
    %c0_93 = arith.constant 0 : index
    %c0_94 = arith.constant 0 : index
    %c0_95 = arith.constant 0 : index
    %96 = vector.load %arg5[%c0_93, %c0_94, %c0_95] : memref<9x64x128xbf16, #tpu.memory_space<vmem>>, vector<1x64x128xbf16>
    %97 = vector.shape_cast %96 : vector<1x64x128xbf16> to vector<64x128xbf16>
    %cst_96 = arith.constant dense<0.000000e+00> : vector<128x128xf32>
    %98 = tpu.matmul %95, %97, %cst_96 {dimension_numbers = #tpu.dot_dimension_numbers<[1], [0], [0], [1], [0, 0, 1, 1], [], []>} : vector<128x64xbf16>, vector<64x128xbf16>, vector<128x128xf32> -> vector<128x128xf32>
    %99 = arith.addf %93, %98 : vector<128x128xf32>
    %c0_97 = arith.constant 0 : index
    %c1_98 = arith.constant 1 : index
    %c0_99 = arith.constant 0 : index
    %100 = vector.load %arg9[%c0_97, %c1_98, %c0_99] : memref<10x18x64xbf16, #tpu.memory_space<vmem>>, vector<8x16x64xbf16>
    %101 = vector.shape_cast %100 : vector<8x16x64xbf16> to vector<128x64xbf16>
    %c1_100 = arith.constant 1 : index
    %c0_101 = arith.constant 0 : index
    %c0_102 = arith.constant 0 : index
    %102 = vector.load %arg5[%c1_100, %c0_101, %c0_102] : memref<9x64x128xbf16, #tpu.memory_space<vmem>>, vector<1x64x128xbf16>
    %103 = vector.shape_cast %102 : vector<1x64x128xbf16> to vector<64x128xbf16>
    %cst_103 = arith.constant dense<0.000000e+00> : vector<128x128xf32>
    %104 = tpu.matmul %101, %103, %cst_103 {dimension_numbers = #tpu.dot_dimension_numbers<[1], [0], [0], [1], [0, 0, 1, 1], [], []>} : vector<128x64xbf16>, vector<64x128xbf16>, vector<128x128xf32> -> vector<128x128xf32>
    %105 = arith.addf %99, %104 : vector<128x128xf32>
    %c0_104 = arith.constant 0 : index
    %c2_105 = arith.constant 2 : index
    %c0_106 = arith.constant 0 : index
    %106 = vector.load %arg9[%c0_104, %c2_105, %c0_106] : memref<10x18x64xbf16, #tpu.memory_space<vmem>>, vector<8x16x64xbf16>
    %107 = vector.shape_cast %106 : vector<8x16x64xbf16> to vector<128x64xbf16>
    %c2_107 = arith.constant 2 : index
    %c0_108 = arith.constant 0 : index
    %c0_109 = arith.constant 0 : index
    %108 = vector.load %arg5[%c2_107, %c0_108, %c0_109] : memref<9x64x128xbf16, #tpu.memory_space<vmem>>, vector<1x64x128xbf16>
    %109 = vector.shape_cast %108 : vector<1x64x128xbf16> to vector<64x128xbf16>
    %cst_110 = arith.constant dense<0.000000e+00> : vector<128x128xf32>
    %110 = tpu.matmul %107, %109, %cst_110 {dimension_numbers = #tpu.dot_dimension_numbers<[1], [0], [0], [1], [0, 0, 1, 1], [], []>} : vector<128x64xbf16>, vector<64x128xbf16>, vector<128x128xf32> -> vector<128x128xf32>
    %111 = arith.addf %105, %110 : vector<128x128xf32>
    %c1_111 = arith.constant 1 : index
    %c0_112 = arith.constant 0 : index
    %c0_113 = arith.constant 0 : index
    %112 = vector.load %arg9[%c1_111, %c0_112, %c0_113] : memref<10x18x64xbf16, #tpu.memory_space<vmem>>, vector<8x16x64xbf16>
    %113 = vector.shape_cast %112 : vector<8x16x64xbf16> to vector<128x64xbf16>
    %c3_114 = arith.constant 3 : index
    %c0_115 = arith.constant 0 : index
    %c0_116 = arith.constant 0 : index
    %114 = vector.load %arg5[%c3_114, %c0_115, %c0_116] : memref<9x64x128xbf16, #tpu.memory_space<vmem>>, vector<1x64x128xbf16>
    %115 = vector.shape_cast %114 : vector<1x64x128xbf16> to vector<64x128xbf16>
    %cst_117 = arith.constant dense<0.000000e+00> : vector<128x128xf32>
    %116 = tpu.matmul %113, %115, %cst_117 {dimension_numbers = #tpu.dot_dimension_numbers<[1], [0], [0], [1], [0, 0, 1, 1], [], []>} : vector<128x64xbf16>, vector<64x128xbf16>, vector<128x128xf32> -> vector<128x128xf32>
    %117 = arith.addf %111, %116 : vector<128x128xf32>
    %c1_118 = arith.constant 1 : index
    %c1_119 = arith.constant 1 : index
    %c0_120 = arith.constant 0 : index
    %118 = vector.load %arg9[%c1_118, %c1_119, %c0_120] : memref<10x18x64xbf16, #tpu.memory_space<vmem>>, vector<8x16x64xbf16>
    %119 = vector.shape_cast %118 : vector<8x16x64xbf16> to vector<128x64xbf16>
    %c4_121 = arith.constant 4 : index
    %c0_122 = arith.constant 0 : index
    %c0_123 = arith.constant 0 : index
    %120 = vector.load %arg5[%c4_121, %c0_122, %c0_123] : memref<9x64x128xbf16, #tpu.memory_space<vmem>>, vector<1x64x128xbf16>
    %121 = vector.shape_cast %120 : vector<1x64x128xbf16> to vector<64x128xbf16>
    %cst_124 = arith.constant dense<0.000000e+00> : vector<128x128xf32>
    %122 = tpu.matmul %119, %121, %cst_124 {dimension_numbers = #tpu.dot_dimension_numbers<[1], [0], [0], [1], [0, 0, 1, 1], [], []>} : vector<128x64xbf16>, vector<64x128xbf16>, vector<128x128xf32> -> vector<128x128xf32>
    %123 = arith.addf %117, %122 : vector<128x128xf32>
    %c1_125 = arith.constant 1 : index
    %c2_126 = arith.constant 2 : index
    %c0_127 = arith.constant 0 : index
    %124 = vector.load %arg9[%c1_125, %c2_126, %c0_127] : memref<10x18x64xbf16, #tpu.memory_space<vmem>>, vector<8x16x64xbf16>
    %125 = vector.shape_cast %124 : vector<8x16x64xbf16> to vector<128x64xbf16>
    %c5_128 = arith.constant 5 : index
    %c0_129 = arith.constant 0 : index
    %c0_130 = arith.constant 0 : index
    %126 = vector.load %arg5[%c5_128, %c0_129, %c0_130] : memref<9x64x128xbf16, #tpu.memory_space<vmem>>, vector<1x64x128xbf16>
    %127 = vector.shape_cast %126 : vector<1x64x128xbf16> to vector<64x128xbf16>
    %cst_131 = arith.constant dense<0.000000e+00> : vector<128x128xf32>
    %128 = tpu.matmul %125, %127, %cst_131 {dimension_numbers = #tpu.dot_dimension_numbers<[1], [0], [0], [1], [0, 0, 1, 1], [], []>} : vector<128x64xbf16>, vector<64x128xbf16>, vector<128x128xf32> -> vector<128x128xf32>
    %129 = arith.addf %123, %128 : vector<128x128xf32>
    %c2_132 = arith.constant 2 : index
    %c0_133 = arith.constant 0 : index
    %c0_134 = arith.constant 0 : index
    %130 = vector.load %arg9[%c2_132, %c0_133, %c0_134] : memref<10x18x64xbf16, #tpu.memory_space<vmem>>, vector<8x16x64xbf16>
    %131 = vector.shape_cast %130 : vector<8x16x64xbf16> to vector<128x64xbf16>
    %c6_135 = arith.constant 6 : index
    %c0_136 = arith.constant 0 : index
    %c0_137 = arith.constant 0 : index
    %132 = vector.load %arg5[%c6_135, %c0_136, %c0_137] : memref<9x64x128xbf16, #tpu.memory_space<vmem>>, vector<1x64x128xbf16>
    %133 = vector.shape_cast %132 : vector<1x64x128xbf16> to vector<64x128xbf16>
    %cst_138 = arith.constant dense<0.000000e+00> : vector<128x128xf32>
    %134 = tpu.matmul %131, %133, %cst_138 {dimension_numbers = #tpu.dot_dimension_numbers<[1], [0], [0], [1], [0, 0, 1, 1], [], []>} : vector<128x64xbf16>, vector<64x128xbf16>, vector<128x128xf32> -> vector<128x128xf32>
    %135 = arith.addf %129, %134 : vector<128x128xf32>
    %c2_139 = arith.constant 2 : index
    %c1_140 = arith.constant 1 : index
    %c0_141 = arith.constant 0 : index
    %136 = vector.load %arg9[%c2_139, %c1_140, %c0_141] : memref<10x18x64xbf16, #tpu.memory_space<vmem>>, vector<8x16x64xbf16>
    %137 = vector.shape_cast %136 : vector<8x16x64xbf16> to vector<128x64xbf16>
    %c7_142 = arith.constant 7 : index
    %c0_143 = arith.constant 0 : index
    %c0_144 = arith.constant 0 : index
    %138 = vector.load %arg5[%c7_142, %c0_143, %c0_144] : memref<9x64x128xbf16, #tpu.memory_space<vmem>>, vector<1x64x128xbf16>
    %139 = vector.shape_cast %138 : vector<1x64x128xbf16> to vector<64x128xbf16>
    %cst_145 = arith.constant dense<0.000000e+00> : vector<128x128xf32>
    %140 = tpu.matmul %137, %139, %cst_145 {dimension_numbers = #tpu.dot_dimension_numbers<[1], [0], [0], [1], [0, 0, 1, 1], [], []>} : vector<128x64xbf16>, vector<64x128xbf16>, vector<128x128xf32> -> vector<128x128xf32>
    %141 = arith.addf %135, %140 : vector<128x128xf32>
    %c2_146 = arith.constant 2 : index
    %c2_147 = arith.constant 2 : index
    %c0_148 = arith.constant 0 : index
    %142 = vector.load %arg9[%c2_146, %c2_147, %c0_148] : memref<10x18x64xbf16, #tpu.memory_space<vmem>>, vector<8x16x64xbf16>
    %143 = vector.shape_cast %142 : vector<8x16x64xbf16> to vector<128x64xbf16>
    %c8_149 = arith.constant 8 : index
    %c0_150 = arith.constant 0 : index
    %c0_151 = arith.constant 0 : index
    %144 = vector.load %arg5[%c8_149, %c0_150, %c0_151] : memref<9x64x128xbf16, #tpu.memory_space<vmem>>, vector<1x64x128xbf16>
    %145 = vector.shape_cast %144 : vector<1x64x128xbf16> to vector<64x128xbf16>
    %cst_152 = arith.constant dense<0.000000e+00> : vector<128x128xf32>
    %146 = tpu.matmul %143, %145, %cst_152 {dimension_numbers = #tpu.dot_dimension_numbers<[1], [0], [0], [1], [0, 0, 1, 1], [], []>} : vector<128x64xbf16>, vector<64x128xbf16>, vector<128x128xf32> -> vector<128x128xf32>
    %147 = arith.addf %141, %146 : vector<128x128xf32>
    %c0_153 = arith.constant 0 : index
    %c0_154 = arith.constant 0 : index
    %148 = vector.load %arg6[%c0_153, %c0_154] : memref<1x128xf32, #tpu.memory_space<vmem>>, vector<1x128xf32>
    %149 = vector.broadcast %148 : vector<1x128xf32> to vector<128x128xf32>
    %150 = arith.addf %147, %149 : vector<128x128xf32>
    %151 = arith.truncf %150 : vector<128x128xf32> to vector<128x128xbf16>
    %c0_155 = arith.constant 0 : index
    %c0_156 = arith.constant 0 : index
    %c0_157 = arith.constant 0 : index
    %152 = vector.load %arg7[%c0_155, %c0_156, %c0_157] : memref<1x128x128xbf16, #tpu.memory_space<vmem>>, vector<1x128x128xbf16>
    %153 = vector.shape_cast %152 : vector<1x128x128xbf16> to vector<128x128xbf16>
    %154 = vector.shape_cast %151 : vector<128x128xbf16> to vector<1x128x128xbf16>
    tpu.vector_store %arg7[%c0_155, %c0_156, %c0_157], %154 {strides = array<i32>} : memref<1x128x128xbf16, #tpu.memory_space<vmem>>, vector<1x128x128xbf16>,
    return
  }
  func.func @transform_0(%arg0: i32, %arg1: i32) -> (i32, i32, i32, i32) {
    %c0_i32 = arith.constant 0 : i32
    %c0_i32_0 = arith.constant 0 : i32
    %c0_i32_1 = arith.constant 0 : i32
    %c0_i32_2 = arith.constant 0 : i32
    return %arg0, %c0_i32, %c0_i32_0, %c0_i32_1 : i32, i32, i32, i32
  }
  func.func @transform_1(%arg0: i32, %arg1: i32) -> (i32, i32, i32) {
    %c0_i32 = arith.constant 0 : i32
    %c0_i32_0 = arith.constant 0 : i32
    %c0_i32_1 = arith.constant 0 : i32
    %c0_i32_2 = arith.constant 0 : i32
    return %c0_i32, %c0_i32_0, %c0_i32_1 : i32, i32, i32
  }
  func.func @transform_2(%arg0: i32, %arg1: i32) -> (i32, i32) {
    %c0_i32 = arith.constant 0 : i32
    %c0_i32_0 = arith.constant 0 : i32
    %c0_i32_1 = arith.constant 0 : i32
    return %c0_i32, %c0_i32_0 : i32, i32
  }
  func.func @transform_3(%arg0: i32, %arg1: i32) -> (i32, i32, i32) {
    %c0_i32 = arith.constant 0 : i32
    %c0_i32_0 = arith.constant 0 : i32
    %c0_i32_1 = arith.constant 0 : i32
    %c0_i32_2 = arith.constant 0 : i32
    return %c0_i32, %c0_i32_0, %c0_i32_1 : i32, i32, i32
  }
  func.func @transform_4(%arg0: i32, %arg1: i32) -> (i32, i32) {
    %c0_i32 = arith.constant 0 : i32
    %c0_i32_0 = arith.constant 0 : i32
    %c0_i32_1 = arith.constant 0 : i32
    return %c0_i32, %c0_i32_0 : i32, i32
  }
  func.func @transform_5(%arg0: i32, %arg1: i32) -> (i32, i32, i32) {
    %c0_i32 = arith.constant 0 : i32
    %c0_i32_0 = arith.constant 0 : i32
    return %arg0, %arg1, %c0_i32 : i32, i32, i32
  }
}

</mosaic_0001>

<llo_original>
// kernel: plain_cnn_forward.1
$region0: #{plain_cnn_forward.1}
  #allocation0 [shape = 'u32[]', space=smem, size = 0x4, offset = 0x4, fixed_abs, tag = 'smem constant byte address 0x4 - core index']
  #allocation1 [shape = 'u32[72,128]{1,0:T(1,128)}', space=vmem, size = 0x9000, scoped, tag = 'internal scratch']
  #allocation2 [shape = 'bf16[12,18,64]{2,1,0:T(8,128)(2,1)}', space=vmem, size = 0x12000, scoped, tag = 'scratch operand']
  #allocation3 [shape = 'bf16[10,18,64]{2,1,0:T(8,128)(2,1)}', space=vmem, size = 0xf000, scoped, tag = 'scratch operand']
  %s0 = inlined_call_operand.vmem [shape: bf16[2,16,16,64], index: 0, kind: input, shape index: {}]
  %s1 = inlined_call_operand.vmem [shape: bf16[9,64,64], index: 1, kind: input, shape index: {}]
  %s2 = inlined_call_operand.vmem [shape: f32[1,64], index: 2, kind: input, shape index: {}]
  %s3 = inlined_call_operand.vmem [shape: bf16[9,64,128], index: 3, kind: input, shape index: {}]
  %s4 = inlined_call_operand.vmem [shape: f32[1,128], index: 4, kind: input, shape index: {}]
  %s5 = inlined_call_operand.vmem [shape: bf16[2,256,128], index: 5, kind: output, shape index: {}]
  %s6 = sld [smem:[#allocation0]]
  $region77: #{plain_cnn_forward.1} parent=0
    _
  %s8 = ssub.s32 1, %s6
  %s9 = scalar_select 0, %s8, %s6
  loop: start=0, step=1, limit=6
  $region2: #{plain_cnn_forward.1} parent=0 // loop_pre_header
    _
  $region3: #{plain_cnn_forward.1} parent=0 // loop_header
    %s11 = sphi 0, %s15
    %p12 = scmp.ge.s32.totalorder %s11, 6
    %s18 = sphi 0, %s30
    %s19 = sphi 0, %s26
    %s20 = sphi 0, %s18
    %s21 = sphi 0, %s19
    %s22 = sphi 0, %s20
    %s23 = sphi 0, %s21
    %s33 = sphi 0, %s35
    %s36 = sphi 0, %s33
    %s37 = sphi 0, %s36
    %s53 = sphi 0, %s37
    %s57 = sphi 0, %s57
    %s59 = sphi 0, %s57
    %s60 = sphi 0, %s59
    %s74 = sphi 0, %s60
    %s78 = sphi 0, %s78
    %s80 = sphi 0, %s78
    %s81 = sphi 0, %s80
    %s95 = sphi 0, %s81
    %s99 = sphi 0, %s99
    %s101 = sphi 0, %s99
    %s102 = sphi 0, %s101
    %s116 = sphi 0, %s102
    %s120 = sphi 0, %s120
    %s122 = sphi 0, %s120
    %s123 = sphi 0, %s122
    %s137 = sphi 0, %s123
    %s145 = sphi 0, %s147
    %s148 = sphi 0, %s145
    %s149 = sphi 0, %s148
    %s165 = sphi 0, %s149
  $region4: #{plain_cnn_forward.1} parent=0 // loop_header_branch
    %14 = sbr.rel (%p12) target = $region8
  $region5: #{plain_cnn_forward.1} parent=0 // loop_body
    %s16 = ssub.s32 %s11, 1
    %s17 = ssub.s32 %s11, 2
    %s24 = sadd.s32 1, %s19
    %p25 = scmp.ge.s32.totalorder %s24, 2
    %s26 = scalar_select %p25, 0, %s24
    %s27 = sadd.s32 1, %s18
    %s28 = scalar_select %p25, %s27, %s18
    %p29 = scmp.ge.s32.totalorder %s28, 2
    %s30 = scalar_select %p29, 0, %s28
    %s31 = ssub.s32 %s18, %s30
    %p32 = scmp.eq.s32.totalorder %s31, 0
    %s34 = sadd.s32 %s33, 1
    %s35 = scalar_select %p32, %s33, %s34
    %p38 = pneg %p32
    %p39 = scmp.eq.s32.totalorder %s11, 3
    %p40 = por %p38, %p39
    %p41 = scmp.ne.s32.totalorder %s33, %s36
    %p42 = scmp.eq.s32.totalorder %s11, 0
    %p43 = por %p41, %p42
    %p44 = scmp.ne.s32.totalorder %s33, %s36
    %p45 = scmp.eq.s32.totalorder %s16, 3
    %p46 = por %p44, %p45
    %p47 = scmp.ne.s32.totalorder %s36, %s37
    %p48 = scmp.eq.s32.totalorder %s16, 0
    %p49 = por %p47, %p48
    %p50 = scmp.ne.s32.totalorder %s36, %s37
    %p51 = scmp.eq.s32.totalorder %s17, 3
    %p52 = por %p50, %p51
    %p54 = scmp.ne.s32.totalorder %s37, %s53
    %p55 = scmp.eq.s32.totalorder %s17, 0
    %p56 = por %p54, %p55
    %s58 = sadd.s32 %s57, 1
    %p61 = scmp.eq.s32.totalorder %s11, 3
    %p62 = scmp.ne.s32.totalorder %s57, %s59
    %p63 = scmp.eq.s32.totalorder %s11, 0
    %p64 = por %p62, %p63
    %p65 = scmp.ne.s32.totalorder %s57, %s59
    %p66 = scmp.eq.s32.totalorder %s16, 3
    %p67 = por %p65, %p66
    %p68 = scmp.ne.s32.totalorder %s59, %s60
    %p69 = scmp.eq.s32.totalorder %s16, 0
    %p70 = por %p68, %p69
    %p71 = scmp.ne.s32.totalorder %s59, %s60
    %p72 = scmp.eq.s32.totalorder %s17, 3
    %p73 = por %p71, %p72
    %p75 = scmp.ne.s32.totalorder %s60, %s74
    %p76 = scmp.eq.s32.totalorder %s17, 0
    %p77 = por %p75, %p76
    %s79 = sadd.s32 %s78, 1
    %p82 = scmp.eq.s32.totalorder %s11, 3
    %p83 = scmp.ne.s32.totalorder %s78, %s80
    %p84 = scmp.eq.s32.totalorder %s11, 0
    %p85 = por %p83, %p84
    %p86 = scmp.ne.s32.totalorder %s78, %s80
    %p87 = scmp.eq.s32.totalorder %s16, 3
    %p88 = por %p86, %p87
    %p89 = scmp.ne.s32.totalorder %s80, %s81
    %p90 = scmp.eq.s32.totalorder %s16, 0
    %p91 = por %p89, %p90
    %p92 = scmp.ne.s32.totalorder %s80, %s81
    %p93 = scmp.eq.s32.totalorder %s17, 3
    %p94 = por %p92, %p93
    %p96 = scmp.ne.s32.totalorder %s81, %s95
    %p97 = scmp.eq.s32.totalorder %s17, 0
    %p98 = por %p96, %p97
    %s100 = sadd.s32 %s99, 1
    %p103 = scmp.eq.s32.totalorder %s11, 3
    %p104 = scmp.ne.s32.totalorder %s99, %s101
    %p105 = scmp.eq.s32.totalorder %s11, 0
    %p106 = por %p104, %p105
    %p107 = scmp.ne.s32.totalorder %s99, %s101
    %p108 = scmp.eq.s32.totalorder %s16, 3
    %p109 = por %p107, %p108
    %p110 = scmp.ne.s32.totalorder %s101, %s102
    %p111 = scmp.eq.s32.totalorder %s16, 0
    %p112 = por %p110, %p111
    %p113 = scmp.ne.s32.totalorder %s101, %s102
    %p114 = scmp.eq.s32.totalorder %s17, 3
    %p115 = por %p113, %p114
    %p117 = scmp.ne.s32.totalorder %s102, %s116
    %p118 = scmp.eq.s32.totalorder %s17, 0
    %p119 = por %p117, %p118
    %s121 = sadd.s32 %s120, 1
    %p124 = scmp.eq.s32.totalorder %s11, 3
    %p125 = scmp.ne.s32.totalorder %s120, %s122
    %p126 = scmp.eq.s32.totalorder %s11, 0
    %p127 = por %p125, %p126
    %p128 = scmp.ne.s32.totalorder %s120, %s122
    %p129 = scmp.eq.s32.totalorder %s16, 3
    %p130 = por %p128, %p129
    %p131 = scmp.ne.s32.totalorder %s122, %s123
    %p132 = scmp.eq.s32.totalorder %s16, 0
    %p133 = por %p131, %p132
    %p134 = scmp.ne.s32.totalorder %s122, %s123
    %p135 = scmp.eq.s32.totalorder %s17, 3
    %p136 = por %p134, %p135
    %p138 = scmp.ne.s32.totalorder %s123, %s137
    %p139 = scmp.eq.s32.totalorder %s17, 0
    %p140 = por %p138, %p139
    %s141 = ssub.s32 %s18, %s30
    %s142 = ssub.s32 %s19, %s26
    %s143 = sor.u32 %s141, %s142
    %p144 = scmp.eq.s32.totalorder %s143, 0
    %s146 = sadd.s32 %s145, 1
    %s147 = scalar_select %p144, %s145, %s146
    %p150 = pneg %p144
    %p151 = scmp.eq.s32.totalorder %s11, 3
    %p152 = por %p150, %p151
    %p153 = scmp.ne.s32.totalorder %s145, %s148
    %p154 = scmp.eq.s32.totalorder %s11, 0
    %p155 = por %p153, %p154
    %p156 = scmp.ne.s32.totalorder %s145, %s148
    %p157 = scmp.eq.s32.totalorder %s16, 3
    %p158 = por %p156, %p157
    %p159 = scmp.ne.s32.totalorder %s148, %s149
    %p160 = scmp.eq.s32.totalorder %s16, 0
    %p161 = por %p159, %p160
    %p162 = scmp.ne.s32.totalorder %s148, %s149
    %p163 = scmp.eq.s32.totalorder %s17, 3
    %p164 = por %p162, %p163
    %p166 = scmp.ne.s32.totalorder %s149, %s165
    %p167 = scmp.eq.s32.totalorder %s17, 0
    %p168 = por %p166, %p167
    %p169 = scmp.le.s32.totalorder 1, %s11
    %p170 = scmp.lt.s32.totalorder %s11, 5
    %p171 = pnand %p169, %p170
    %p172 = pneg %p171
    // Predicated region
    $region9: #{plain_cnn_forward.1} parent=5 // pred_check
      _
    $region10: #{plain_cnn_forward.1} parent=5 // pred_check_branch
      %174 = sbr.rel (%p171) target = $region12
    $region11: #{plain_cnn_forward.1} parent=5 // pred_region
      %s175 = ssub.s32 %s11, 1
      // Predicated region
      $region13: #{plain_cnn_forward.1} parent=11 // pred_check
        %p176 = pneg %p70
      $region14: #{plain_cnn_forward.1} parent=11 // pred_check_branch
        %178 = sbr.rel (%p176) target = $region16
      $region15: #{plain_cnn_forward.1} parent=11 // pred_region
        _
      $region16: #{plain_cnn_forward.1} parent=11 // pred_fallthru
        _
      // Predicated region
      $region17: #{plain_cnn_forward.1} parent=11 // pred_check
        %p179 = pneg %p91
      $region18: #{plain_cnn_forward.1} parent=11 // pred_check_branch
        %181 = sbr.rel (%p179) target = $region20
      $region19: #{plain_cnn_forward.1} parent=11 // pred_region
        _
      $region20: #{plain_cnn_forward.1} parent=11 // pred_fallthru
        _
      // Predicated region
      $region21: #{plain_cnn_forward.1} parent=11 // pred_check
        %p182 = pneg %p112
      $region22: #{plain_cnn_forward.1} parent=11 // pred_check_branch
        %184 = sbr.rel (%p182) target = $region24
      $region23: #{plain_cnn_forward.1} parent=11 // pred_region
        _
      $region24: #{plain_cnn_forward.1} parent=11 // pred_fallthru
        _
      // Predicated region
      $region25: #{plain_cnn_forward.1} parent=11 // pred_check
        %p185 = pneg %p133
      $region26: #{plain_cnn_forward.1} parent=11 // pred_check_branch
        %187 = sbr.rel (%p185) target = $region28
      $region27: #{plain_cnn_forward.1} parent=11 // pred_region
        _
      $region28: #{plain_cnn_forward.1} parent=11 // pred_fallthru
        _
    $region12: #{plain_cnn_forward.1} parent=5 // pred_fallthru
      _
    %p188 = scmp.lt.s32.totalorder %s11, 4
    // Predicated region
    $region29: #{plain_cnn_forward.1} parent=5 // pred_check
      %p189 = pneg %p188
    $region30: #{plain_cnn_forward.1} parent=5 // pred_check_branch
      %191 = sbr.rel (%p189) target = $region32
    $region31: #{plain_cnn_forward.1} parent=5 // pred_region
      // Predicated region
      $region33: #{plain_cnn_forward.1} parent=31 // pred_check
        %p192 = pneg %p43
      $region34: #{plain_cnn_forward.1} parent=31 // pred_check_branch
        %194 = sbr.rel (%p192) target = $region36
      $region35: #{plain_cnn_forward.1} parent=31 // pred_region
        %p195 = scmp.lt.s32.totalorder %s18, 1
        %s196 = scalar_select %p195, %s18, 1
        %s197 = smul.addr %s196, 32
        %s198 = smul.addr %s197, 4
        %s199 = scalar_lea.vmem %s0, %s198
      $region36: #{plain_cnn_forward.1} parent=31 // pred_fallthru
        _
    $region32: #{plain_cnn_forward.1} parent=5 // pred_fallthru
      _
    %p200 = scmp.le.s32.totalorder 1, %s11
    %p201 = scmp.lt.s32.totalorder %s11, 5
    %p202 = pnand %p200, %p201
    %p203 = pneg %p202
    // Predicated region
    $region37: #{plain_cnn_forward.1} parent=5 // pred_check
      _
    $region38: #{plain_cnn_forward.1} parent=5 // pred_check_branch
      %205 = sbr.rel (%p202) target = $region40
    $region39: #{plain_cnn_forward.1} parent=5 // pred_region
      %s206 = ssub.s32 %s11, 1
      %p207 = scmp.lt.s32.totalorder %s20, 1
      %s208 = scalar_select %p207, %s20, 1
      %s209 = smul.addr %s208, 32
      %s210 = smul.addr %s209, 4
      %s211 = scalar_lea.vmem %s0, %s210
      %p212 = pneg %p49
      %p213 = pneg %p46
      %p214 = pneg %p70
      %p215 = pneg %p67
      %p216 = pneg %p91
      %p217 = pneg %p88
      %p218 = pneg %p112
      %p219 = pneg %p109
      %p220 = pneg %p133
      %p221 = pneg %p130
      %p222 = pneg %p161
      %p223 = pneg %p158
      %s224 = smul.u32 16, %s21
      %p225 = scmp.lt.s32.totalorder %s20, 1
      %s226 = scalar_select %p225, %s20, 1
      %p227 = scmp.lt.s32.totalorder %s224, 31
      %s228 = scalar_select %p227, %s224, 31
      %s229 = smul.addr %s226, 32
      %s230 = sadd.s32 %s228, %s229
      %s231 = smul.addr %s230, 4
      %s232 = scalar_lea.vmem %s5, %s231
      %p233 = scmp.lt.s32.totalorder %s20, 1
      %s234 = scalar_select %p233, %s20, 1
      %s235 = smul.addr %s234, 32
      %s236 = smul.addr %s235, 4
      %s237 = scalar_lea.vmem %s0, %s236
      %s238 = smul.u32 16, %s21
      %p239 = scmp.lt.s32.totalorder %s20, 1
      %s240 = scalar_select %p239, %s20, 1
      %p241 = scmp.lt.s32.totalorder %s238, 31
      %s242 = scalar_select %p241, %s238, 31
      %s243 = smul.addr %s240, 32
      %s244 = sadd.s32 %s242, %s243
      %s245 = smul.addr %s244, 4
      %s246 = scalar_lea.vmem %s5, %s245
      %s247 = smul.u32 16, %s21
      %s249 = smul.u32 %s21, 8
      %vm250 = vcmask 516096
      %vm251 = vsmask.f32 256
      %vm252 = vmand %vm250, %vm251
      %v253 = vld [vmem:[#allocation2] sm:$0x1]
      %v254 = vsel %vm252, 0, %v253
      %255 = vst [vmem:[#allocation2] sm:$0x1] %v254
      %v256 = vld [vmem:[#allocation2 + $0xc] sm:$0x1]
      %v257 = vsel %vm252, 0, %v256
      %258 = vst [vmem:[#allocation2 + $0xc] sm:$0x1] %v257
      %v259 = vld [vmem:[#allocation2 + $0x18] sm:$0x1]
      %v260 = vsel %vm252, 0, %v259
      %261 = vst [vmem:[#allocation2 + $0x18] sm:$0x1] %v260
      %v262 = vld [vmem:[#allocation2 + $0x24] sm:$0x1]
      %v263 = vsel %vm252, 0, %v262
      %264 = vst [vmem:[#allocation2 + $0x24] sm:$0x1] %v263
      %v265 = vld [vmem:[#allocation2 + $0x30] sm:$0x1]
      %v266 = vsel %vm252, 0, %v265
      %267 = vst [vmem:[#allocation2 + $0x30] sm:$0x1] %v266
      %v268 = vld [vmem:[#allocation2 + $0x3c] sm:$0x1]
      %v269 = vsel %vm252, 0, %v268
      %270 = vst [vmem:[#allocation2 + $0x3c] sm:$0x1] %v269
      %v271 = vld [vmem:[#allocation2 + $0x48] sm:$0x1]
      %v272 = vsel %vm252, 0, %v271
      %273 = vst [vmem:[#allocation2 + $0x48] sm:$0x1] %v272
      %v274 = vld [vmem:[#allocation2 + $0x54] sm:$0x1]
      %v275 = vsel %vm252, 0, %v274
      %276 = vst [vmem:[#allocation2 + $0x54] sm:$0x1] %v275
      %v277 = vld [vmem:[#allocation2 + $0x60] sm:$0x1]
      %v278 = vsel %vm252, 0, %v277
      %279 = vst [vmem:[#allocation2 + $0x60] sm:$0x1] %v278
      %v280 = vld [vmem:[#allocation2 + $0x6c] sm:$0x1]
      %v281 = vsel %vm252, 0, %v280
      %282 = vst [vmem:[#allocation2 + $0x6c] sm:$0x1] %v281
      %v283 = vld [vmem:[#allocation2 + $0x78] sm:$0x1]
      %v284 = vsel %vm252, 0, %v283
      %285 = vst [vmem:[#allocation2 + $0x78] sm:$0x1] %v284
      %v286 = vld [vmem:[#allocation2 + $0x84] sm:$0x1]
      %v287 = vsel %vm252, 0, %v286
      %288 = vst [vmem:[#allocation2 + $0x84] sm:$0x1] %v287
      %vm289 = vsmask.f32 7938
      %vm290 = vmand %vm250, %vm289
      %v291 = vld [vmem:[#allocation2 + $0x8] sm:$0x1]
      %v292 = vsel %vm290, 0, %v291
      %293 = vst [vmem:[#allocation2 + $0x8] sm:$0x1] %v292
      %v294 = vld [vmem:[#allocation2 + $0x14] sm:$0x1]
      %v295 = vsel %vm290, 0, %v294
      %296 = vst [vmem:[#allocation2 + $0x14] sm:$0x1] %v295
      %v297 = vld [vmem:[#allocation2 + $0x20] sm:$0x1]
      %v298 = vsel %vm290, 0, %v297
      %299 = vst [vmem:[#allocation2 + $0x20] sm:$0x1] %v298
      %v300 = vld [vmem:[#allocation2 + $0x2c] sm:$0x1]
      %v301 = vsel %vm290, 0, %v300
      %302 = vst [vmem:[#allocation2 + $0x2c] sm:$0x1] %v301
      %v303 = vld [vmem:[#allocation2 + $0x38] sm:$0x1]
      %v304 = vsel %vm290, 0, %v303
      %305 = vst [vmem:[#allocation2 + $0x38] sm:$0x1] %v304
      %v306 = vld [vmem:[#allocation2 + $0x44] sm:$0x1]
      %v307 = vsel %vm290, 0, %v306
      %308 = vst [vmem:[#allocation2 + $0x44] sm:$0x1] %v307
      %v309 = vld [vmem:[#allocation2 + $0x50] sm:$0x1]
      %v310 = vsel %vm290, 0, %v309
      %311 = vst [vmem:[#allocation2 + $0x50] sm:$0x1] %v310
      %v312 = vld [vmem:[#allocation2 + $0x5c] sm:$0x1]
      %v313 = vsel %vm290, 0, %v312
      %314 = vst [vmem:[#allocation2 + $0x5c] sm:$0x1] %v313
      %v315 = vld [vmem:[#allocation2 + $0x68] sm:$0x1]
      %v316 = vsel %vm290, 0, %v315
      %317 = vst [vmem:[#allocation2 + $0x68] sm:$0x1] %v316
      %v318 = vld [vmem:[#allocation2 + $0x74] sm:$0x1]
      %v319 = vsel %vm290, 0, %v318
      %320 = vst [vmem:[#allocation2 + $0x74] sm:$0x1] %v319
      %v321 = vld [vmem:[#allocation2 + $0x80] sm:$0x1]
      %v322 = vsel %vm290, 0, %v321
      %323 = vst [vmem:[#allocation2 + $0x80] sm:$0x1] %v322
      %v324 = vld [vmem:[#allocation2 + $0x8c] sm:$0x1]
      %v325 = vsel %vm290, 0, %v324
      %326 = vst [vmem:[#allocation2 + $0x8c] sm:$0x1] %v325
      %s327 = smul.u32 %s249, 2
      %s328 = smul.addr %s327, 4
      %s329 = scalar_lea.vmem %s237, %s328
      %v330 = vld [vmem:[%s329] sm:$0xf]
      %v331 = vld [vmem:[%s329 + $0x4] sm:$0xf]
      %v332 = vld [vmem:[%s329 + $0x8] sm:$0xf]
      %v333 = vld [vmem:[%s329 + $0xc] sm:$0xf]
      %v334 = vld [vmem:[%s329 + $0x10] sm:$0xf]
      %v335 = vld [vmem:[%s329 + $0x14] sm:$0xf]
      %v336 = vld [vmem:[%s329 + $0x18] sm:$0xf]
      %v337 = vld [vmem:[%s329 + $0x1c] sm:$0xf]
      %v338 = vld [vmem:[%s329 + $0x20] sm:$0xf]
      %v339 = vld [vmem:[%s329 + $0x24] sm:$0xf]
      %v340 = vld [vmem:[%s329 + $0x28] sm:$0xf]
      %v341 = vld [vmem:[%s329 + $0x2c] sm:$0xf]
      %v342 = vld [vmem:[%s329 + $0x30] sm:$0xf]
      %v343 = vld [vmem:[%s329 + $0x34] sm:$0xf]
      %v344 = vld [vmem:[%s329 + $0x38] sm:$0xf]
      %v345 = vld [vmem:[%s329 + $0x3c] sm:$0xf]
      %vm346 = vsmask.f32 4368
      %vm347 = vmor %vm251, %vm346
      %v349 = vshrl.u32 %v330, 16
      %v351 = vrot.slane %v349, 7
      %v352 = vshll.u32 %v330, 16
      %v354 = vor.u32 %v351, %v352
      %v355 = vrot.slane %v351, 4
      %v357 = vshrl.u32 %v331, 16
      %v359 = vrot.slane %v357, 7
      %v360 = vshll.u32 %v331, 16
      %v362 = vor.u32 %v359, %v360
      %v363 = vsel %vm347, %v355, %v362
      %v364 = vrot.slane %v359, 4
      %v366 = vshrl.u32 %v332, 16
      %v368 = vrot.slane %v366, 7
      %v369 = vshll.u32 %v332, 16
      %v371 = vor.u32 %v368, %v369
      %v372 = vrot.slane %v368, 4
      %v374 = vshrl.u32 %v333, 16
      %v376 = vrot.slane %v374, 7
      %v377 = vshll.u32 %v333, 16
      %v379 = vor.u32 %v376, %v377
      %v380 = vsel %vm347, %v372, %v379
      %v381 = vrot.slane %v376, 4
      %v383 = vshrl.u32 %v334, 16
      %v385 = vrot.slane %v383, 7
      %v386 = vshll.u32 %v334, 16
      %v388 = vor.u32 %v385, %v386
      %v389 = vrot.slane %v385, 4
      %v391 = vshrl.u32 %v335, 16
      %v393 = vrot.slane %v391, 7
      %v394 = vshll.u32 %v335, 16
      %v396 = vor.u32 %v393, %v394
      %v397 = vsel %vm347, %v389, %v396
      %v398 = vrot.slane %v393, 4
      %v400 = vshrl.u32 %v336, 16
      %v402 = vrot.slane %v400, 7
      %v403 = vshll.u32 %v336, 16
      %v405 = vor.u32 %v402, %v403
      %v406 = vrot.slane %v402, 4
      %v408 = vshrl.u32 %v337, 16
      %v410 = vrot.slane %v408, 7
      %v411 = vshll.u32 %v337, 16
      %v413 = vor.u32 %v410, %v411
      %v414 = vsel %vm347, %v406, %v413
      %v415 = vrot.slane %v410, 4
      %v417 = vshrl.u32 %v338, 16
      %v419 = vrot.slane %v417, 7
      %v420 = vshll.u32 %v338, 16
      %v422 = vor.u32 %v419, %v420
      %v423 = vrot.slane %v419, 4
      %v425 = vshrl.u32 %v339, 16
      %v427 = vrot.slane %v425, 7
      %v428 = vshll.u32 %v339, 16
      %v430 = vor.u32 %v427, %v428
      %v431 = vsel %vm347, %v423, %v430
      %v432 = vrot.slane %v427, 4
      %v434 = vshrl.u32 %v340, 16
      %v436 = vrot.slane %v434, 7
      %v437 = vshll.u32 %v340, 16
      %v439 = vor.u32 %v436, %v437
      %v440 = vrot.slane %v436, 4
      %v442 = vshrl.u32 %v341, 16
      %v444 = vrot.slane %v442, 7
      %v445 = vshll.u32 %v341, 16
      %v447 = vor.u32 %v444, %v445
      %v448 = vsel %vm347, %v440, %v447
      %v449 = vrot.slane %v444, 4
      %v451 = vshrl.u32 %v342, 16
      %v453 = vrot.slane %v451, 7
      %v454 = vshll.u32 %v342, 16
      %v456 = vor.u32 %v453, %v454
      %v457 = vrot.slane %v453, 4
      %v459 = vshrl.u32 %v343, 16
      %v461 = vrot.slane %v459, 7
      %v462 = vshll.u32 %v343, 16
      %v464 = vor.u32 %v461, %v462
      %v465 = vsel %vm347, %v457, %v464
      %v466 = vrot.slane %v461, 4
      %v468 = vshrl.u32 %v344, 16
      %v470 = vrot.slane %v468, 7
      %v471 = vshll.u32 %v344, 16
      %v473 = vor.u32 %v470, %v471
      %v474 = vrot.slane %v470, 4
      %v476 = vshrl.u32 %v345, 16
      %v478 = vrot.slane %v476, 7
      %v479 = vshll.u32 %v345, 16
      %v481 = vor.u32 %v478, %v479
      %v482 = vsel %vm347, %v474, %v481
      %v483 = vrot.slane %v478, 4
      %s508 = scalar_lea.vmem [#allocation2], 24
      %vm509 = vcmask 519168
      %vm510 = vmand %vm509, %vm289
      %v511 = vld [vmem:[%s508] sm:$0xf]
      %v512 = vsel %vm510, %v354, %v511
      %513 = vst [vmem:[%s508] sm:$0xf] %v512
      %vm514 = vcmask 519168
      %515 = vst.msk [vmem:[%s508 + $0x4] sm:$0xf] %vm514, %v363
      %v516 = vld [vmem:[%s508 + $0x8] sm:$0x1]
      %v517 = vsel %vm252, %v364, %v516
      %518 = vst [vmem:[%s508 + $0x8] sm:$0x1] %v517
      %v519 = vld [vmem:[%s508 + $0xc] sm:$0xf]
      %v520 = vsel %vm510, %v371, %v519
      %521 = vst [vmem:[%s508 + $0xc] sm:$0xf] %v520
      %522 = vst.msk [vmem:[%s508 + $0x10] sm:$0xf] %vm514, %v380
      %v523 = vld [vmem:[%s508 + $0x14] sm:$0x1]
      %v524 = vsel %vm252, %v381, %v523
      %525 = vst [vmem:[%s508 + $0x14] sm:$0x1] %v524
      %v526 = vld [vmem:[%s508 + $0x18] sm:$0xf]
      %v527 = vsel %vm510, %v388, %v526
      %528 = vst [vmem:[%s508 + $0x18] sm:$0xf] %v527
      %529 = vst.msk [vmem:[%s508 + $0x1c] sm:$0xf] %vm514, %v397
      %v530 = vld [vmem:[%s508 + $0x20] sm:$0x1]
      %v531 = vsel %vm252, %v398, %v530
      %532 = vst [vmem:[%s508 + $0x20] sm:$0x1] %v531
      %v533 = vld [vmem:[%s508 + $0x24] sm:$0xf]
      %v534 = vsel %vm510, %v405, %v533
      %535 = vst [vmem:[%s508 + $0x24] sm:$0xf] %v534
      %536 = vst.msk [vmem:[%s508 + $0x28] sm:$0xf] %vm514, %v414
      %v537 = vld [vmem:[%s508 + $0x2c] sm:$0x1]
      %v538 = vsel %vm252, %v415, %v537
      %539 = vst [vmem:[%s508 + $0x2c] sm:$0x1] %v538
      %v540 = vld [vmem:[%s508 + $0x30] sm:$0xf]
      %v541 = vsel %vm510, %v422, %v540
      %542 = vst [vmem:[%s508 + $0x30] sm:$0xf] %v541
      %543 = vst.msk [vmem:[%s508 + $0x34] sm:$0xf] %vm514, %v431
      %v544 = vld [vmem:[%s508 + $0x38] sm:$0x1]
      %v545 = vsel %vm252, %v432, %v544
      %546 = vst [vmem:[%s508 + $0x38] sm:$0x1] %v545
      %v547 = vld [vmem:[%s508 + $0x3c] sm:$0xf]
      %v548 = vsel %vm510, %v439, %v547
      %549 = vst [vmem:[%s508 + $0x3c] sm:$0xf] %v548
      %550 = vst.msk [vmem:[%s508 + $0x40] sm:$0xf] %vm514, %v448
      %v551 = vld [vmem:[%s508 + $0x44] sm:$0x1]
      %v552 = vsel %vm252, %v449, %v551
      %553 = vst [vmem:[%s508 + $0x44] sm:$0x1] %v552
      %v554 = vld [vmem:[%s508 + $0x48] sm:$0xf]
      %v555 = vsel %vm510, %v456, %v554
      %556 = vst [vmem:[%s508 + $0x48] sm:$0xf] %v555
      %557 = vst.msk [vmem:[%s508 + $0x4c] sm:$0xf] %vm514, %v465
      %v558 = vld [vmem:[%s508 + $0x50] sm:$0x1]
      %v559 = vsel %vm252, %v466, %v558
      %560 = vst [vmem:[%s508 + $0x50] sm:$0x1] %v559
      %v561 = vld [vmem:[%s508 + $0x54] sm:$0xf]
      %v562 = vsel %vm510, %v473, %v561
      %563 = vst [vmem:[%s508 + $0x54] sm:$0xf] %v562
      %564 = vst.msk [vmem:[%s508 + $0x58] sm:$0xf] %vm514, %v482
      %v565 = vld [vmem:[%s508 + $0x5c] sm:$0x1]
      %v566 = vsel %vm252, %v483, %v565
      %567 = vst [vmem:[%s508 + $0x5c] sm:$0x1] %v566
      %p568 = scmp.gt.s32.totalorder %s21, 0
      // Predicated region
      $region41: #{plain_cnn_forward.1} parent=39 // pred_check
        %p569 = pneg %p568
      $region42: #{plain_cnn_forward.1} parent=39 // pred_check_branch
        %571 = sbr.rel (%p569) target = $region44
      $region43: #{plain_cnn_forward.1} parent=39 // pred_region
        %s572 = ssub.s32 %s249, 2
        %s573 = smul.u32 %s572, 2
        %s574 = smul.addr %s573, 4
        %s575 = scalar_lea.vmem %s237, %s574
        %v576 = vld [vmem:[%s575] sm:$0xf]
        %v577 = vld [vmem:[%s575 + $0x4] sm:$0xf]
        %v578 = vld [vmem:[%s575 + $0x8] sm:$0xf]
        %v579 = vld [vmem:[%s575 + $0xc] sm:$0xf]
        %v581 = vshrl.u32 %v576, 16
        %v583 = vrot.slane %v581, 7
        %v584 = vshll.u32 %v576, 16
        %v586 = vor.u32 %v583, %v584
        %v587 = vrot.slane %v583, 4
        %v589 = vshrl.u32 %v577, 16
        %v591 = vrot.slane %v589, 7
        %v592 = vshll.u32 %v577, 16
        %v594 = vor.u32 %v591, %v592
        %v595 = vsel %vm347, %v587, %v594
        %v596 = vrot.slane %v591, 4
        %v598 = vshrl.u32 %v578, 16
        %v600 = vrot.slane %v598, 7
        %v601 = vshll.u32 %v578, 16
        %v603 = vor.u32 %v600, %v601
        %v604 = vrot.slane %v600, 4
        %v606 = vshrl.u32 %v579, 16
        %v608 = vrot.slane %v606, 7
        %v609 = vshll.u32 %v579, 16
        %v611 = vor.u32 %v608, %v609
        %v612 = vsel %vm347, %v604, %v611
        %v613 = vrot.slane %v608, 4
        %v620 = vld [vmem:[#allocation2] sm:$0xf]
        %v621 = vsel %vm510, %v586, %v620
        %622 = vst [vmem:[#allocation2] sm:$0xf] %v621
        %623 = vst.msk [vmem:[#allocation2 + $0x4] sm:$0xf] %vm514, %v595
        %v624 = vld [vmem:[#allocation2 + $0x8] sm:$0x1]
        %v625 = vsel %vm252, %v596, %v624
        %626 = vst [vmem:[#allocation2 + $0x8] sm:$0x1] %v625
        %v627 = vld [vmem:[#allocation2 + $0xc] sm:$0xf]
        %v628 = vsel %vm510, %v603, %v627
        %629 = vst [vmem:[#allocation2 + $0xc] sm:$0xf] %v628
        %630 = vst.msk [vmem:[#allocation2 + $0x10] sm:$0xf] %vm514, %v612
        %v631 = vld [vmem:[#allocation2 + $0x14] sm:$0x1]
        %v632 = vsel %vm252, %v613, %v631
        %633 = vst [vmem:[#allocation2 + $0x14] sm:$0x1] %v632
      $region44: #{plain_cnn_forward.1} parent=39 // pred_fallthru
        _
      %p634 = scmp.eq.s32.totalorder %s21, 0
      // Predicated region
      $region45: #{plain_cnn_forward.1} parent=39 // pred_check
        %p635 = pneg %p634
      $region46: #{plain_cnn_forward.1} parent=39 // pred_check_branch
        %637 = sbr.rel (%p635) target = $region48
      $region47: #{plain_cnn_forward.1} parent=39 // pred_region
        %638 = vst.msk [vmem:[#allocation2] sm:$0xf] %vm514, 0
        %639 = vst.msk [vmem:[#allocation2 + $0x4] sm:$0xf] %vm514, 0
        %vm640 = vcmask 516096
        %641 = vst.msk [vmem:[#allocation2 + $0x8] sm:$0x1] %vm640, 0
        %642 = vst.msk [vmem:[#allocation2 + $0xc] sm:$0xf] %vm514, 0
        %643 = vst.msk [vmem:[#allocation2 + $0x10] sm:$0xf] %vm514, 0
        %644 = vst.msk [vmem:[#allocation2 + $0x14] sm:$0x1] %vm640, 0
      $region48: #{plain_cnn_forward.1} parent=39 // pred_fallthru
        _
      %p645 = scmp.lt.s32.totalorder %s21, 1
      // Predicated region
      $region49: #{plain_cnn_forward.1} parent=39 // pred_check
        %p646 = pneg %p645
      $region50: #{plain_cnn_forward.1} parent=39 // pred_check_branch
        %648 = sbr.rel (%p646) target = $region52
      $region51: #{plain_cnn_forward.1} parent=39 // pred_region
        %s649 = sadd.s32 %s249, 8
        %s650 = smul.u32 %s649, 2
        %s651 = smul.addr %s650, 4
        %s652 = scalar_lea.vmem %s237, %s651
        %v653 = vld [vmem:[%s652] sm:$0xf]
        %v654 = vld [vmem:[%s652 + $0x4] sm:$0xf]
        %v655 = vld [vmem:[%s652 + $0x8] sm:$0xf]
        %v656 = vld [vmem:[%s652 + $0xc] sm:$0xf]
        %v658 = vshrl.u32 %v653, 16
        %v660 = vrot.slane %v658, 7
        %v661 = vshll.u32 %v653, 16
        %v663 = vor.u32 %v660, %v661
        %v664 = vrot.slane %v660, 4
        %v666 = vshrl.u32 %v654, 16
        %v668 = vrot.slane %v666, 7
        %v669 = vshll.u32 %v654, 16
        %v671 = vor.u32 %v668, %v669
        %v672 = vsel %vm347, %v664, %v671
        %v673 = vrot.slane %v668, 4
        %v675 = vshrl.u32 %v655, 16
        %v677 = vrot.slane %v675, 7
        %v678 = vshll.u32 %v655, 16
        %v680 = vor.u32 %v677, %v678
        %v681 = vrot.slane %v677, 4
        %v683 = vshrl.u32 %v656, 16
        %v685 = vrot.slane %v683, 7
        %v686 = vshll.u32 %v656, 16
        %v688 = vor.u32 %v685, %v686
        %v689 = vsel %vm347, %v681, %v688
        %v690 = vrot.slane %v685, 4
        %s697 = scalar_lea.vmem [#allocation2], 120
        %v698 = vld [vmem:[%s697] sm:$0xf]
        %v699 = vsel %vm510, %v663, %v698
        %700 = vst [vmem:[%s697] sm:$0xf] %v699
        %701 = vst.msk [vmem:[%s697 + $0x4] sm:$0xf] %vm514, %v672
        %v702 = vld [vmem:[%s697 + $0x8] sm:$0x1]
        %v703 = vsel %vm252, %v673, %v702
        %704 = vst [vmem:[%s697 + $0x8] sm:$0x1] %v703
        %v705 = vld [vmem:[%s697 + $0xc] sm:$0xf]
        %v706 = vsel %vm510, %v680, %v705
        %707 = vst [vmem:[%s697 + $0xc] sm:$0xf] %v706
        %708 = vst.msk [vmem:[%s697 + $0x10] sm:$0xf] %vm514, %v689
        %v709 = vld [vmem:[%s697 + $0x14] sm:$0x1]
        %v710 = vsel %vm252, %v690, %v709
        %711 = vst [vmem:[%s697 + $0x14] sm:$0x1] %v710
      $region52: #{plain_cnn_forward.1} parent=39 // pred_fallthru
        _
      %p712 = scmp.eq.s32.totalorder %s21, 1
      // Predicated region
      $region53: #{plain_cnn_forward.1} parent=39 // pred_check
        %p713 = pneg %p712
      $region54: #{plain_cnn_forward.1} parent=39 // pred_check_branch
        %715 = sbr.rel (%p713) target = $region56
      $region55: #{plain_cnn_forward.1} parent=39 // pred_region
        %s716 = scalar_lea.vmem [#allocation2], 120
        %717 = vst.msk [vmem:[%s716] sm:$0xf] %vm514, 0
        %718 = vst.msk [vmem:[%s716 + $0x4] sm:$0xf] %vm514, 0
        %vm719 = vcmask 516096
        %720 = vst.msk [vmem:[%s716 + $0x8] sm:$0x1] %vm719, 0
        %721 = vst.msk [vmem:[%s716 + $0xc] sm:$0xf] %vm514, 0
        %722 = vst.msk [vmem:[%s716 + $0x10] sm:$0xf] %vm514, 0
        %723 = vst.msk [vmem:[%s716 + $0x14] sm:$0x1] %vm719, 0
      $region56: #{plain_cnn_forward.1} parent=39 // pred_fallthru
        _
      %v724 = vld [vmem:[#allocation2] sm:$0xf]
      %v725 = vld [vmem:[#allocation2 + $0x4] sm:$0xf]
      %v726 = vld [vmem:[#allocation2 + $0xc] sm:$0xf]
      %v727 = vld [vmem:[#allocation2 + $0x10] sm:$0xf]
      %v728 = vld [vmem:[#allocation2 + $0x18] sm:$0xf]
      %v729 = vld [vmem:[#allocation2 + $0x1c] sm:$0xf]
      %v730 = vld [vmem:[#allocation2 + $0x24] sm:$0xf]
      %v731 = vld [vmem:[#allocation2 + $0x28] sm:$0xf]
      %v732 = vld [vmem:[#allocation2 + $0x30] sm:$0xf]
      %v733 = vld [vmem:[#allocation2 + $0x34] sm:$0xf]
      %v734 = vld [vmem:[#allocation2 + $0x3c] sm:$0xf]
      %v735 = vld [vmem:[#allocation2 + $0x40] sm:$0xf]
      %v736 = vld [vmem:[#allocation2 + $0x48] sm:$0xf]
      %v737 = vld [vmem:[#allocation2 + $0x4c] sm:$0xf]
      %v738 = vld [vmem:[#allocation2 + $0x54] sm:$0xf]
      %v739 = vld [vmem:[#allocation2 + $0x58] sm:$0xf]
      %v740 = vld [vmem:[#allocation2 + $0x60] sm:$0xf]
      %v741 = vld [vmem:[#allocation2 + $0x64] sm:$0xf]
      %v742 = vld [vmem:[#allocation2 + $0x6c] sm:$0xf]
      %v743 = vld [vmem:[#allocation2 + $0x70] sm:$0xf]
      %v744 = vld [vmem:[%s1] sm:$0xf]
      %v745 = vld [vmem:[%s1 + $0x4] sm:$0xf]
      %v746 = vld [vmem:[%s1 + $0x8] sm:$0xf]
      %v747 = vld [vmem:[%s1 + $0xc] sm:$0xf]
      %v748 = vld [vmem:[%s1 + $0x10] sm:$0xf]
      %v749 = vld [vmem:[%s1 + $0x14] sm:$0xf]
      %v750 = vld [vmem:[%s1 + $0x18] sm:$0xf]
      %v751 = vld [vmem:[%s1 + $0x1c] sm:$0xf]
      %v752 = vld [vmem:[#allocation2 + $0x8] sm:$0x1]
      %v753 = vld [vmem:[#allocation2 + $0x14] sm:$0x1]
      %v754 = vld [vmem:[#allocation2 + $0x20] sm:$0x1]
      %v755 = vld [vmem:[#allocation2 + $0x2c] sm:$0x1]
      %v756 = vld [vmem:[#allocation2 + $0x38] sm:$0x1]
      %v757 = vld [vmem:[#allocation2 + $0x44] sm:$0x1]
      %v758 = vld [vmem:[#allocation2 + $0x50] sm:$0x1]
      %v759 = vld [vmem:[#allocation2 + $0x5c] sm:$0x1]
      %v760 = vld [vmem:[#allocation2 + $0x68] sm:$0x1]
      %v761 = vld [vmem:[#allocation2 + $0x74] sm:$0x1]
      %vm762 = vsmask.f32 3328
      %vm763 = vsmask.f32 7440
      %vm764 = vmor %vm762, %vm763
      %v766 = vshrl.u32 %v724, 16
      %v768 = vrot.slane %v766, 4
      %v769 = vshll.u32 %v724, 16
      %v771 = vrot.slane %v769, 5
      %v772 = vor.u32 %v768, %v771
      %v773 = vrot.slane %v772, 4
      %v775 = vshll.u32 %v725, 16
      %v777 = vrot.slane %v775, 5
      %v778 = vsel %vm764, %v773, %v777
      %v779 = vshrl.u32 %v725, 16
      %v781 = vrot.slane %v779, 4
      %v782 = vor.u32 %v781, %v777
      %v783 = vrot.slane %v782, 4
      %v785 = vshll.u32 %v752, 16
      %v787 = vrot.slane %v785, 5
      %v788 = vsel %vm764, %v783, %v787
      %v790 = vshrl.u32 %v726, 16
      %v792 = vrot.slane %v790, 4
      %v793 = vshll.u32 %v726, 16
      %v795 = vrot.slane %v793, 5
      %v796 = vor.u32 %v792, %v795
      %v797 = vrot.slane %v796, 4
      %v799 = vshll.u32 %v727, 16
      %v801 = vrot.slane %v799, 5
      %v802 = vsel %vm764, %v797, %v801
      %v803 = vshrl.u32 %v727, 16
      %v805 = vrot.slane %v803, 4
      %v806 = vor.u32 %v805, %v801
      %v807 = vrot.slane %v806, 4
      %v809 = vshll.u32 %v753, 16
      %v811 = vrot.slane %v809, 5
      %v812 = vsel %vm764, %v807, %v811
      %v814 = vshrl.u32 %v728, 16
      %v816 = vrot.slane %v814, 4
      %v817 = vshll.u32 %v728, 16
      %v819 = vrot.slane %v817, 5
      %v820 = vor.u32 %v816, %v819
      %v821 = vrot.slane %v820, 4
      %v823 = vshll.u32 %v729, 16
      %v825 = vrot.slane %v823, 5
      %v826 = vsel %vm764, %v821, %v825
      %v827 = vshrl.u32 %v729, 16
      %v829 = vrot.slane %v827, 4
      %v830 = vor.u32 %v829, %v825
      %v831 = vrot.slane %v830, 4
      %v833 = vshll.u32 %v754, 16
      %v835 = vrot.slane %v833, 5
      %v836 = vsel %vm764, %v831, %v835
      %v838 = vshrl.u32 %v730, 16
      %v840 = vrot.slane %v838, 4
      %v841 = vshll.u32 %v730, 16
      %v843 = vrot.slane %v841, 5
      %v844 = vor.u32 %v840, %v843
      %v845 = vrot.slane %v844, 4
      %v847 = vshll.u32 %v731, 16
      %v849 = vrot.slane %v847, 5
      %v850 = vsel %vm764, %v845, %v849
      %v851 = vshrl.u32 %v731, 16
      %v853 = vrot.slane %v851, 4
      %v854 = vor.u32 %v853, %v849
      %v855 = vrot.slane %v854, 4
      %v857 = vshll.u32 %v755, 16
      %v859 = vrot.slane %v857, 5
      %v860 = vsel %vm764, %v855, %v859
      %v862 = vshrl.u32 %v732, 16
      %v864 = vrot.slane %v862, 4
      %v865 = vshll.u32 %v732, 16
      %v867 = vrot.slane %v865, 5
      %v868 = vor.u32 %v864, %v867
      %v869 = vrot.slane %v868, 4
      %v871 = vshll.u32 %v733, 16
      %v873 = vrot.slane %v871, 5
      %v874 = vsel %vm764, %v869, %v873
      %v875 = vshrl.u32 %v733, 16
      %v877 = vrot.slane %v875, 4
      %v878 = vor.u32 %v877, %v873
      %v879 = vrot.slane %v878, 4
      %v881 = vshll.u32 %v756, 16
      %v883 = vrot.slane %v881, 5
      %v884 = vsel %vm764, %v879, %v883
      %v886 = vshrl.u32 %v734, 16
      %v888 = vrot.slane %v886, 4
      %v889 = vshll.u32 %v734, 16
      %v891 = vrot.slane %v889, 5
      %v892 = vor.u32 %v888, %v891
      %v893 = vrot.slane %v892, 4
      %v895 = vshll.u32 %v735, 16
      %v897 = vrot.slane %v895, 5
      %v898 = vsel %vm764, %v893, %v897
      %v899 = vshrl.u32 %v735, 16
      %v901 = vrot.slane %v899, 4
      %v902 = vor.u32 %v901, %v897
      %v903 = vrot.slane %v902, 4
      %v905 = vshll.u32 %v757, 16
      %v907 = vrot.slane %v905, 5
      %v908 = vsel %vm764, %v903, %v907
      %v910 = vshrl.u32 %v736, 16
      %v912 = vrot.slane %v910, 4
      %v913 = vshll.u32 %v736, 16
      %v915 = vrot.slane %v913, 5
      %v916 = vor.u32 %v912, %v915
      %v917 = vrot.slane %v916, 4
      %v919 = vshll.u32 %v737, 16
      %v921 = vrot.slane %v919, 5
      %v922 = vsel %vm764, %v917, %v921
      %v923 = vshrl.u32 %v737, 16
      %v925 = vrot.slane %v923, 4
      %v926 = vor.u32 %v925, %v921
      %v927 = vrot.slane %v926, 4
      %v929 = vshll.u32 %v758, 16
      %v931 = vrot.slane %v929, 5
      %v932 = vsel %vm764, %v927, %v931
      %v934 = vshrl.u32 %v738, 16
      %v936 = vrot.slane %v934, 4
      %v937 = vshll.u32 %v738, 16
      %v939 = vrot.slane %v937, 5
      %v940 = vor.u32 %v936, %v939
      %v941 = vrot.slane %v940, 4
      %v943 = vshll.u32 %v739, 16
      %v945 = vrot.slane %v943, 5
      %v946 = vsel %vm764, %v941, %v945
      %v947 = vshrl.u32 %v739, 16
      %v949 = vrot.slane %v947, 4
      %v950 = vor.u32 %v949, %v945
      %v951 = vrot.slane %v950, 4
      %v953 = vshll.u32 %v759, 16
      %v955 = vrot.slane %v953, 5
      %v956 = vsel %vm764, %v951, %v955
      %v958 = vshrl.u32 %v740, 16
      %v960 = vrot.slane %v958, 4
      %v961 = vshll.u32 %v740, 16
      %v963 = vrot.slane %v961, 5
      %v964 = vor.u32 %v960, %v963
      %v965 = vrot.slane %v964, 4
      %v967 = vshll.u32 %v741, 16
      %v969 = vrot.slane %v967, 5
      %v970 = vsel %vm764, %v965, %v969
      %v971 = vshrl.u32 %v741, 16
      %v973 = vrot.slane %v971, 4
      %v974 = vor.u32 %v973, %v969
      %v975 = vrot.slane %v974, 4
      %v977 = vshll.u32 %v760, 16
      %v979 = vrot.slane %v977, 5
      %v980 = vsel %vm764, %v975, %v979
      %v982 = vshrl.u32 %v742, 16
      %v984 = vrot.slane %v982, 4
      %v985 = vshll.u32 %v742, 16
      %v987 = vrot.slane %v985, 5
      %v988 = vor.u32 %v984, %v987
      %v989 = vrot.slane %v988, 4
      %v991 = vshll.u32 %v743, 16
      %v993 = vrot.slane %v991, 5
      %v994 = vsel %vm764, %v989, %v993
      %v995 = vshrl.u32 %v743, 16
      %v997 = vrot.slane %v995, 4
      %v998 = vor.u32 %v997, %v993
      %v999 = vrot.slane %v998, 4
      %v1001 = vshll.u32 %v761, 16
      %v1003 = vrot.slane %v1001, 5
      %v1004 = vsel %vm764, %v999, %v1003
      %s1005 = scalar_lea.vmem %s1, 32
      %v1006 = vld [vmem:[%s1005] sm:$0xf]
      %v1007 = vld [vmem:[%s1005 + $0x4] sm:$0xf]
      %v1008 = vld [vmem:[%s1005 + $0x8] sm:$0xf]
      %v1009 = vld [vmem:[%s1005 + $0xc] sm:$0xf]
      %v1010 = vld [vmem:[%s1005 + $0x10] sm:$0xf]
      %v1011 = vld [vmem:[%s1005 + $0x14] sm:$0xf]
      %v1012 = vld [vmem:[%s1005 + $0x18] sm:$0xf]
      %v1013 = vld [vmem:[%s1005 + $0x1c] sm:$0xf]
      %v1014 = vunpack.c.l.b16 %v778
      %v1015 = vunpack.c.l.b16 %v788
      %v1016 = vunpack.c.l.b16 %v802
      %v1017 = vunpack.c.l.b16 %v812
      %v1018 = vunpack.c.l.b16 %v826
      %v1019 = vunpack.c.l.b16 %v836
      %v1020 = vunpack.c.l.b16 %v850
      %v1021 = vunpack.c.l.b16 %v860
      %v1022 = vunpack.c.l.b16 %v874
      %v1023 = vunpack.c.l.b16 %v884
      %v1024 = vunpack.c.l.b16 %v898
      %v1025 = vunpack.c.l.b16 %v908
      %v1026 = vunpack.c.l.b16 %v922
      %v1027 = vunpack.c.l.b16 %v932
      %v1028 = vunpack.c.l.b16 %v946
      %v1029 = vunpack.c.l.b16 %v956
      %v1030 = vunpack.c.l.b16 %v970
      %v1031 = vunpack.c.l.b16 %v980
      %v1032 = vunpack.c.l.b16 %v994
      %v1033 = vunpack.c.l.b16 %v1004
      %v1034 = vpack.c.b16 %v1015, %v1014
      %v1035 = vpack.c.b16 %v1017, %v1016
      %v1036 = vpack.c.b16 %v1019, %v1018
      %v1037 = vpack.c.b16 %v1021, %v1020
      %v1038 = vpack.c.b16 %v1023, %v1022
      %v1039 = vpack.c.b16 %v1025, %v1024
      %v1040 = vpack.c.b16 %v1027, %v1026
      %v1041 = vpack.c.b16 %v1029, %v1028
      %v1042 = vpack.c.b16 %v1031, %v1030
      %v1043 = vpack.c.b16 %v1033, %v1032
      %v1052 = vunpack.c.l.b16 %v1006
      %v1053 = vunpack.c.l.b16 %v1007
      %v1054 = vunpack.c.l.b16 %v1008
      %v1055 = vunpack.c.l.b16 %v1009
      %v1056 = vunpack.c.l.b16 %v1010
      %v1057 = vunpack.c.l.b16 %v1011
      %v1058 = vunpack.c.l.b16 %v1012
      %v1059 = vunpack.c.l.b16 %v1013
      %v1060 = vpack.c.b16 %v1053, %v1052
      %v1061 = vpack.c.b16 %v1055, %v1054
      %v1062 = vpack.c.b16 %v1057, %v1056
      %v1063 = vpack.c.b16 %v1059, %v1058
      %vm1068 = vcmask 523264
      %v1070 = vsel %vm1068, %v1034, 0
      %v1073 = vsel %vm1068, %v1035, 0
      %v1076 = vsel %vm1068, %v1036, 0
      %v1079 = vsel %vm1068, %v1037, 0
      %v1082 = vsel %vm1068, %v1038, 0
      %v1085 = vsel %vm1068, %v1039, 0
      %v1088 = vsel %vm1068, %v1040, 0
      %v1091 = vsel %vm1068, %v1041, 0
      %v1094 = vsel %vm1068, %v1042, 0
      %v1097 = vsel %vm1068, %v1043, 0
      %1099 = vmatpush.bf16.msra.mxu0 0
      %1100 = vmatpush.bf16.msra.mxu0 0
      %1101 = vmatpush.bf16.msra.mxu0 0
      %1102 = vmatpush.bf16.msra.mxu0 0
      %1103 = vmatpush.bf16.msra.mxu0 %v1063
      %1104 = vmatpush.bf16.msra.mxu0 %v1062
      %1105 = vmatpush.bf16.msra.mxu0 %v1061
      %1106 = vmatpush.bf16.msra.mxu0 %v1060
      %1107 = vmatmul.bf16.gmra.mxu0 %v1070
      %v1108 = vpop.f32.mrf.mxu0
      %v1109 = vadd.f32 0.0, %v1108
      %v1110 = vpop.f32.mrf.mxu0
      %v1111 = vadd.f32 0.0, %v1110
      %1112 = vmatmul.bf16.gmra.mxu0 %v1073
      %v1113 = vpop.f32.mrf.mxu0
      %v1114 = vadd.f32 0.0, %v1113
      %v1115 = vpop.f32.mrf.mxu0
      %v1116 = vadd.f32 0.0, %v1115
      %1117 = vmatmul.bf16.gmra.mxu0 %v1076
      %v1118 = vpop.f32.mrf.mxu0
      %v1119 = vadd.f32 0.0, %v1118
      %v1120 = vpop.f32.mrf.mxu0
      %v1121 = vadd.f32 0.0, %v1120
      %1122 = vmatmul.bf16.gmra.mxu0 %v1079
      %v1123 = vpop.f32.mrf.mxu0
      %v1124 = vadd.f32 0.0, %v1123
      %v1125 = vpop.f32.mrf.mxu0
      %v1126 = vadd.f32 0.0, %v1125
      %1127 = vmatmul.bf16.gmra.mxu0 %v1082
      %v1128 = vpop.f32.mrf.mxu0
      %v1129 = vadd.f32 0.0, %v1128
      %v1130 = vpop.f32.mrf.mxu0
      %v1131 = vadd.f32 0.0, %v1130
      %1132 = vmatmul.bf16.gmra.mxu0 %v1085
      %v1133 = vpop.f32.mrf.mxu0
      %v1134 = vadd.f32 0.0, %v1133
      %v1135 = vpop.f32.mrf.mxu0
      %v1136 = vadd.f32 0.0, %v1135
      %1137 = vmatmul.bf16.gmra.mxu0 %v1088
      %v1138 = vpop.f32.mrf.mxu0
      %v1139 = vadd.f32 0.0, %v1138
      %v1140 = vpop.f32.mrf.mxu0
      %v1141 = vadd.f32 0.0, %v1140
      %1142 = vmatmul.bf16.gmra.mxu0 %v1091
      %v1143 = vpop.f32.mrf.mxu0
      %v1144 = vadd.f32 0.0, %v1143
      %v1145 = vpop.f32.mrf.mxu0
      %v1146 = vadd.f32 0.0, %v1145
      %1147 = vmatmul.bf16.gmra.mxu0 %v1094
      %v1148 = vpop.f32.mrf.mxu0
      %v1149 = vadd.f32 0.0, %v1148
      %v1150 = vpop.f32.mrf.mxu0
      %v1151 = vadd.f32 0.0, %v1150
      %1152 = vmatmul.bf16.gmra.mxu0 %v1097
      %v1153 = vpop.f32.mrf.mxu0
      %v1154 = vadd.f32 0.0, %v1153
      %v1155 = vpop.f32.mrf.mxu0
      %v1156 = vadd.f32 0.0, %v1155
      %1157 = vdwg.mxu0
      %v1178 = vunpack.c.l.b16 %v724
      %v1179 = vunpack.c.l.b16 %v725
      %v1180 = vunpack.c.l.b16 %v726
      %v1181 = vunpack.c.l.b16 %v727
      %v1182 = vunpack.c.l.b16 %v728
      %v1183 = vunpack.c.l.b16 %v729
      %v1184 = vunpack.c.l.b16 %v730
      %v1185 = vunpack.c.l.b16 %v731
      %v1186 = vunpack.c.l.b16 %v732
      %v1187 = vunpack.c.l.b16 %v733
      %v1188 = vunpack.c.l.b16 %v734
      %v1189 = vunpack.c.l.b16 %v735
      %v1190 = vunpack.c.l.b16 %v736
      %v1191 = vunpack.c.l.b16 %v737
      %v1192 = vunpack.c.l.b16 %v738
      %v1193 = vunpack.c.l.b16 %v739
      %v1194 = vunpack.c.l.b16 %v740
      %v1195 = vunpack.c.l.b16 %v741
      %v1196 = vunpack.c.l.b16 %v742
      %v1197 = vunpack.c.l.b16 %v743
      %v1198 = vpack.c.b16 %v1179, %v1178
      %v1199 = vpack.c.b16 %v1181, %v1180
      %v1200 = vpack.c.b16 %v1183, %v1182
      %v1201 = vpack.c.b16 %v1185, %v1184
      %v1202 = vpack.c.b16 %v1187, %v1186
      %v1203 = vpack.c.b16 %v1189, %v1188
      %v1204 = vpack.c.b16 %v1191, %v1190
      %v1205 = vpack.c.b16 %v1193, %v1192
      %v1206 = vpack.c.b16 %v1195, %v1194
      %v1207 = vpack.c.b16 %v1197, %v1196
      %v1216 = vunpack.c.l.b16 %v744
      %v1217 = vunpack.c.l.b16 %v745
      %v1218 = vunpack.c.l.b16 %v746
      %v1219 = vunpack.c.l.b16 %v747
      %v1220 = vunpack.c.l.b16 %v748
      %v1221 = vunpack.c.l.b16 %v749
      %v1222 = vunpack.c.l.b16 %v750
      %v1223 = vunpack.c.l.b16 %v751
      %v1224 = vpack.c.b16 %v1217, %v1216
      %v1225 = vpack.c.b16 %v1219, %v1218
      %v1226 = vpack.c.b16 %v1221, %v1220
      %v1227 = vpack.c.b16 %v1223, %v1222
      %v1233 = vsel %vm1068, %v1198, 0
      %v1236 = vsel %vm1068, %v1199, 0
      %v1239 = vsel %vm1068, %v1200, 0
      %v1242 = vsel %vm1068, %v1201, 0
      %v1245 = vsel %vm1068, %v1202, 0
      %v1248 = vsel %vm1068, %v1203, 0
      %v1251 = vsel %vm1068, %v1204, 0
      %v1254 = vsel %vm1068, %v1205, 0
      %v1257 = vsel %vm1068, %v1206, 0
      %v1260 = vsel %vm1068, %v1207, 0
      %1262 = vmatpush.bf16.msra.mxu0 0
      %1263 = vmatpush.bf16.msra.mxu0 0
      %1264 = vmatpush.bf16.msra.mxu0 0
      %1265 = vmatpush.bf16.msra.mxu0 0
      %1266 = vmatpush.bf16.msra.mxu0 %v1227
      %1267 = vmatpush.bf16.msra.mxu0 %v1226
      %1268 = vmatpush.bf16.msra.mxu0 %v1225
      %1269 = vmatpush.bf16.msra.mxu0 %v1224
      %1270 = vmatmul.bf16.gmra.mxu0 %v1233
      %v1271 = vpop.f32.mrf.mxu0
      %v1272 = vadd.f32 %v1109, %v1271
      %v1273 = vpop.f32.mrf.mxu0
      %v1274 = vadd.f32 %v1111, %v1273
      %1275 = vmatmul.bf16.gmra.mxu0 %v1236
      %v1276 = vpop.f32.mrf.mxu0
      %v1277 = vadd.f32 %v1114, %v1276
      %v1278 = vpop.f32.mrf.mxu0
      %v1279 = vadd.f32 %v1116, %v1278
      %1280 = vmatmul.bf16.gmra.mxu0 %v1239
      %v1281 = vpop.f32.mrf.mxu0
      %v1282 = vadd.f32 %v1119, %v1281
      %v1283 = vpop.f32.mrf.mxu0
      %v1284 = vadd.f32 %v1121, %v1283
      %1285 = vmatmul.bf16.gmra.mxu0 %v1242
      %v1286 = vpop.f32.mrf.mxu0
      %v1287 = vadd.f32 %v1124, %v1286
      %v1288 = vpop.f32.mrf.mxu0
      %v1289 = vadd.f32 %v1126, %v1288
      %1290 = vmatmul.bf16.gmra.mxu0 %v1245
      %v1291 = vpop.f32.mrf.mxu0
      %v1292 = vadd.f32 %v1129, %v1291
      %v1293 = vpop.f32.mrf.mxu0
      %v1294 = vadd.f32 %v1131, %v1293
      %1295 = vmatmul.bf16.gmra.mxu0 %v1248
      %v1296 = vpop.f32.mrf.mxu0
      %v1297 = vadd.f32 %v1134, %v1296
      %v1298 = vpop.f32.mrf.mxu0
      %v1299 = vadd.f32 %v1136, %v1298
      %1300 = vmatmul.bf16.gmra.mxu0 %v1251
      %v1301 = vpop.f32.mrf.mxu0
      %v1302 = vadd.f32 %v1139, %v1301
      %v1303 = vpop.f32.mrf.mxu0
      %v1304 = vadd.f32 %v1141, %v1303
      %1305 = vmatmul.bf16.gmra.mxu0 %v1254
      %v1306 = vpop.f32.mrf.mxu0
      %v1307 = vadd.f32 %v1144, %v1306
      %v1308 = vpop.f32.mrf.mxu0
      %v1309 = vadd.f32 %v1146, %v1308
      %1310 = vmatmul.bf16.gmra.mxu0 %v1257
      %v1311 = vpop.f32.mrf.mxu0
      %v1312 = vadd.f32 %v1149, %v1311
      %v1313 = vpop.f32.mrf.mxu0
      %v1314 = vadd.f32 %v1151, %v1313
      %1315 = vmatmul.bf16.gmra.mxu0 %v1260
      %v1316 = vpop.f32.mrf.mxu0
      %v1317 = vadd.f32 %v1154, %v1316
      %v1318 = vpop.f32.mrf.mxu0
      %v1319 = vadd.f32 %v1156, %v1318
      %1320 = vdwg.mxu0
      %v1321 = vld [vmem:[#allocation2] sm:$0xe]
      %v1322 = vld [vmem:[#allocation2 + $0xc] sm:$0xe]
      %v1323 = vld [vmem:[#allocation2 + $0x18] sm:$0xe]
      %v1324 = vld [vmem:[#allocation2 + $0x24] sm:$0xe]
      %v1325 = vld [vmem:[#allocation2 + $0x30] sm:$0xe]
      %v1326 = vld [vmem:[#allocation2 + $0x3c] sm:$0xe]
      %v1327 = vld [vmem:[#allocation2 + $0x48] sm:$0xe]
      %v1328 = vld [vmem:[#allocation2 + $0x54] sm:$0xe]
      %v1329 = vld [vmem:[#allocation2 + $0x60] sm:$0xe]
      %v1330 = vld [vmem:[#allocation2 + $0x6c] sm:$0xe]
      %vm1351 = vcmask 1042432
      %vm1352 = vcmask 1046532
      %vm1353 = vmor %vm1351, %vm1352
      %v1354 = vrot.slane %v1321, 5
      %v1355 = vrot.slane %v1354, 4
      %v1356 = vrot.slane %v725, 5
      %v1357 = vsel %vm1353, %v1355, %v1356
      %v1358 = vrot.slane %v1356, 4
      %v1359 = vrot.slane %v752, 5
      %v1360 = vsel %vm1353, %v1358, %v1359
      %v1361 = vrot.slane %v1322, 5
      %v1362 = vrot.slane %v1361, 4
      %v1363 = vrot.slane %v727, 5
      %v1364 = vsel %vm1353, %v1362, %v1363
      %v1365 = vrot.slane %v1363, 4
      %v1366 = vrot.slane %v753, 5
      %v1367 = vsel %vm1353, %v1365, %v1366
      %v1368 = vrot.slane %v1323, 5
      %v1369 = vrot.slane %v1368, 4
      %v1370 = vrot.slane %v729, 5
      %v1371 = vsel %vm1353, %v1369, %v1370
      %v1372 = vrot.slane %v1370, 4
      %v1373 = vrot.slane %v754, 5
      %v1374 = vsel %vm1353, %v1372, %v1373
      %v1375 = vrot.slane %v1324, 5
      %v1376 = vrot.slane %v1375, 4
      %v1377 = vrot.slane %v731, 5
      %v1378 = vsel %vm1353, %v1376, %v1377
      %v1379 = vrot.slane %v1377, 4
      %v1380 = vrot.slane %v755, 5
      %v1381 = vsel %vm1353, %v1379, %v1380
      %v1382 = vrot.slane %v1325, 5
      %v1383 = vrot.slane %v1382, 4
      %v1384 = vrot.slane %v733, 5
      %v1385 = vsel %vm1353, %v1383, %v1384
      %v1386 = vrot.slane %v1384, 4
      %v1387 = vrot.slane %v756, 5
      %v1388 = vsel %vm1353, %v1386, %v1387
      %v1389 = vrot.slane %v1326, 5
      %v1390 = vrot.slane %v1389, 4
      %v1391 = vrot.slane %v735, 5
      %v1392 = vsel %vm1353, %v1390, %v1391
      %v1393 = vrot.slane %v1391, 4
      %v1394 = vrot.slane %v757, 5
      %v1395 = vsel %vm1353, %v1393, %v1394
      %v1396 = vrot.slane %v1327, 5
      %v1397 = vrot.slane %v1396, 4
      %v1398 = vrot.slane %v737, 5
      %v1399 = vsel %vm1353, %v1397, %v1398
      %v1400 = vrot.slane %v1398, 4
      %v1401 = vrot.slane %v758, 5
      %v1402 = vsel %vm1353, %v1400, %v1401
      %v1403 = vrot.slane %v1328, 5
      %v1404 = vrot.slane %v1403, 4
      %v1405 = vrot.slane %v739, 5
      %v1406 = vsel %vm1353, %v1404, %v1405
      %v1407 = vrot.slane %v1405, 4
      %v1408 = vrot.slane %v759, 5
      %v1409 = vsel %vm1353, %v1407, %v1408
      %v1410 = vrot.slane %v1329, 5
      %v1411 = vrot.slane %v1410, 4
      %v1412 = vrot.slane %v741, 5
      %v1413 = vsel %vm1353, %v1411, %v1412
      %v1414 = vrot.slane %v1412, 4
      %v1415 = vrot.slane %v760, 5
      %v1416 = vsel %vm1353, %v1414, %v1415
      %v1417 = vrot.slane %v1330, 5
      %v1418 = vrot.slane %v1417, 4
      %v1419 = vrot.slane %v743, 5
      %v1420 = vsel %vm1353, %v1418, %v1419
      %v1421 = vrot.slane %v1419, 4
      %v1422 = vrot.slane %v761, 5
      %v1423 = vsel %vm1353, %v1421, %v1422
      %s1424 = scalar_lea.vmem %s1, 64
      %v1425 = vld [vmem:[%s1424] sm:$0xf]
      %v1426 = vld [vmem:[%s1424 + $0x4] sm:$0xf]
      %v1427 = vld [vmem:[%s1424 + $0x8] sm:$0xf]
      %v1428 = vld [vmem:[%s1424 + $0xc] sm:$0xf]
      %v1429 = vld [vmem:[%s1424 + $0x10] sm:$0xf]
      %v1430 = vld [vmem:[%s1424 + $0x14] sm:$0xf]
      %v1431 = vld [vmem:[%s1424 + $0x18] sm:$0xf]
      %v1432 = vld [vmem:[%s1424 + $0x1c] sm:$0xf]
      %v1433 = vunpack.c.l.b16 %v1357
      %v1434 = vunpack.c.l.b16 %v1360
      %v1435 = vunpack.c.l.b16 %v1364
      %v1436 = vunpack.c.l.b16 %v1367
      %v1437 = vunpack.c.l.b16 %v1371
      %v1438 = vunpack.c.l.b16 %v1374
      %v1439 = vunpack.c.l.b16 %v1378
      %v1440 = vunpack.c.l.b16 %v1381
      %v1441 = vunpack.c.l.b16 %v1385
      %v1442 = vunpack.c.l.b16 %v1388
      %v1443 = vunpack.c.l.b16 %v1392
      %v1444 = vunpack.c.l.b16 %v1395
      %v1445 = vunpack.c.l.b16 %v1399
      %v1446 = vunpack.c.l.b16 %v1402
      %v1447 = vunpack.c.l.b16 %v1406
      %v1448 = vunpack.c.l.b16 %v1409
      %v1449 = vunpack.c.l.b16 %v1413
      %v1450 = vunpack.c.l.b16 %v1416
      %v1451 = vunpack.c.l.b16 %v1420
      %v1452 = vunpack.c.l.b16 %v1423
      %v1453 = vpack.c.b16 %v1434, %v1433
      %v1454 = vpack.c.b16 %v1436, %v1435
      %v1455 = vpack.c.b16 %v1438, %v1437
      %v1456 = vpack.c.b16 %v1440, %v1439
      %v1457 = vpack.c.b16 %v1442, %v1441
      %v1458 = vpack.c.b16 %v1444, %v1443
      %v1459 = vpack.c.b16 %v1446, %v1445
      %v1460 = vpack.c.b16 %v1448, %v1447
      %v1461 = vpack.c.b16 %v1450, %v1449
      %v1462 = vpack.c.b16 %v1452, %v1451
      %v1471 = vunpack.c.l.b16 %v1425
      %v1472 = vunpack.c.l.b16 %v1426
      %v1473 = vunpack.c.l.b16 %v1427
      %v1474 = vunpack.c.l.b16 %v1428
      %v1475 = vunpack.c.l.b16 %v1429
      %v1476 = vunpack.c.l.b16 %v1430
      %v1477 = vunpack.c.l.b16 %v1431
      %v1478 = vunpack.c.l.b16 %v1432
      %v1479 = vpack.c.b16 %v1472, %v1471
      %v1480 = vpack.c.b16 %v1474, %v1473
      %v1481 = vpack.c.b16 %v1476, %v1475
      %v1482 = vpack.c.b16 %v1478, %v1477
      %v1488 = vsel %vm1068, %v1453, 0
      %v1491 = vsel %vm1068, %v1454, 0
      %v1494 = vsel %vm1068, %v1455, 0
      %v1497 = vsel %vm1068, %v1456, 0
      %v1500 = vsel %vm1068, %v1457, 0
      %v1503 = vsel %vm1068, %v1458, 0
      %v1506 = vsel %vm1068, %v1459, 0
      %v1509 = vsel %vm1068, %v1460, 0
      %v1512 = vsel %vm1068, %v1461, 0
      %v1515 = vsel %vm1068, %v1462, 0
      %1517 = vmatpush.bf16.msra.mxu0 0
      %1518 = vmatpush.bf16.msra.mxu0 0
      %1519 = vmatpush.bf16.msra.mxu0 0
      %1520 = vmatpush.bf16.msra.mxu0 0
      %1521 = vmatpush.bf16.msra.mxu0 %v1482
      %1522 = vmatpush.bf16.msra.mxu0 %v1481
      %1523 = vmatpush.bf16.msra.mxu0 %v1480
      %1524 = vmatpush.bf16.msra.mxu0 %v1479
      %1525 = vmatmul.bf16.gmra.mxu0 %v1488
      %v1526 = vpop.f32.mrf.mxu0
      %v1527 = vadd.f32 0.0, %v1526
      %v1528 = vpop.f32.mrf.mxu0
      %v1529 = vadd.f32 0.0, %v1528
      %1530 = vmatmul.bf16.gmra.mxu0 %v1491
      %v1531 = vpop.f32.mrf.mxu0
      %v1532 = vadd.f32 0.0, %v1531
      %v1533 = vpop.f32.mrf.mxu0
      %v1534 = vadd.f32 0.0, %v1533
      %1535 = vmatmul.bf16.gmra.mxu0 %v1494
      %v1536 = vpop.f32.mrf.mxu0
      %v1537 = vadd.f32 0.0, %v1536
      %v1538 = vpop.f32.mrf.mxu0
      %v1539 = vadd.f32 0.0, %v1538
      %1540 = vmatmul.bf16.gmra.mxu0 %v1497
      %v1541 = vpop.f32.mrf.mxu0
      %v1542 = vadd.f32 0.0, %v1541
      %v1543 = vpop.f32.mrf.mxu0
      %v1544 = vadd.f32 0.0, %v1543
      %1545 = vmatmul.bf16.gmra.mxu0 %v1500
      %v1546 = vpop.f32.mrf.mxu0
      %v1547 = vadd.f32 0.0, %v1546
      %v1548 = vpop.f32.mrf.mxu0
      %v1549 = vadd.f32 0.0, %v1548
      %1550 = vmatmul.bf16.gmra.mxu0 %v1503
      %v1551 = vpop.f32.mrf.mxu0
      %v1552 = vadd.f32 0.0, %v1551
      %v1553 = vpop.f32.mrf.mxu0
      %v1554 = vadd.f32 0.0, %v1553
      %1555 = vmatmul.bf16.gmra.mxu0 %v1506
      %v1556 = vpop.f32.mrf.mxu0
      %v1557 = vadd.f32 0.0, %v1556
      %v1558 = vpop.f32.mrf.mxu0
      %v1559 = vadd.f32 0.0, %v1558
      %1560 = vmatmul.bf16.gmra.mxu0 %v1509
      %v1561 = vpop.f32.mrf.mxu0
      %v1562 = vadd.f32 0.0, %v1561
      %v1563 = vpop.f32.mrf.mxu0
      %v1564 = vadd.f32 0.0, %v1563
      %1565 = vmatmul.bf16.gmra.mxu0 %v1512
      %v1566 = vpop.f32.mrf.mxu0
      %v1567 = vadd.f32 0.0, %v1566
      %v1568 = vpop.f32.mrf.mxu0
      %v1569 = vadd.f32 0.0, %v1568
      %1570 = vmatmul.bf16.gmra.mxu0 %v1515
      %v1571 = vpop.f32.mrf.mxu0
      %v1572 = vadd.f32 0.0, %v1571
      %v1573 = vpop.f32.mrf.mxu0
      %v1574 = vadd.f32 0.0, %v1573
      %1575 = vdwg.mxu0
      %v1576 = vadd.f32 %v1272, %v1527
      %v1577 = vadd.f32 %v1274, %v1529
      %v1578 = vadd.f32 %v1277, %v1532
      %v1579 = vadd.f32 %v1279, %v1534
      %v1580 = vadd.f32 %v1282, %v1537
      %v1581 = vadd.f32 %v1284, %v1539
      %v1582 = vadd.f32 %v1287, %v1542
      %v1583 = vadd.f32 %v1289, %v1544
      %v1584 = vadd.f32 %v1292, %v1547
      %v1585 = vadd.f32 %v1294, %v1549
      %v1586 = vadd.f32 %v1297, %v1552
      %v1587 = vadd.f32 %v1299, %v1554
      %v1588 = vadd.f32 %v1302, %v1557
      %v1589 = vadd.f32 %v1304, %v1559
      %v1590 = vadd.f32 %v1307, %v1562
      %v1591 = vadd.f32 %v1309, %v1564
      %v1592 = vadd.f32 %v1312, %v1567
      %v1593 = vadd.f32 %v1314, %v1569
      %v1594 = vadd.f32 %v1317, %v1572
      %v1595 = vadd.f32 %v1319, %v1574
      %s1596 = scalar_lea.vmem [#allocation2], 12
      %v1597 = vld [vmem:[%s1596] sm:$0xf]
      %v1598 = vld [vmem:[%s1596 + $0x4] sm:$0xf]
      %v1599 = vld [vmem:[%s1596 + $0xc] sm:$0xf]
      %v1600 = vld [vmem:[%s1596 + $0x10] sm:$0xf]
      %v1601 = vld [vmem:[%s1596 + $0x18] sm:$0xf]
      %v1602 = vld [vmem:[%s1596 + $0x1c] sm:$0xf]
      %v1603 = vld [vmem:[%s1596 + $0x24] sm:$0xf]
      %v1604 = vld [vmem:[%s1596 + $0x28] sm:$0xf]
      %v1605 = vld [vmem:[%s1596 + $0x30] sm:$0xf]
      %v1606 = vld [vmem:[%s1596 + $0x34] sm:$0xf]
      %v1607 = vld [vmem:[%s1596 + $0x3c] sm:$0xf]
      %v1608 = vld [vmem:[%s1596 + $0x40] sm:$0xf]
      %v1609 = vld [vmem:[%s1596 + $0x48] sm:$0xf]
      %v1610 = vld [vmem:[%s1596 + $0x4c] sm:$0xf]
      %v1611 = vld [vmem:[%s1596 + $0x54] sm:$0xf]
      %v1612 = vld [vmem:[%s1596 + $0x58] sm:$0xf]
      %v1613 = vld [vmem:[%s1596 + $0x60] sm:$0xf]
      %v1614 = vld [vmem:[%s1596 + $0x64] sm:$0xf]
      %v1615 = vld [vmem:[%s1596 + $0x6c] sm:$0xf]
      %v1616 = vld [vmem:[%s1596 + $0x70] sm:$0xf]
      %s1617 = scalar_lea.vmem %s1, 96
      %v1618 = vld [vmem:[%s1617] sm:$0xf]
      %v1619 = vld [vmem:[%s1617 + $0x4] sm:$0xf]
      %v1620 = vld [vmem:[%s1617 + $0x8] sm:$0xf]
      %v1621 = vld [vmem:[%s1617 + $0xc] sm:$0xf]
      %v1622 = vld [vmem:[%s1617 + $0x10] sm:$0xf]
      %v1623 = vld [vmem:[%s1617 + $0x14] sm:$0xf]
      %v1624 = vld [vmem:[%s1617 + $0x18] sm:$0xf]
      %v1625 = vld [vmem:[%s1617 + $0x1c] sm:$0xf]
      %v1646 = vunpack.c.l.b16 %v1597
      %v1647 = vunpack.c.l.b16 %v1598
      %v1648 = vunpack.c.l.b16 %v1599
      %v1649 = vunpack.c.l.b16 %v1600
      %v1650 = vunpack.c.l.b16 %v1601
      %v1651 = vunpack.c.l.b16 %v1602
      %v1652 = vunpack.c.l.b16 %v1603
      %v1653 = vunpack.c.l.b16 %v1604
      %v1654 = vunpack.c.l.b16 %v1605
      %v1655 = vunpack.c.l.b16 %v1606
      %v1656 = vunpack.c.l.b16 %v1607
      %v1657 = vunpack.c.l.b16 %v1608
      %v1658 = vunpack.c.l.b16 %v1609
      %v1659 = vunpack.c.l.b16 %v1610
      %v1660 = vunpack.c.l.b16 %v1611
      %v1661 = vunpack.c.l.b16 %v1612
      %v1662 = vunpack.c.l.b16 %v1613
      %v1663 = vunpack.c.l.b16 %v1614
      %v1664 = vunpack.c.l.b16 %v1615
      %v1665 = vunpack.c.l.b16 %v1616
      %v1666 = vpack.c.b16 %v1647, %v1646
      %v1667 = vpack.c.b16 %v1649, %v1648
      %v1668 = vpack.c.b16 %v1651, %v1650
      %v1669 = vpack.c.b16 %v1653, %v1652
      %v1670 = vpack.c.b16 %v1655, %v1654
      %v1671 = vpack.c.b16 %v1657, %v1656
      %v1672 = vpack.c.b16 %v1659, %v1658
      %v1673 = vpack.c.b16 %v1661, %v1660
      %v1674 = vpack.c.b16 %v1663, %v1662
      %v1675 = vpack.c.b16 %v1665, %v1664
      %v1684 = vunpack.c.l.b16 %v1618
      %v1685 = vunpack.c.l.b16 %v1619
      %v1686 = vunpack.c.l.b16 %v1620
      %v1687 = vunpack.c.l.b16 %v1621
      %v1688 = vunpack.c.l.b16 %v1622
      %v1689 = vunpack.c.l.b16 %v1623
      %v1690 = vunpack.c.l.b16 %v1624
      %v1691 = vunpack.c.l.b16 %v1625
      %v1692 = vpack.c.b16 %v1685, %v1684
      %v1693 = vpack.c.b16 %v1687, %v1686
      %v1694 = vpack.c.b16 %v1689, %v1688
      %v1695 = vpack.c.b16 %v1691, %v1690
      %v1701 = vsel %vm1068, %v1666, 0
      %v1704 = vsel %vm1068, %v1667, 0
      %v1707 = vsel %vm1068, %v1668, 0
      %v1710 = vsel %vm1068, %v1669, 0
      %v1713 = vsel %vm1068, %v1670, 0
      %v1716 = vsel %vm1068, %v1671, 0
      %v1719 = vsel %vm1068, %v1672, 0
      %v1722 = vsel %vm1068, %v1673, 0
      %v1725 = vsel %vm1068, %v1674, 0
      %v1728 = vsel %vm1068, %v1675, 0
      %1730 = vmatpush.bf16.msra.mxu0 0
      %1731 = vmatpush.bf16.msra.mxu0 0
      %1732 = vmatpush.bf16.msra.mxu0 0
      %1733 = vmatpush.bf16.msra.mxu0 0
      %1734 = vmatpush.bf16.msra.mxu0 %v1695
      %1735 = vmatpush.bf16.msra.mxu0 %v1694
      %1736 = vmatpush.bf16.msra.mxu0 %v1693
      %1737 = vmatpush.bf16.msra.mxu0 %v1692
      %1738 = vmatmul.bf16.gmra.mxu0 %v1701
      %v1739 = vpop.f32.mrf.mxu0
      %v1740 = vadd.f32 0.0, %v1739
      %v1741 = vpop.f32.mrf.mxu0
      %v1742 = vadd.f32 0.0, %v1741
      %1743 = vmatmul.bf16.gmra.mxu0 %v1704
      %v1744 = vpop.f32.mrf.mxu0
      %v1745 = vadd.f32 0.0, %v1744
      %v1746 = vpop.f32.mrf.mxu0
      %v1747 = vadd.f32 0.0, %v1746
      %1748 = vmatmul.bf16.gmra.mxu0 %v1707
      %v1749 = vpop.f32.mrf.mxu0
      %v1750 = vadd.f32 0.0, %v1749
      %v1751 = vpop.f32.mrf.mxu0
      %v1752 = vadd.f32 0.0, %v1751
      %1753 = vmatmul.bf16.gmra.mxu0 %v1710
      %v1754 = vpop.f32.mrf.mxu0
      %v1755 = vadd.f32 0.0, %v1754
      %v1756 = vpop.f32.mrf.mxu0
      %v1757 = vadd.f32 0.0, %v1756
      %1758 = vmatmul.bf16.gmra.mxu0 %v1713
      %v1759 = vpop.f32.mrf.mxu0
      %v1760 = vadd.f32 0.0, %v1759
      %v1761 = vpop.f32.mrf.mxu0
      %v1762 = vadd.f32 0.0, %v1761
      %1763 = vmatmul.bf16.gmra.mxu0 %v1716
      %v1764 = vpop.f32.mrf.mxu0
      %v1765 = vadd.f32 0.0, %v1764
      %v1766 = vpop.f32.mrf.mxu0
      %v1767 = vadd.f32 0.0, %v1766
      %1768 = vmatmul.bf16.gmra.mxu0 %v1719
      %v1769 = vpop.f32.mrf.mxu0
      %v1770 = vadd.f32 0.0, %v1769
      %v1771 = vpop.f32.mrf.mxu0
      %v1772 = vadd.f32 0.0, %v1771
      %1773 = vmatmul.bf16.gmra.mxu0 %v1722
      %v1774 = vpop.f32.mrf.mxu0
      %v1775 = vadd.f32 0.0, %v1774
      %v1776 = vpop.f32.mrf.mxu0
      %v1777 = vadd.f32 0.0, %v1776
      %1778 = vmatmul.bf16.gmra.mxu0 %v1725
      %v1779 = vpop.f32.mrf.mxu0
      %v1780 = vadd.f32 0.0, %v1779
      %v1781 = vpop.f32.mrf.mxu0
      %v1782 = vadd.f32 0.0, %v1781
      %1783 = vmatmul.bf16.gmra.mxu0 %v1728
      %v1784 = vpop.f32.mrf.mxu0
      %v1785 = vadd.f32 0.0, %v1784
      %v1786 = vpop.f32.mrf.mxu0
      %v1787 = vadd.f32 0.0, %v1786
      %1788 = vdwg.mxu0
      %v1789 = vadd.f32 %v1576, %v1740
      %v1790 = vadd.f32 %v1577, %v1742
      %v1791 = vadd.f32 %v1578, %v1745
      %v1792 = vadd.f32 %v1579, %v1747
      %v1793 = vadd.f32 %v1580, %v1750
      %v1794 = vadd.f32 %v1581, %v1752
      %v1795 = vadd.f32 %v1582, %v1755
      %v1796 = vadd.f32 %v1583, %v1757
      %v1797 = vadd.f32 %v1584, %v1760
      %v1798 = vadd.f32 %v1585, %v1762
      %v1799 = vadd.f32 %v1586, %v1765
      %v1800 = vadd.f32 %v1587, %v1767
      %v1801 = vadd.f32 %v1588, %v1770
      %v1802 = vadd.f32 %v1589, %v1772
      %v1803 = vadd.f32 %v1590, %v1775
      %v1804 = vadd.f32 %v1591, %v1777
      %v1805 = vadd.f32 %v1592, %v1780
      %v1806 = vadd.f32 %v1593, %v1782
      %v1807 = vadd.f32 %v1594, %v1785
      %v1808 = vadd.f32 %v1595, %v1787
      %v1809 = vld [vmem:[%s1596] sm:$0xf]
      %v1810 = vld [vmem:[%s1596 + $0x4] sm:$0xf]
      %v1811 = vld [vmem:[%s1596 + $0x8] sm:$0x1]
      %v1812 = vld [vmem:[%s1596 + $0xc] sm:$0xf]
      %v1813 = vld [vmem:[%s1596 + $0x10] sm:$0xf]
      %v1814 = vld [vmem:[%s1596 + $0x14] sm:$0x1]
      %v1815 = vld [vmem:[%s1596 + $0x18] sm:$0xf]
      %v1816 = vld [vmem:[%s1596 + $0x1c] sm:$0xf]
      %v1817 = vld [vmem:[%s1596 + $0x20] sm:$0x1]
      %v1818 = vld [vmem:[%s1596 + $0x24] sm:$0xf]
      %v1819 = vld [vmem:[%s1596 + $0x28] sm:$0xf]
      %v1820 = vld [vmem:[%s1596 + $0x2c] sm:$0x1]
      %v1821 = vld [vmem:[%s1596 + $0x30] sm:$0xf]
      %v1822 = vld [vmem:[%s1596 + $0x34] sm:$0xf]
      %v1823 = vld [vmem:[%s1596 + $0x38] sm:$0x1]
      %v1824 = vld [vmem:[%s1596 + $0x3c] sm:$0xf]
      %v1825 = vld [vmem:[%s1596 + $0x40] sm:$0xf]
      %v1826 = vld [vmem:[%s1596 + $0x44] sm:$0x1]
      %v1827 = vld [vmem:[%s1596 + $0x48] sm:$0xf]
      %v1828 = vld [vmem:[%s1596 + $0x4c] sm:$0xf]
      %v1829 = vld [vmem:[%s1596 + $0x50] sm:$0x1]
      %v1830 = vld [vmem:[%s1596 + $0x54] sm:$0xf]
      %v1831 = vld [vmem:[%s1596 + $0x58] sm:$0xf]
      %v1832 = vld [vmem:[%s1596 + $0x5c] sm:$0x1]
      %v1833 = vld [vmem:[%s1596 + $0x60] sm:$0xf]
      %v1834 = vld [vmem:[%s1596 + $0x64] sm:$0xf]
      %v1835 = vld [vmem:[%s1596 + $0x68] sm:$0x1]
      %v1836 = vld [vmem:[%s1596 + $0x6c] sm:$0xf]
      %v1837 = vld [vmem:[%s1596 + $0x70] sm:$0xf]
      %v1838 = vld [vmem:[%s1596 + $0x74] sm:$0x1]
      %v1840 = vshrl.u32 %v1809, 16
      %v1842 = vrot.slane %v1840, 4
      %v1843 = vshll.u32 %v1809, 16
      %v1845 = vrot.slane %v1843, 5
      %v1846 = vor.u32 %v1842, %v1845
      %v1847 = vrot.slane %v1846, 4
      %v1849 = vshll.u32 %v1810, 16
      %v1851 = vrot.slane %v1849, 5
      %v1852 = vsel %vm764, %v1847, %v1851
      %v1853 = vshrl.u32 %v1810, 16
      %v1855 = vrot.slane %v1853, 4
      %v1856 = vor.u32 %v1855, %v1851
      %v1857 = vrot.slane %v1856, 4
      %v1859 = vshll.u32 %v1811, 16
      %v1861 = vrot.slane %v1859, 5
      %v1862 = vsel %vm764, %v1857, %v1861
      %v1864 = vshrl.u32 %v1812, 16
      %v1866 = vrot.slane %v1864, 4
      %v1867 = vshll.u32 %v1812, 16
      %v1869 = vrot.slane %v1867, 5
      %v1870 = vor.u32 %v1866, %v1869
      %v1871 = vrot.slane %v1870, 4
      %v1873 = vshll.u32 %v1813, 16
      %v1875 = vrot.slane %v1873, 5
      %v1876 = vsel %vm764, %v1871, %v1875
      %v1877 = vshrl.u32 %v1813, 16
      %v1879 = vrot.slane %v1877, 4
      %v1880 = vor.u32 %v1879, %v1875
      %v1881 = vrot.slane %v1880, 4
      %v1883 = vshll.u32 %v1814, 16
      %v1885 = vrot.slane %v1883, 5
      %v1886 = vsel %vm764, %v1881, %v1885
      %v1888 = vshrl.u32 %v1815, 16
      %v1890 = vrot.slane %v1888, 4
      %v1891 = vshll.u32 %v1815, 16
      %v1893 = vrot.slane %v1891, 5
      %v1894 = vor.u32 %v1890, %v1893
      %v1895 = vrot.slane %v1894, 4
      %v1897 = vshll.u32 %v1816, 16
      %v1899 = vrot.slane %v1897, 5
      %v1900 = vsel %vm764, %v1895, %v1899
      %v1901 = vshrl.u32 %v1816, 16
      %v1903 = vrot.slane %v1901, 4
      %v1904 = vor.u32 %v1903, %v1899
      %v1905 = vrot.slane %v1904, 4
      %v1907 = vshll.u32 %v1817, 16
      %v1909 = vrot.slane %v1907, 5
      %v1910 = vsel %vm764, %v1905, %v1909
      %v1912 = vshrl.u32 %v1818, 16
      %v1914 = vrot.slane %v1912, 4
      %v1915 = vshll.u32 %v1818, 16
      %v1917 = vrot.slane %v1915, 5
      %v1918 = vor.u32 %v1914, %v1917
      %v1919 = vrot.slane %v1918, 4
      %v1921 = vshll.u32 %v1819, 16
      %v1923 = vrot.slane %v1921, 5
      %v1924 = vsel %vm764, %v1919, %v1923
      %v1925 = vshrl.u32 %v1819, 16
      %v1927 = vrot.slane %v1925, 4
      %v1928 = vor.u32 %v1927, %v1923
      %v1929 = vrot.slane %v1928, 4
      %v1931 = vshll.u32 %v1820, 16
      %v1933 = vrot.slane %v1931, 5
      %v1934 = vsel %vm764, %v1929, %v1933
      %v1936 = vshrl.u32 %v1821, 16
      %v1938 = vrot.slane %v1936, 4
      %v1939 = vshll.u32 %v1821, 16
      %v1941 = vrot.slane %v1939, 5
      %v1942 = vor.u32 %v1938, %v1941
      %v1943 = vrot.slane %v1942, 4
      %v1945 = vshll.u32 %v1822, 16
      %v1947 = vrot.slane %v1945, 5
      %v1948 = vsel %vm764, %v1943, %v1947
      %v1949 = vshrl.u32 %v1822, 16
      %v1951 = vrot.slane %v1949, 4
      %v1952 = vor.u32 %v1951, %v1947
      %v1953 = vrot.slane %v1952, 4
      %v1955 = vshll.u32 %v1823, 16
      %v1957 = vrot.slane %v1955, 5
      %v1958 = vsel %vm764, %v1953, %v1957
      %v1960 = vshrl.u32 %v1824, 16
      %v1962 = vrot.slane %v1960, 4
      %v1963 = vshll.u32 %v1824, 16
      %v1965 = vrot.slane %v1963, 5
      %v1966 = vor.u32 %v1962, %v1965
      %v1967 = vrot.slane %v1966, 4
      %v1969 = vshll.u32 %v1825, 16
      %v1971 = vrot.slane %v1969, 5
      %v1972 = vsel %vm764, %v1967, %v1971
      %v1973 = vshrl.u32 %v1825, 16
      %v1975 = vrot.slane %v1973, 4
      %v1976 = vor.u32 %v1975, %v1971
      %v1977 = vrot.slane %v1976, 4
      %v1979 = vshll.u32 %v1826, 16
      %v1981 = vrot.slane %v1979, 5
      %v1982 = vsel %vm764, %v1977, %v1981
      %v1984 = vshrl.u32 %v1827, 16
      %v1986 = vrot.slane %v1984, 4
      %v1987 = vshll.u32 %v1827, 16
      %v1989 = vrot.slane %v1987, 5
      %v1990 = vor.u32 %v1986, %v1989
      %v1991 = vrot.slane %v1990, 4
      %v1993 = vshll.u32 %v1828, 16
      %v1995 = vrot.slane %v1993, 5
      %v1996 = vsel %vm764, %v1991, %v1995
      %v1997 = vshrl.u32 %v1828, 16
      %v1999 = vrot.slane %v1997, 4
      %v2000 = vor.u32 %v1999, %v1995
      %v2001 = vrot.slane %v2000, 4
      %v2003 = vshll.u32 %v1829, 16
      %v2005 = vrot.slane %v2003, 5
      %v2006 = vsel %vm764, %v2001, %v2005
      %v2008 = vshrl.u32 %v1830, 16
      %v2010 = vrot.slane %v2008, 4
      %v2011 = vshll.u32 %v1830, 16
      %v2013 = vrot.slane %v2011, 5
      %v2014 = vor.u32 %v2010, %v2013
      %v2015 = vrot.slane %v2014, 4
      %v2017 = vshll.u32 %v1831, 16
      %v2019 = vrot.slane %v2017, 5
      %v2020 = vsel %vm764, %v2015, %v2019
      %v2021 = vshrl.u32 %v1831, 16
      %v2023 = vrot.slane %v2021, 4
      %v2024 = vor.u32 %v2023, %v2019
      %v2025 = vrot.slane %v2024, 4
      %v2027 = vshll.u32 %v1832, 16
      %v2029 = vrot.slane %v2027, 5
      %v2030 = vsel %vm764, %v2025, %v2029
      %v2032 = vshrl.u32 %v1833, 16
      %v2034 = vrot.slane %v2032, 4
      %v2035 = vshll.u32 %v1833, 16
      %v2037 = vrot.slane %v2035, 5
      %v2038 = vor.u32 %v2034, %v2037
      %v2039 = vrot.slane %v2038, 4
      %v2041 = vshll.u32 %v1834, 16
      %v2043 = vrot.slane %v2041, 5
      %v2044 = vsel %vm764, %v2039, %v2043
      %v2045 = vshrl.u32 %v1834, 16
      %v2047 = vrot.slane %v2045, 4
      %v2048 = vor.u32 %v2047, %v2043
      %v2049 = vrot.slane %v2048, 4
      %v2051 = vshll.u32 %v1835, 16
      %v2053 = vrot.slane %v2051, 5
      %v2054 = vsel %vm764, %v2049, %v2053
      %v2056 = vshrl.u32 %v1836, 16
      %v2058 = vrot.slane %v2056, 4
      %v2059 = vshll.u32 %v1836, 16
      %v2061 = vrot.slane %v2059, 5
      %v2062 = vor.u32 %v2058, %v2061
      %v2063 = vrot.slane %v2062, 4
      %v2065 = vshll.u32 %v1837, 16
      %v2067 = vrot.slane %v2065, 5
      %v2068 = vsel %vm764, %v2063, %v2067
      %v2069 = vshrl.u32 %v1837, 16
      %v2071 = vrot.slane %v2069, 4
      %v2072 = vor.u32 %v2071, %v2067
      %v2073 = vrot.slane %v2072, 4
      %v2075 = vshll.u32 %v1838, 16
      %v2077 = vrot.slane %v2075, 5
      %v2078 = vsel %vm764, %v2073, %v2077
      %s2079 = scalar_lea.vmem %s1, 128
      %v2080 = vld [vmem:[%s2079] sm:$0xf]
      %v2081 = vld [vmem:[%s2079 + $0x4] sm:$0xf]
      %v2082 = vld [vmem:[%s2079 + $0x8] sm:$0xf]
      %v2083 = vld [vmem:[%s2079 + $0xc] sm:$0xf]
      %v2084 = vld [vmem:[%s2079 + $0x10] sm:$0xf]
      %v2085 = vld [vmem:[%s2079 + $0x14] sm:$0xf]
      %v2086 = vld [vmem:[%s2079 + $0x18] sm:$0xf]
      %v2087 = vld [vmem:[%s2079 + $0x1c] sm:$0xf]
      %v2088 = vunpack.c.l.b16 %v1852
      %v2089 = vunpack.c.l.b16 %v1862
      %v2090 = vunpack.c.l.b16 %v1876
      %v2091 = vunpack.c.l.b16 %v1886
      %v2092 = vunpack.c.l.b16 %v1900
      %v2093 = vunpack.c.l.b16 %v1910
      %v2094 = vunpack.c.l.b16 %v1924
      %v2095 = vunpack.c.l.b16 %v1934
      %v2096 = vunpack.c.l.b16 %v1948
      %v2097 = vunpack.c.l.b16 %v1958
      %v2098 = vunpack.c.l.b16 %v1972
      %v2099 = vunpack.c.l.b16 %v1982
      %v2100 = vunpack.c.l.b16 %v1996
      %v2101 = vunpack.c.l.b16 %v2006
      %v2102 = vunpack.c.l.b16 %v2020
      %v2103 = vunpack.c.l.b16 %v2030
      %v2104 = vunpack.c.l.b16 %v2044
      %v2105 = vunpack.c.l.b16 %v2054
      %v2106 = vunpack.c.l.b16 %v2068
      %v2107 = vunpack.c.l.b16 %v2078
      %v2108 = vpack.c.b16 %v2089, %v2088
      %v2109 = vpack.c.b16 %v2091, %v2090
      %v2110 = vpack.c.b16 %v2093, %v2092
      %v2111 = vpack.c.b16 %v2095, %v2094
      %v2112 = vpack.c.b16 %v2097, %v2096
      %v2113 = vpack.c.b16 %v2099, %v2098
      %v2114 = vpack.c.b16 %v2101, %v2100
      %v2115 = vpack.c.b16 %v2103, %v2102
      %v2116 = vpack.c.b16 %v2105, %v2104
      %v2117 = vpack.c.b16 %v2107, %v2106
      %v2126 = vunpack.c.l.b16 %v2080
      %v2127 = vunpack.c.l.b16 %v2081
      %v2128 = vunpack.c.l.b16 %v2082
      %v2129 = vunpack.c.l.b16 %v2083
      %v2130 = vunpack.c.l.b16 %v2084
      %v2131 = vunpack.c.l.b16 %v2085
      %v2132 = vunpack.c.l.b16 %v2086
      %v2133 = vunpack.c.l.b16 %v2087
      %v2134 = vpack.c.b16 %v2127, %v2126
      %v2135 = vpack.c.b16 %v2129, %v2128
      %v2136 = vpack.c.b16 %v2131, %v2130
      %v2137 = vpack.c.b16 %v2133, %v2132
      %v2143 = vsel %vm1068, %v2108, 0
      %v2146 = vsel %vm1068, %v2109, 0
      %v2149 = vsel %vm1068, %v2110, 0
      %v2152 = vsel %vm1068, %v2111, 0
      %v2155 = vsel %vm1068, %v2112, 0
      %v2158 = vsel %vm1068, %v2113, 0
      %v2161 = vsel %vm1068, %v2114, 0
      %v2164 = vsel %vm1068, %v2115, 0
      %v2167 = vsel %vm1068, %v2116, 0
      %v2170 = vsel %vm1068, %v2117, 0
      %2172 = vmatpush.bf16.msra.mxu0 0
      %2173 = vmatpush.bf16.msra.mxu0 0
      %2174 = vmatpush.bf16.msra.mxu0 0
      %2175 = vmatpush.bf16.msra.mxu0 0
      %2176 = vmatpush.bf16.msra.mxu0 %v2137
      %2177 = vmatpush.bf16.msra.mxu0 %v2136
      %2178 = vmatpush.bf16.msra.mxu0 %v2135
      %2179 = vmatpush.bf16.msra.mxu0 %v2134
      %2180 = vmatmul.bf16.gmra.mxu0 %v2143
      %v2181 = vpop.f32.mrf.mxu0
      %v2182 = vadd.f32 0.0, %v2181
      %v2183 = vpop.f32.mrf.mxu0
      %v2184 = vadd.f32 0.0, %v2183
      %2185 = vmatmul.bf16.gmra.mxu0 %v2146
      %v2186 = vpop.f32.mrf.mxu0
      %v2187 = vadd.f32 0.0, %v2186
      %v2188 = vpop.f32.mrf.mxu0
      %v2189 = vadd.f32 0.0, %v2188
      %2190 = vmatmul.bf16.gmra.mxu0 %v2149
      %v2191 = vpop.f32.mrf.mxu0
      %v2192 = vadd.f32 0.0, %v2191
      %v2193 = vpop.f32.mrf.mxu0
      %v2194 = vadd.f32 0.0, %v2193
      %2195 = vmatmul.bf16.gmra.mxu0 %v2152
      %v2196 = vpop.f32.mrf.mxu0
      %v2197 = vadd.f32 0.0, %v2196
      %v2198 = vpop.f32.mrf.mxu0
      %v2199 = vadd.f32 0.0, %v2198
      %2200 = vmatmul.bf16.gmra.mxu0 %v2155
      %v2201 = vpop.f32.mrf.mxu0
      %v2202 = vadd.f32 0.0, %v2201
      %v2203 = vpop.f32.mrf.mxu0
      %v2204 = vadd.f32 0.0, %v2203
      %2205 = vmatmul.bf16.gmra.mxu0 %v2158
      %v2206 = vpop.f32.mrf.mxu0
      %v2207 = vadd.f32 0.0, %v2206
      %v2208 = vpop.f32.mrf.mxu0
      %v2209 = vadd.f32 0.0, %v2208
      %2210 = vmatmul.bf16.gmra.mxu0 %v2161
      %v2211 = vpop.f32.mrf.mxu0
      %v2212 = vadd.f32 0.0, %v2211
      %v2213 = vpop.f32.mrf.mxu0
      %v2214 = vadd.f32 0.0, %v2213
      %2215 = vmatmul.bf16.gmra.mxu0 %v2164
      %v2216 = vpop.f32.mrf.mxu0
      %v2217 = vadd.f32 0.0, %v2216
      %v2218 = vpop.f32.mrf.mxu0
      %v2219 = vadd.f32 0.0, %v2218
      %2220 = vmatmul.bf16.gmra.mxu0 %v2167
      %v2221 = vpop.f32.mrf.mxu0
      %v2222 = vadd.f32 0.0, %v2221
      %v2223 = vpop.f32.mrf.mxu0
      %v2224 = vadd.f32 0.0, %v2223
      %2225 = vmatmul.bf16.gmra.mxu0 %v2170
      %v2226 = vpop.f32.mrf.mxu0
      %v2227 = vadd.f32 0.0, %v2226
      %v2228 = vpop.f32.mrf.mxu0
      %v2229 = vadd.f32 0.0, %v2228
      %2230 = vdwg.mxu0
      %v2231 = vadd.f32 %v1789, %v2182
      %v2232 = vadd.f32 %v1790, %v2184
      %v2233 = vadd.f32 %v1791, %v2187
      %v2234 = vadd.f32 %v1792, %v2189
      %v2235 = vadd.f32 %v1793, %v2192
      %v2236 = vadd.f32 %v1794, %v2194
      %v2237 = vadd.f32 %v1795, %v2197
      %v2238 = vadd.f32 %v1796, %v2199
      %v2239 = vadd.f32 %v1797, %v2202
      %v2240 = vadd.f32 %v1798, %v2204
      %v2241 = vadd.f32 %v1799, %v2207
      %v2242 = vadd.f32 %v1800, %v2209
      %v2243 = vadd.f32 %v1801, %v2212
      %v2244 = vadd.f32 %v1802, %v2214
      %v2245 = vadd.f32 %v1803, %v2217
      %v2246 = vadd.f32 %v1804, %v2219
      %v2247 = vadd.f32 %v1805, %v2222
      %v2248 = vadd.f32 %v1806, %v2224
      %v2249 = vadd.f32 %v1807, %v2227
      %v2250 = vadd.f32 %v1808, %v2229
      %v2251 = vld [vmem:[%s1596] sm:$0xe]
      %v2252 = vld [vmem:[%s1596 + $0xc] sm:$0xe]
      %v2253 = vld [vmem:[%s1596 + $0x18] sm:$0xe]
      %v2254 = vld [vmem:[%s1596 + $0x24] sm:$0xe]
      %v2255 = vld [vmem:[%s1596 + $0x30] sm:$0xe]
      %v2256 = vld [vmem:[%s1596 + $0x3c] sm:$0xe]
      %v2257 = vld [vmem:[%s1596 + $0x48] sm:$0xe]
      %v2258 = vld [vmem:[%s1596 + $0x54] sm:$0xe]
      %v2259 = vld [vmem:[%s1596 + $0x60] sm:$0xe]
      %v2260 = vld [vmem:[%s1596 + $0x6c] sm:$0xe]
      %v2291 = vrot.slane %v2251, 5
      %v2292 = vrot.slane %v2291, 4
      %v2293 = vrot.slane %v1810, 5
      %v2294 = vsel %vm1353, %v2292, %v2293
      %v2295 = vrot.slane %v2293, 4
      %v2296 = vrot.slane %v1811, 5
      %v2297 = vsel %vm1353, %v2295, %v2296
      %v2298 = vrot.slane %v2252, 5
      %v2299 = vrot.slane %v2298, 4
      %v2300 = vrot.slane %v1813, 5
      %v2301 = vsel %vm1353, %v2299, %v2300
      %v2302 = vrot.slane %v2300, 4
      %v2303 = vrot.slane %v1814, 5
      %v2304 = vsel %vm1353, %v2302, %v2303
      %v2305 = vrot.slane %v2253, 5
      %v2306 = vrot.slane %v2305, 4
      %v2307 = vrot.slane %v1816, 5
      %v2308 = vsel %vm1353, %v2306, %v2307
      %v2309 = vrot.slane %v2307, 4
      %v2310 = vrot.slane %v1817, 5
      %v2311 = vsel %vm1353, %v2309, %v2310
      %v2312 = vrot.slane %v2254, 5
      %v2313 = vrot.slane %v2312, 4
      %v2314 = vrot.slane %v1819, 5
      %v2315 = vsel %vm1353, %v2313, %v2314
      %v2316 = vrot.slane %v2314, 4
      %v2317 = vrot.slane %v1820, 5
      %v2318 = vsel %vm1353, %v2316, %v2317
      %v2319 = vrot.slane %v2255, 5
      %v2320 = vrot.slane %v2319, 4
      %v2321 = vrot.slane %v1822, 5
      %v2322 = vsel %vm1353, %v2320, %v2321
      %v2323 = vrot.slane %v2321, 4
      %v2324 = vrot.slane %v1823, 5
      %v2325 = vsel %vm1353, %v2323, %v2324
      %v2326 = vrot.slane %v2256, 5
      %v2327 = vrot.slane %v2326, 4
      %v2328 = vrot.slane %v1825, 5
      %v2329 = vsel %vm1353, %v2327, %v2328
      %v2330 = vrot.slane %v2328, 4
      %v2331 = vrot.slane %v1826, 5
      %v2332 = vsel %vm1353, %v2330, %v2331
      %v2333 = vrot.slane %v2257, 5
      %v2334 = vrot.slane %v2333, 4
      %v2335 = vrot.slane %v1828, 5
      %v2336 = vsel %vm1353, %v2334, %v2335
      %v2337 = vrot.slane %v2335, 4
      %v2338 = vrot.slane %v1829, 5
      %v2339 = vsel %vm1353, %v2337, %v2338
      %v2340 = vrot.slane %v2258, 5
      %v2341 = vrot.slane %v2340, 4
      %v2342 = vrot.slane %v1831, 5
      %v2343 = vsel %vm1353, %v2341, %v2342
      %v2344 = vrot.slane %v2342, 4
      %v2345 = vrot.slane %v1832, 5
      %v2346 = vsel %vm1353, %v2344, %v2345
      %v2347 = vrot.slane %v2259, 5
      %v2348 = vrot.slane %v2347, 4
      %v2349 = vrot.slane %v1834, 5
      %v2350 = vsel %vm1353, %v2348, %v2349
      %v2351 = vrot.slane %v2349, 4
      %v2352 = vrot.slane %v1835, 5
      %v2353 = vsel %vm1353, %v2351, %v2352
      %v2354 = vrot.slane %v2260, 5
      %v2355 = vrot.slane %v2354, 4
      %v2356 = vrot.slane %v1837, 5
      %v2357 = vsel %vm1353, %v2355, %v2356
      %v2358 = vrot.slane %v2356, 4
      %v2359 = vrot.slane %v1838, 5
      %v2360 = vsel %vm1353, %v2358, %v2359
      %s2361 = scalar_lea.vmem %s1, 160
      %v2362 = vld [vmem:[%s2361] sm:$0xf]
      %v2363 = vld [vmem:[%s2361 + $0x4] sm:$0xf]
      %v2364 = vld [vmem:[%s2361 + $0x8] sm:$0xf]
      %v2365 = vld [vmem:[%s2361 + $0xc] sm:$0xf]
      %v2366 = vld [vmem:[%s2361 + $0x10] sm:$0xf]
      %v2367 = vld [vmem:[%s2361 + $0x14] sm:$0xf]
      %v2368 = vld [vmem:[%s2361 + $0x18] sm:$0xf]
      %v2369 = vld [vmem:[%s2361 + $0x1c] sm:$0xf]
      %v2370 = vunpack.c.l.b16 %v2294
      %v2371 = vunpack.c.l.b16 %v2297
      %v2372 = vunpack.c.l.b16 %v2301
      %v2373 = vunpack.c.l.b16 %v2304
      %v2374 = vunpack.c.l.b16 %v2308
      %v2375 = vunpack.c.l.b16 %v2311
      %v2376 = vunpack.c.l.b16 %v2315
      %v2377 = vunpack.c.l.b16 %v2318
      %v2378 = vunpack.c.l.b16 %v2322
      %v2379 = vunpack.c.l.b16 %v2325
      %v2380 = vunpack.c.l.b16 %v2329
      %v2381 = vunpack.c.l.b16 %v2332
      %v2382 = vunpack.c.l.b16 %v2336
      %v2383 = vunpack.c.l.b16 %v2339
      %v2384 = vunpack.c.l.b16 %v2343
      %v2385 = vunpack.c.l.b16 %v2346
      %v2386 = vunpack.c.l.b16 %v2350
      %v2387 = vunpack.c.l.b16 %v2353
      %v2388 = vunpack.c.l.b16 %v2357
      %v2389 = vunpack.c.l.b16 %v2360
      %v2390 = vpack.c.b16 %v2371, %v2370
      %v2391 = vpack.c.b16 %v2373, %v2372
      %v2392 = vpack.c.b16 %v2375, %v2374
      %v2393 = vpack.c.b16 %v2377, %v2376
      %v2394 = vpack.c.b16 %v2379, %v2378
      %v2395 = vpack.c.b16 %v2381, %v2380
      %v2396 = vpack.c.b16 %v2383, %v2382
      %v2397 = vpack.c.b16 %v2385, %v2384
      %v2398 = vpack.c.b16 %v2387, %v2386
      %v2399 = vpack.c.b16 %v2389, %v2388
      %v2408 = vunpack.c.l.b16 %v2362
      %v2409 = vunpack.c.l.b16 %v2363
      %v2410 = vunpack.c.l.b16 %v2364
      %v2411 = vunpack.c.l.b16 %v2365
      %v2412 = vunpack.c.l.b16 %v2366
      %v2413 = vunpack.c.l.b16 %v2367
      %v2414 = vunpack.c.l.b16 %v2368
      %v2415 = vunpack.c.l.b16 %v2369
      %v2416 = vpack.c.b16 %v2409, %v2408
      %v2417 = vpack.c.b16 %v2411, %v2410
      %v2418 = vpack.c.b16 %v2413, %v2412
      %v2419 = vpack.c.b16 %v2415, %v2414
      %v2425 = vsel %vm1068, %v2390, 0
      %v2428 = vsel %vm1068, %v2391, 0
      %v2431 = vsel %vm1068, %v2392, 0
      %v2434 = vsel %vm1068, %v2393, 0
      %v2437 = vsel %vm1068, %v2394, 0
      %v2440 = vsel %vm1068, %v2395, 0
      %v2443 = vsel %vm1068, %v2396, 0
      %v2446 = vsel %vm1068, %v2397, 0
      %v2449 = vsel %vm1068, %v2398, 0
      %v2452 = vsel %vm1068, %v2399, 0
      %2454 = vmatpush.bf16.msra.mxu0 0
      %2455 = vmatpush.bf16.msra.mxu0 0
      %2456 = vmatpush.bf16.msra.mxu0 0
      %2457 = vmatpush.bf16.msra.mxu0 0
      %2458 = vmatpush.bf16.msra.mxu0 %v2419
      %2459 = vmatpush.bf16.msra.mxu0 %v2418
      %2460 = vmatpush.bf16.msra.mxu0 %v2417
      %2461 = vmatpush.bf16.msra.mxu0 %v2416
      %2462 = vmatmul.bf16.gmra.mxu0 %v2425
      %v2463 = vpop.f32.mrf.mxu0
      %v2464 = vadd.f32 0.0, %v2463
      %v2465 = vpop.f32.mrf.mxu0
      %v2466 = vadd.f32 0.0, %v2465
      %2467 = vmatmul.bf16.gmra.mxu0 %v2428
      %v2468 = vpop.f32.mrf.mxu0
      %v2469 = vadd.f32 0.0, %v2468
      %v2470 = vpop.f32.mrf.mxu0
      %v2471 = vadd.f32 0.0, %v2470
      %2472 = vmatmul.bf16.gmra.mxu0 %v2431
      %v2473 = vpop.f32.mrf.mxu0
      %v2474 = vadd.f32 0.0, %v2473
      %v2475 = vpop.f32.mrf.mxu0
      %v2476 = vadd.f32 0.0, %v2475
      %2477 = vmatmul.bf16.gmra.mxu0 %v2434
      %v2478 = vpop.f32.mrf.mxu0
      %v2479 = vadd.f32 0.0, %v2478
      %v2480 = vpop.f32.mrf.mxu0
      %v2481 = vadd.f32 0.0, %v2480
      %2482 = vmatmul.bf16.gmra.mxu0 %v2437
      %v2483 = vpop.f32.mrf.mxu0
      %v2484 = vadd.f32 0.0, %v2483
      %v2485 = vpop.f32.mrf.mxu0
      %v2486 = vadd.f32 0.0, %v2485
      %2487 = vmatmul.bf16.gmra.mxu0 %v2440
      %v2488 = vpop.f32.mrf.mxu0
      %v2489 = vadd.f32 0.0, %v2488
      %v2490 = vpop.f32.mrf.mxu0
      %v2491 = vadd.f32 0.0, %v2490
      %2492 = vmatmul.bf16.gmra.mxu0 %v2443
      %v2493 = vpop.f32.mrf.mxu0
      %v2494 = vadd.f32 0.0, %v2493
      %v2495 = vpop.f32.mrf.mxu0
      %v2496 = vadd.f32 0.0, %v2495
      %2497 = vmatmul.bf16.gmra.mxu0 %v2446
      %v2498 = vpop.f32.mrf.mxu0
      %v2499 = vadd.f32 0.0, %v2498
      %v2500 = vpop.f32.mrf.mxu0
      %v2501 = vadd.f32 0.0, %v2500
      %2502 = vmatmul.bf16.gmra.mxu0 %v2449
      %v2503 = vpop.f32.mrf.mxu0
      %v2504 = vadd.f32 0.0, %v2503
      %v2505 = vpop.f32.mrf.mxu0
      %v2506 = vadd.f32 0.0, %v2505
      %2507 = vmatmul.bf16.gmra.mxu0 %v2452
      %v2508 = vpop.f32.mrf.mxu0
      %v2509 = vadd.f32 0.0, %v2508
      %v2510 = vpop.f32.mrf.mxu0
      %v2511 = vadd.f32 0.0, %v2510
      %2512 = vdwg.mxu0
      %v2513 = vadd.f32 %v2231, %v2464
      %v2514 = vadd.f32 %v2232, %v2466
      %v2515 = vadd.f32 %v2233, %v2469
      %v2516 = vadd.f32 %v2234, %v2471
      %v2517 = vadd.f32 %v2235, %v2474
      %v2518 = vadd.f32 %v2236, %v2476
      %v2519 = vadd.f32 %v2237, %v2479
      %v2520 = vadd.f32 %v2238, %v2481
      %v2521 = vadd.f32 %v2239, %v2484
      %v2522 = vadd.f32 %v2240, %v2486
      %v2523 = vadd.f32 %v2241, %v2489
      %v2524 = vadd.f32 %v2242, %v2491
      %v2525 = vadd.f32 %v2243, %v2494
      %v2526 = vadd.f32 %v2244, %v2496
      %v2527 = vadd.f32 %v2245, %v2499
      %v2528 = vadd.f32 %v2246, %v2501
      %v2529 = vadd.f32 %v2247, %v2504
      %v2530 = vadd.f32 %v2248, %v2506
      %v2531 = vadd.f32 %v2249, %v2509
      %v2532 = vadd.f32 %v2250, %v2511
      %v2533 = vld [vmem:[%s508] sm:$0xf]
      %v2534 = vld [vmem:[%s508 + $0x4] sm:$0xf]
      %v2535 = vld [vmem:[%s508 + $0xc] sm:$0xf]
      %v2536 = vld [vmem:[%s508 + $0x10] sm:$0xf]
      %v2537 = vld [vmem:[%s508 + $0x18] sm:$0xf]
      %v2538 = vld [vmem:[%s508 + $0x1c] sm:$0xf]
      %v2539 = vld [vmem:[%s508 + $0x24] sm:$0xf]
      %v2540 = vld [vmem:[%s508 + $0x28] sm:$0xf]
      %v2541 = vld [vmem:[%s508 + $0x30] sm:$0xf]
      %v2542 = vld [vmem:[%s508 + $0x34] sm:$0xf]
      %v2543 = vld [vmem:[%s508 + $0x3c] sm:$0xf]
      %v2544 = vld [vmem:[%s508 + $0x40] sm:$0xf]
      %v2545 = vld [vmem:[%s508 + $0x48] sm:$0xf]
      %v2546 = vld [vmem:[%s508 + $0x4c] sm:$0xf]
      %v2547 = vld [vmem:[%s508 + $0x54] sm:$0xf]
      %v2548 = vld [vmem:[%s508 + $0x58] sm:$0xf]
      %v2549 = vld [vmem:[%s508 + $0x60] sm:$0xf]
      %v2550 = vld [vmem:[%s508 + $0x64] sm:$0xf]
      %v2551 = vld [vmem:[%s508 + $0x6c] sm:$0xf]
      %v2552 = vld [vmem:[%s508 + $0x70] sm:$0xf]
      %s2553 = scalar_lea.vmem %s1, 192
      %v2554 = vld [vmem:[%s2553] sm:$0xf]
      %v2555 = vld [vmem:[%s2553 + $0x4] sm:$0xf]
      %v2556 = vld [vmem:[%s2553 + $0x8] sm:$0xf]
      %v2557 = vld [vmem:[%s2553 + $0xc] sm:$0xf]
      %v2558 = vld [vmem:[%s2553 + $0x10] sm:$0xf]
      %v2559 = vld [vmem:[%s2553 + $0x14] sm:$0xf]
      %v2560 = vld [vmem:[%s2553 + $0x18] sm:$0xf]
      %v2561 = vld [vmem:[%s2553 + $0x1c] sm:$0xf]
      %v2582 = vunpack.c.l.b16 %v2533
      %v2583 = vunpack.c.l.b16 %v2534
      %v2584 = vunpack.c.l.b16 %v2535
      %v2585 = vunpack.c.l.b16 %v2536
      %v2586 = vunpack.c.l.b16 %v2537
      %v2587 = vunpack.c.l.b16 %v2538
      %v2588 = vunpack.c.l.b16 %v2539
      %v2589 = vunpack.c.l.b16 %v2540
      %v2590 = vunpack.c.l.b16 %v2541
      %v2591 = vunpack.c.l.b16 %v2542
      %v2592 = vunpack.c.l.b16 %v2543
      %v2593 = vunpack.c.l.b16 %v2544
      %v2594 = vunpack.c.l.b16 %v2545
      %v2595 = vunpack.c.l.b16 %v2546
      %v2596 = vunpack.c.l.b16 %v2547
      %v2597 = vunpack.c.l.b16 %v2548
      %v2598 = vunpack.c.l.b16 %v2549
      %v2599 = vunpack.c.l.b16 %v2550
      %v2600 = vunpack.c.l.b16 %v2551
      %v2601 = vunpack.c.l.b16 %v2552
      %v2602 = vpack.c.b16 %v2583, %v2582
      %v2603 = vpack.c.b16 %v2585, %v2584
      %v2604 = vpack.c.b16 %v2587, %v2586
      %v2605 = vpack.c.b16 %v2589, %v2588
      %v2606 = vpack.c.b16 %v2591, %v2590
      %v2607 = vpack.c.b16 %v2593, %v2592
      %v2608 = vpack.c.b16 %v2595, %v2594
      %v2609 = vpack.c.b16 %v2597, %v2596
      %v2610 = vpack.c.b16 %v2599, %v2598
      %v2611 = vpack.c.b16 %v2601, %v2600
      %v2620 = vunpack.c.l.b16 %v2554
      %v2621 = vunpack.c.l.b16 %v2555
      %v2622 = vunpack.c.l.b16 %v2556
      %v2623 = vunpack.c.l.b16 %v2557
      %v2624 = vunpack.c.l.b16 %v2558
      %v2625 = vunpack.c.l.b16 %v2559
      %v2626 = vunpack.c.l.b16 %v2560
      %v2627 = vunpack.c.l.b16 %v2561
      %v2628 = vpack.c.b16 %v2621, %v2620
      %v2629 = vpack.c.b16 %v2623, %v2622
      %v2630 = vpack.c.b16 %v2625, %v2624
      %v2631 = vpack.c.b16 %v2627, %v2626
      %v2637 = vsel %vm1068, %v2602, 0
      %v2640 = vsel %vm1068, %v2603, 0
      %v2643 = vsel %vm1068, %v2604, 0
      %v2646 = vsel %vm1068, %v2605, 0
      %v2649 = vsel %vm1068, %v2606, 0
      %v2652 = vsel %vm1068, %v2607, 0
      %v2655 = vsel %vm1068, %v2608, 0
      %v2658 = vsel %vm1068, %v2609, 0
      %v2661 = vsel %vm1068, %v2610, 0
      %v2664 = vsel %vm1068, %v2611, 0
      %2666 = vmatpush.bf16.msra.mxu0 0
      %2667 = vmatpush.bf16.msra.mxu0 0
      %2668 = vmatpush.bf16.msra.mxu0 0
      %2669 = vmatpush.bf16.msra.mxu0 0
      %2670 = vmatpush.bf16.msra.mxu0 %v2631
      %2671 = vmatpush.bf16.msra.mxu0 %v2630
      %2672 = vmatpush.bf16.msra.mxu0 %v2629
      %2673 = vmatpush.bf16.msra.mxu0 %v2628
      %2674 = vmatmul.bf16.gmra.mxu0 %v2637
      %v2675 = vpop.f32.mrf.mxu0
      %v2676 = vadd.f32 0.0, %v2675
      %v2677 = vpop.f32.mrf.mxu0
      %v2678 = vadd.f32 0.0, %v2677
      %2679 = vmatmul.bf16.gmra.mxu0 %v2640
      %v2680 = vpop.f32.mrf.mxu0
      %v2681 = vadd.f32 0.0, %v2680
      %v2682 = vpop.f32.mrf.mxu0
      %v2683 = vadd.f32 0.0, %v2682
      %2684 = vmatmul.bf16.gmra.mxu0 %v2643
      %v2685 = vpop.f32.mrf.mxu0
      %v2686 = vadd.f32 0.0, %v2685
      %v2687 = vpop.f32.mrf.mxu0
      %v2688 = vadd.f32 0.0, %v2687
      %2689 = vmatmul.bf16.gmra.mxu0 %v2646
      %v2690 = vpop.f32.mrf.mxu0
      %v2691 = vadd.f32 0.0, %v2690
      %v2692 = vpop.f32.mrf.mxu0
      %v2693 = vadd.f32 0.0, %v2692
      %2694 = vmatmul.bf16.gmra.mxu0 %v2649
      %v2695 = vpop.f32.mrf.mxu0
      %v2696 = vadd.f32 0.0, %v2695
      %v2697 = vpop.f32.mrf.mxu0
      %v2698 = vadd.f32 0.0, %v2697
      %2699 = vmatmul.bf16.gmra.mxu0 %v2652
      %v2700 = vpop.f32.mrf.mxu0
      %v2701 = vadd.f32 0.0, %v2700
      %v2702 = vpop.f32.mrf.mxu0
      %v2703 = vadd.f32 0.0, %v2702
      %2704 = vmatmul.bf16.gmra.mxu0 %v2655
      %v2705 = vpop.f32.mrf.mxu0
      %v2706 = vadd.f32 0.0, %v2705
      %v2707 = vpop.f32.mrf.mxu0
      %v2708 = vadd.f32 0.0, %v2707
      %2709 = vmatmul.bf16.gmra.mxu0 %v2658
      %v2710 = vpop.f32.mrf.mxu0
      %v2711 = vadd.f32 0.0, %v2710
      %v2712 = vpop.f32.mrf.mxu0
      %v2713 = vadd.f32 0.0, %v2712
      %2714 = vmatmul.bf16.gmra.mxu0 %v2661
      %v2715 = vpop.f32.mrf.mxu0
      %v2716 = vadd.f32 0.0, %v2715
      %v2717 = vpop.f32.mrf.mxu0
      %v2718 = vadd.f32 0.0, %v2717
      %2719 = vmatmul.bf16.gmra.mxu0 %v2664
      %v2720 = vpop.f32.mrf.mxu0
      %v2721 = vadd.f32 0.0, %v2720
      %v2722 = vpop.f32.mrf.mxu0
      %v2723 = vadd.f32 0.0, %v2722
      %2724 = vdwg.mxu0
      %v2725 = vadd.f32 %v2513, %v2676
      %v2726 = vadd.f32 %v2514, %v2678
      %v2727 = vadd.f32 %v2515, %v2681
      %v2728 = vadd.f32 %v2516, %v2683
      %v2729 = vadd.f32 %v2517, %v2686
      %v2730 = vadd.f32 %v2518, %v2688
      %v2731 = vadd.f32 %v2519, %v2691
      %v2732 = vadd.f32 %v2520, %v2693
      %v2733 = vadd.f32 %v2521, %v2696
      %v2734 = vadd.f32 %v2522, %v2698
      %v2735 = vadd.f32 %v2523, %v2701
      %v2736 = vadd.f32 %v2524, %v2703
      %v2737 = vadd.f32 %v2525, %v2706
      %v2738 = vadd.f32 %v2526, %v2708
      %v2739 = vadd.f32 %v2527, %v2711
      %v2740 = vadd.f32 %v2528, %v2713
      %v2741 = vadd.f32 %v2529, %v2716
      %v2742 = vadd.f32 %v2530, %v2718
      %v2743 = vadd.f32 %v2531, %v2721
      %v2744 = vadd.f32 %v2532, %v2723
      %v2745 = vld [vmem:[%s508] sm:$0xf]
      %v2746 = vld [vmem:[%s508 + $0x4] sm:$0xf]
      %v2747 = vld [vmem:[%s508 + $0x8] sm:$0x1]
      %v2748 = vld [vmem:[%s508 + $0xc] sm:$0xf]
      %v2749 = vld [vmem:[%s508 + $0x10] sm:$0xf]
      %v2750 = vld [vmem:[%s508 + $0x14] sm:$0x1]
      %v2751 = vld [vmem:[%s508 + $0x18] sm:$0xf]
      %v2752 = vld [vmem:[%s508 + $0x1c] sm:$0xf]
      %v2753 = vld [vmem:[%s508 + $0x20] sm:$0x1]
      %v2754 = vld [vmem:[%s508 + $0x24] sm:$0xf]
      %v2755 = vld [vmem:[%s508 + $0x28] sm:$0xf]
      %v2756 = vld [vmem:[%s508 + $0x2c] sm:$0x1]
      %v2757 = vld [vmem:[%s508 + $0x30] sm:$0xf]
      %v2758 = vld [vmem:[%s508 + $0x34] sm:$0xf]
      %v2759 = vld [vmem:[%s508 + $0x38] sm:$0x1]
      %v2760 = vld [vmem:[%s508 + $0x3c] sm:$0xf]
      %v2761 = vld [vmem:[%s508 + $0x40] sm:$0xf]
      %v2762 = vld [vmem:[%s508 + $0x44] sm:$0x1]
      %v2763 = vld [vmem:[%s508 + $0x48] sm:$0xf]
      %v2764 = vld [vmem:[%s508 + $0x4c] sm:$0xf]
      %v2765 = vld [vmem:[%s508 + $0x50] sm:$0x1]
      %v2766 = vld [vmem:[%s508 + $0x54] sm:$0xf]
      %v2767 = vld [vmem:[%s508 + $0x58] sm:$0xf]
      %v2768 = vld [vmem:[%s508 + $0x5c] sm:$0x1]
      %v2769 = vld [vmem:[%s508 + $0x60] sm:$0xf]
      %v2770 = vld [vmem:[%s508 + $0x64] sm:$0xf]
      %v2771 = vld [vmem:[%s508 + $0x68] sm:$0x1]
      %v2772 = vld [vmem:[%s508 + $0x6c] sm:$0xf]
      %v2773 = vld [vmem:[%s508 + $0x70] sm:$0xf]
      %v2774 = vld [vmem:[%s508 + $0x74] sm:$0x1]
      %v2776 = vshrl.u32 %v2745, 16
      %v2778 = vrot.slane %v2776, 4
      %v2779 = vshll.u32 %v2745, 16
      %v2781 = vrot.slane %v2779, 5
      %v2782 = vor.u32 %v2778, %v2781
      %v2783 = vrot.slane %v2782, 4
      %v2785 = vshll.u32 %v2746, 16
      %v2787 = vrot.slane %v2785, 5
      %v2788 = vsel %vm764, %v2783, %v2787
      %v2789 = vshrl.u32 %v2746, 16
      %v2791 = vrot.slane %v2789, 4
      %v2792 = vor.u32 %v2791, %v2787
      %v2793 = vrot.slane %v2792, 4
      %v2795 = vshll.u32 %v2747, 16
      %v2797 = vrot.slane %v2795, 5
      %v2798 = vsel %vm764, %v2793, %v2797
      %v2800 = vshrl.u32 %v2748, 16
      %v2802 = vrot.slane %v2800, 4
      %v2803 = vshll.u32 %v2748, 16
      %v2805 = vrot.slane %v2803, 5
      %v2806 = vor.u32 %v2802, %v2805
      %v2807 = vrot.slane %v2806, 4
      %v2809 = vshll.u32 %v2749, 16
      %v2811 = vrot.slane %v2809, 5
      %v2812 = vsel %vm764, %v2807, %v2811
      %v2813 = vshrl.u32 %v2749, 16
      %v2815 = vrot.slane %v2813, 4
      %v2816 = vor.u32 %v2815, %v2811
      %v2817 = vrot.slane %v2816, 4
      %v2819 = vshll.u32 %v2750, 16
      %v2821 = vrot.slane %v2819, 5
      %v2822 = vsel %vm764, %v2817, %v2821
      %v2824 = vshrl.u32 %v2751, 16
      %v2826 = vrot.slane %v2824, 4
      %v2827 = vshll.u32 %v2751, 16
      %v2829 = vrot.slane %v2827, 5
      %v2830 = vor.u32 %v2826, %v2829
      %v2831 = vrot.slane %v2830, 4
      %v2833 = vshll.u32 %v2752, 16
      %v2835 = vrot.slane %v2833, 5
      %v2836 = vsel %vm764, %v2831, %v2835
      %v2837 = vshrl.u32 %v2752, 16
      %v2839 = vrot.slane %v2837, 4
      %v2840 = vor.u32 %v2839, %v2835
      %v2841 = vrot.slane %v2840, 4
      %v2843 = vshll.u32 %v2753, 16
      %v2845 = vrot.slane %v2843, 5
      %v2846 = vsel %vm764, %v2841, %v2845
      %v2848 = vshrl.u32 %v2754, 16
      %v2850 = vrot.slane %v2848, 4
      %v2851 = vshll.u32 %v2754, 16
      %v2853 = vrot.slane %v2851, 5
      %v2854 = vor.u32 %v2850, %v2853
      %v2855 = vrot.slane %v2854, 4
      %v2857 = vshll.u32 %v2755, 16
      %v2859 = vrot.slane %v2857, 5
      %v2860 = vsel %vm764, %v2855, %v2859
      %v2861 = vshrl.u32 %v2755, 16
      %v2863 = vrot.slane %v2861, 4
      %v2864 = vor.u32 %v2863, %v2859
      %v2865 = vrot.slane %v2864, 4
      %v2867 = vshll.u32 %v2756, 16
      %v2869 = vrot.slane %v2867, 5
      %v2870 = vsel %vm764, %v2865, %v2869
      %v2872 = vshrl.u32 %v2757, 16
      %v2874 = vrot.slane %v2872, 4
      %v2875 = vshll.u32 %v2757, 16
      %v2877 = vrot.slane %v2875, 5
      %v2878 = vor.u32 %v2874, %v2877
      %v2879 = vrot.slane %v2878, 4
      %v2881 = vshll.u32 %v2758, 16
      %v2883 = vrot.slane %v2881, 5
      %v2884 = vsel %vm764, %v2879, %v2883
      %v2885 = vshrl.u32 %v2758, 16
      %v2887 = vrot.slane %v2885, 4
      %v2888 = vor.u32 %v2887, %v2883
      %v2889 = vrot.slane %v2888, 4
      %v2891 = vshll.u32 %v2759, 16
      %v2893 = vrot.slane %v2891, 5
      %v2894 = vsel %vm764, %v2889, %v2893
      %v2896 = vshrl.u32 %v2760, 16
      %v2898 = vrot.slane %v2896, 4
      %v2899 = vshll.u32 %v2760, 16
      %v2901 = vrot.slane %v2899, 5
      %v2902 = vor.u32 %v2898, %v2901
      %v2903 = vrot.slane %v2902, 4
      %v2905 = vshll.u32 %v2761, 16
      %v2907 = vrot.slane %v2905, 5
      %v2908 = vsel %vm764, %v2903, %v2907
      %v2909 = vshrl.u32 %v2761, 16
      %v2911 = vrot.slane %v2909, 4
      %v2912 = vor.u32 %v2911, %v2907
      %v2913 = vrot.slane %v2912, 4
      %v2915 = vshll.u32 %v2762, 16
      %v2917 = vrot.slane %v2915, 5
      %v2918 = vsel %vm764, %v2913, %v2917
      %v2920 = vshrl.u32 %v2763, 16
      %v2922 = vrot.slane %v2920, 4
      %v2923 = vshll.u32 %v2763, 16
      %v2925 = vrot.slane %v2923, 5
      %v2926 = vor.u32 %v2922, %v2925
      %v2927 = vrot.slane %v2926, 4
      %v2929 = vshll.u32 %v2764, 16
      %v2931 = vrot.slane %v2929, 5
      %v2932 = vsel %vm764, %v2927, %v2931
      %v2933 = vshrl.u32 %v2764, 16
      %v2935 = vrot.slane %v2933, 4
      %v2936 = vor.u32 %v2935, %v2931
      %v2937 = vrot.slane %v2936, 4
      %v2939 = vshll.u32 %v2765, 16
      %v2941 = vrot.slane %v2939, 5
      %v2942 = vsel %vm764, %v2937, %v2941
      %v2944 = vshrl.u32 %v2766, 16
      %v2946 = vrot.slane %v2944, 4
      %v2947 = vshll.u32 %v2766, 16
      %v2949 = vrot.slane %v2947, 5
      %v2950 = vor.u32 %v2946, %v2949
      %v2951 = vrot.slane %v2950, 4
      %v2953 = vshll.u32 %v2767, 16
      %v2955 = vrot.slane %v2953, 5
      %v2956 = vsel %vm764, %v2951, %v2955
      %v2957 = vshrl.u32 %v2767, 16
      %v2959 = vrot.slane %v2957, 4
      %v2960 = vor.u32 %v2959, %v2955
      %v2961 = vrot.slane %v2960, 4
      %v2963 = vshll.u32 %v2768, 16
      %v2965 = vrot.slane %v2963, 5
      %v2966 = vsel %vm764, %v2961, %v2965
      %v2968 = vshrl.u32 %v2769, 16
      %v2970 = vrot.slane %v2968, 4
      %v2971 = vshll.u32 %v2769, 16
      %v2973 = vrot.slane %v2971, 5
      %v2974 = vor.u32 %v2970, %v2973
      %v2975 = vrot.slane %v2974, 4
      %v2977 = vshll.u32 %v2770, 16
      %v2979 = vrot.slane %v2977, 5
      %v2980 = vsel %vm764, %v2975, %v2979
      %v2981 = vshrl.u32 %v2770, 16
      %v2983 = vrot.slane %v2981, 4
      %v2984 = vor.u32 %v2983, %v2979
      %v2985 = vrot.slane %v2984, 4
      %v2987 = vshll.u32 %v2771, 16
      %v2989 = vrot.slane %v2987, 5
      %v2990 = vsel %vm764, %v2985, %v2989
      %v2992 = vshrl.u32 %v2772, 16
      %v2994 = vrot.slane %v2992, 4
      %v2995 = vshll.u32 %v2772, 16
      %v2997 = vrot.slane %v2995, 5
      %v2998 = vor.u32 %v2994, %v2997
      %v2999 = vrot.slane %v2998, 4
      %v3001 = vshll.u32 %v2773, 16
      %v3003 = vrot.slane %v3001, 5
      %v3004 = vsel %vm764, %v2999, %v3003
      %v3005 = vshrl.u32 %v2773, 16
      %v3007 = vrot.slane %v3005, 4
      %v3008 = vor.u32 %v3007, %v3003
      %v3009 = vrot.slane %v3008, 4
      %v3011 = vshll.u32 %v2774, 16
      %v3013 = vrot.slane %v3011, 5
      %v3014 = vsel %vm764, %v3009, %v3013
      %s3015 = scalar_lea.vmem %s1, 224
      %v3016 = vld [vmem:[%s3015] sm:$0xf]
      %v3017 = vld [vmem:[%s3015 + $0x4] sm:$0xf]
      %v3018 = vld [vmem:[%s3015 + $0x8] sm:$0xf]
      %v3019 = vld [vmem:[%s3015 + $0xc] sm:$0xf]
      %v3020 = vld [vmem:[%s3015 + $0x10] sm:$0xf]
      %v3021 = vld [vmem:[%s3015 + $0x14] sm:$0xf]
      %v3022 = vld [vmem:[%s3015 + $0x18] sm:$0xf]
      %v3023 = vld [vmem:[%s3015 + $0x1c] sm:$0xf]
      %v3024 = vunpack.c.l.b16 %v2788
      %v3025 = vunpack.c.l.b16 %v2798
      %v3026 = vunpack.c.l.b16 %v2812
      %v3027 = vunpack.c.l.b16 %v2822
      %v3028 = vunpack.c.l.b16 %v2836
      %v3029 = vunpack.c.l.b16 %v2846
      %v3030 = vunpack.c.l.b16 %v2860
      %v3031 = vunpack.c.l.b16 %v2870
      %v3032 = vunpack.c.l.b16 %v2884
      %v3033 = vunpack.c.l.b16 %v2894
      %v3034 = vunpack.c.l.b16 %v2908
      %v3035 = vunpack.c.l.b16 %v2918
      %v3036 = vunpack.c.l.b16 %v2932
      %v3037 = vunpack.c.l.b16 %v2942
      %v3038 = vunpack.c.l.b16 %v2956
      %v3039 = vunpack.c.l.b16 %v2966
      %v3040 = vunpack.c.l.b16 %v2980
      %v3041 = vunpack.c.l.b16 %v2990
      %v3042 = vunpack.c.l.b16 %v3004
      %v3043 = vunpack.c.l.b16 %v3014
      %v3044 = vpack.c.b16 %v3025, %v3024
      %v3045 = vpack.c.b16 %v3027, %v3026
      %v3046 = vpack.c.b16 %v3029, %v3028
      %v3047 = vpack.c.b16 %v3031, %v3030
      %v3048 = vpack.c.b16 %v3033, %v3032
      %v3049 = vpack.c.b16 %v3035, %v3034
      %v3050 = vpack.c.b16 %v3037, %v3036
      %v3051 = vpack.c.b16 %v3039, %v3038
      %v3052 = vpack.c.b16 %v3041, %v3040
      %v3053 = vpack.c.b16 %v3043, %v3042
      %v3062 = vunpack.c.l.b16 %v3016
      %v3063 = vunpack.c.l.b16 %v3017
      %v3064 = vunpack.c.l.b16 %v3018
      %v3065 = vunpack.c.l.b16 %v3019
      %v3066 = vunpack.c.l.b16 %v3020
      %v3067 = vunpack.c.l.b16 %v3021
      %v3068 = vunpack.c.l.b16 %v3022
      %v3069 = vunpack.c.l.b16 %v3023
      %v3070 = vpack.c.b16 %v3063, %v3062
      %v3071 = vpack.c.b16 %v3065, %v3064
      %v3072 = vpack.c.b16 %v3067, %v3066
      %v3073 = vpack.c.b16 %v3069, %v3068
      %v3079 = vsel %vm1068, %v3044, 0
      %v3082 = vsel %vm1068, %v3045, 0
      %v3085 = vsel %vm1068, %v3046, 0
      %v3088 = vsel %vm1068, %v3047, 0
      %v3091 = vsel %vm1068, %v3048, 0
      %v3094 = vsel %vm1068, %v3049, 0
      %v3097 = vsel %vm1068, %v3050, 0
      %v3100 = vsel %vm1068, %v3051, 0
      %v3103 = vsel %vm1068, %v3052, 0
      %v3106 = vsel %vm1068, %v3053, 0
      %3108 = vmatpush.bf16.msra.mxu0 0
      %3109 = vmatpush.bf16.msra.mxu0 0
      %3110 = vmatpush.bf16.msra.mxu0 0
      %3111 = vmatpush.bf16.msra.mxu0 0
      %3112 = vmatpush.bf16.msra.mxu0 %v3073
      %3113 = vmatpush.bf16.msra.mxu0 %v3072
      %3114 = vmatpush.bf16.msra.mxu0 %v3071
      %3115 = vmatpush.bf16.msra.mxu0 %v3070
      %3116 = vmatmul.bf16.gmra.mxu0 %v3079
      %v3117 = vpop.f32.mrf.mxu0
      %v3118 = vadd.f32 0.0, %v3117
      %v3119 = vpop.f32.mrf.mxu0
      %v3120 = vadd.f32 0.0, %v3119
      %3121 = vmatmul.bf16.gmra.mxu0 %v3082
      %v3122 = vpop.f32.mrf.mxu0
      %v3123 = vadd.f32 0.0, %v3122
      %v3124 = vpop.f32.mrf.mxu0
      %v3125 = vadd.f32 0.0, %v3124
      %3126 = vmatmul.bf16.gmra.mxu0 %v3085
      %v3127 = vpop.f32.mrf.mxu0
      %v3128 = vadd.f32 0.0, %v3127
      %v3129 = vpop.f32.mrf.mxu0
      %v3130 = vadd.f32 0.0, %v3129
      %3131 = vmatmul.bf16.gmra.mxu0 %v3088
      %v3132 = vpop.f32.mrf.mxu0
      %v3133 = vadd.f32 0.0, %v3132
      %v3134 = vpop.f32.mrf.mxu0
      %v3135 = vadd.f32 0.0, %v3134
      %3136 = vmatmul.bf16.gmra.mxu0 %v3091
      %v3137 = vpop.f32.mrf.mxu0
      %v3138 = vadd.f32 0.0, %v3137
      %v3139 = vpop.f32.mrf.mxu0
      %v3140 = vadd.f32 0.0, %v3139
      %3141 = vmatmul.bf16.gmra.mxu0 %v3094
      %v3142 = vpop.f32.mrf.mxu0
      %v3143 = vadd.f32 0.0, %v3142
      %v3144 = vpop.f32.mrf.mxu0
      %v3145 = vadd.f32 0.0, %v3144
      %3146 = vmatmul.bf16.gmra.mxu0 %v3097
      %v3147 = vpop.f32.mrf.mxu0
      %v3148 = vadd.f32 0.0, %v3147
      %v3149 = vpop.f32.mrf.mxu0
      %v3150 = vadd.f32 0.0, %v3149
      %3151 = vmatmul.bf16.gmra.mxu0 %v3100
      %v3152 = vpop.f32.mrf.mxu0
      %v3153 = vadd.f32 0.0, %v3152
      %v3154 = vpop.f32.mrf.mxu0
      %v3155 = vadd.f32 0.0, %v3154
      %3156 = vmatmul.bf16.gmra.mxu0 %v3103
      %v3157 = vpop.f32.mrf.mxu0
      %v3158 = vadd.f32 0.0, %v3157
      %v3159 = vpop.f32.mrf.mxu0
      %v3160 = vadd.f32 0.0, %v3159
      %3161 = vmatmul.bf16.gmra.mxu0 %v3106
      %v3162 = vpop.f32.mrf.mxu0
      %v3163 = vadd.f32 0.0, %v3162
      %v3164 = vpop.f32.mrf.mxu0
      %v3165 = vadd.f32 0.0, %v3164
      %3166 = vdwg.mxu0
      %v3167 = vadd.f32 %v2725, %v3118
      %v3168 = vadd.f32 %v2726, %v3120
      %v3169 = vadd.f32 %v2727, %v3123
      %v3170 = vadd.f32 %v2728, %v3125
      %v3171 = vadd.f32 %v2729, %v3128
      %v3172 = vadd.f32 %v2730, %v3130
      %v3173 = vadd.f32 %v2731, %v3133
      %v3174 = vadd.f32 %v2732, %v3135
      %v3175 = vadd.f32 %v2733, %v3138
      %v3176 = vadd.f32 %v2734, %v3140
      %v3177 = vadd.f32 %v2735, %v3143
      %v3178 = vadd.f32 %v2736, %v3145
      %v3179 = vadd.f32 %v2737, %v3148
      %v3180 = vadd.f32 %v2738, %v3150
      %v3181 = vadd.f32 %v2739, %v3153
      %v3182 = vadd.f32 %v2740, %v3155
      %v3183 = vadd.f32 %v2741, %v3158
      %v3184 = vadd.f32 %v2742, %v3160
      %v3185 = vadd.f32 %v2743, %v3163
      %v3186 = vadd.f32 %v2744, %v3165
      %v3187 = vld [vmem:[%s508] sm:$0xe]
      %v3188 = vld [vmem:[%s508 + $0xc] sm:$0xe]
      %v3189 = vld [vmem:[%s508 + $0x18] sm:$0xe]
      %v3190 = vld [vmem:[%s508 + $0x24] sm:$0xe]
      %v3191 = vld [vmem:[%s508 + $0x30] sm:$0xe]
      %v3192 = vld [vmem:[%s508 + $0x3c] sm:$0xe]
      %v3193 = vld [vmem:[%s508 + $0x48] sm:$0xe]
      %v3194 = vld [vmem:[%s508 + $0x54] sm:$0xe]
      %v3195 = vld [vmem:[%s508 + $0x60] sm:$0xe]
      %v3196 = vld [vmem:[%s508 + $0x6c] sm:$0xe]
      %v3227 = vrot.slane %v3187, 5
      %v3228 = vrot.slane %v3227, 4
      %v3229 = vrot.slane %v2746, 5
      %v3230 = vsel %vm1353, %v3228, %v3229
      %v3231 = vrot.slane %v3229, 4
      %v3232 = vrot.slane %v2747, 5
      %v3233 = vsel %vm1353, %v3231, %v3232
      %v3234 = vrot.slane %v3188, 5
      %v3235 = vrot.slane %v3234, 4
      %v3236 = vrot.slane %v2749, 5
      %v3237 = vsel %vm1353, %v3235, %v3236
      %v3238 = vrot.slane %v3236, 4
      %v3239 = vrot.slane %v2750, 5
      %v3240 = vsel %vm1353, %v3238, %v3239
      %v3241 = vrot.slane %v3189, 5
      %v3242 = vrot.slane %v3241, 4
      %v3243 = vrot.slane %v2752, 5
      %v3244 = vsel %vm1353, %v3242, %v3243
      %v3245 = vrot.slane %v3243, 4
      %v3246 = vrot.slane %v2753, 5
      %v3247 = vsel %vm1353, %v3245, %v3246
      %v3248 = vrot.slane %v3190, 5
      %v3249 = vrot.slane %v3248, 4
      %v3250 = vrot.slane %v2755, 5
      %v3251 = vsel %vm1353, %v3249, %v3250
      %v3252 = vrot.slane %v3250, 4
      %v3253 = vrot.slane %v2756, 5
      %v3254 = vsel %vm1353, %v3252, %v3253
      %v3255 = vrot.slane %v3191, 5
      %v3256 = vrot.slane %v3255, 4
      %v3257 = vrot.slane %v2758, 5
      %v3258 = vsel %vm1353, %v3256, %v3257
      %v3259 = vrot.slane %v3257, 4
      %v3260 = vrot.slane %v2759, 5
      %v3261 = vsel %vm1353, %v3259, %v3260
      %v3262 = vrot.slane %v3192, 5
      %v3263 = vrot.slane %v3262, 4
      %v3264 = vrot.slane %v2761, 5
      %v3265 = vsel %vm1353, %v3263, %v3264
      %v3266 = vrot.slane %v3264, 4
      %v3267 = vrot.slane %v2762, 5
      %v3268 = vsel %vm1353, %v3266, %v3267
      %v3269 = vrot.slane %v3193, 5
      %v3270 = vrot.slane %v3269, 4
      %v3271 = vrot.slane %v2764, 5
      %v3272 = vsel %vm1353, %v3270, %v3271
      %v3273 = vrot.slane %v3271, 4
      %v3274 = vrot.slane %v2765, 5
      %v3275 = vsel %vm1353, %v3273, %v3274
      %v3276 = vrot.slane %v3194, 5
      %v3277 = vrot.slane %v3276, 4
      %v3278 = vrot.slane %v2767, 5
      %v3279 = vsel %vm1353, %v3277, %v3278
      %v3280 = vrot.slane %v3278, 4
      %v3281 = vrot.slane %v2768, 5
      %v3282 = vsel %vm1353, %v3280, %v3281
      %v3283 = vrot.slane %v3195, 5
      %v3284 = vrot.slane %v3283, 4
      %v3285 = vrot.slane %v2770, 5
      %v3286 = vsel %vm1353, %v3284, %v3285
      %v3287 = vrot.slane %v3285, 4
      %v3288 = vrot.slane %v2771, 5
      %v3289 = vsel %vm1353, %v3287, %v3288
      %v3290 = vrot.slane %v3196, 5
      %v3291 = vrot.slane %v3290, 4
      %v3292 = vrot.slane %v2773, 5
      %v3293 = vsel %vm1353, %v3291, %v3292
      %v3294 = vrot.slane %v3292, 4
      %v3295 = vrot.slane %v2774, 5
      %v3296 = vsel %vm1353, %v3294, %v3295
      %s3297 = scalar_lea.vmem %s1, 256
      %v3298 = vld [vmem:[%s3297] sm:$0xf]
      %v3299 = vld [vmem:[%s3297 + $0x4] sm:$0xf]
      %v3300 = vld [vmem:[%s3297 + $0x8] sm:$0xf]
      %v3301 = vld [vmem:[%s3297 + $0xc] sm:$0xf]
      %v3302 = vld [vmem:[%s3297 + $0x10] sm:$0xf]
      %v3303 = vld [vmem:[%s3297 + $0x14] sm:$0xf]
      %v3304 = vld [vmem:[%s3297 + $0x18] sm:$0xf]
      %v3305 = vld [vmem:[%s3297 + $0x1c] sm:$0xf]
      %v3306 = vunpack.c.l.b16 %v3230
      %v3307 = vunpack.c.l.b16 %v3233
      %v3308 = vunpack.c.l.b16 %v3237
      %v3309 = vunpack.c.l.b16 %v3240
      %v3310 = vunpack.c.l.b16 %v3244
      %v3311 = vunpack.c.l.b16 %v3247
      %v3312 = vunpack.c.l.b16 %v3251
      %v3313 = vunpack.c.l.b16 %v3254
      %v3314 = vunpack.c.l.b16 %v3258
      %v3315 = vunpack.c.l.b16 %v3261
      %v3316 = vunpack.c.l.b16 %v3265
      %v3317 = vunpack.c.l.b16 %v3268
      %v3318 = vunpack.c.l.b16 %v3272
      %v3319 = vunpack.c.l.b16 %v3275
      %v3320 = vunpack.c.l.b16 %v3279
      %v3321 = vunpack.c.l.b16 %v3282
      %v3322 = vunpack.c.l.b16 %v3286
      %v3323 = vunpack.c.l.b16 %v3289
      %v3324 = vunpack.c.l.b16 %v3293
      %v3325 = vunpack.c.l.b16 %v3296
      %v3326 = vpack.c.b16 %v3307, %v3306
      %v3327 = vpack.c.b16 %v3309, %v3308
      %v3328 = vpack.c.b16 %v3311, %v3310
      %v3329 = vpack.c.b16 %v3313, %v3312
      %v3330 = vpack.c.b16 %v3315, %v3314
      %v3331 = vpack.c.b16 %v3317, %v3316
      %v3332 = vpack.c.b16 %v3319, %v3318
      %v3333 = vpack.c.b16 %v3321, %v3320
      %v3334 = vpack.c.b16 %v3323, %v3322
      %v3335 = vpack.c.b16 %v3325, %v3324
      %v3344 = vunpack.c.l.b16 %v3298
      %v3345 = vunpack.c.l.b16 %v3299
      %v3346 = vunpack.c.l.b16 %v3300
      %v3347 = vunpack.c.l.b16 %v3301
      %v3348 = vunpack.c.l.b16 %v3302
      %v3349 = vunpack.c.l.b16 %v3303
      %v3350 = vunpack.c.l.b16 %v3304
      %v3351 = vunpack.c.l.b16 %v3305
      %v3352 = vpack.c.b16 %v3345, %v3344
      %v3353 = vpack.c.b16 %v3347, %v3346
      %v3354 = vpack.c.b16 %v3349, %v3348
      %v3355 = vpack.c.b16 %v3351, %v3350
      %v3361 = vsel %vm1068, %v3326, 0
      %v3364 = vsel %vm1068, %v3327, 0
      %v3367 = vsel %vm1068, %v3328, 0
      %v3370 = vsel %vm1068, %v3329, 0
      %v3373 = vsel %vm1068, %v3330, 0
      %v3376 = vsel %vm1068, %v3331, 0
      %v3379 = vsel %vm1068, %v3332, 0
      %v3382 = vsel %vm1068, %v3333, 0
      %v3385 = vsel %vm1068, %v3334, 0
      %v3388 = vsel %vm1068, %v3335, 0
      %3390 = vmatpush.bf16.msra.mxu0 0
      %3391 = vmatpush.bf16.msra.mxu0 0
      %3392 = vmatpush.bf16.msra.mxu0 0
      %3393 = vmatpush.bf16.msra.mxu0 0
      %3394 = vmatpush.bf16.msra.mxu0 %v3355
      %3395 = vmatpush.bf16.msra.mxu0 %v3354
      %3396 = vmatpush.bf16.msra.mxu0 %v3353
      %3397 = vmatpush.bf16.msra.mxu0 %v3352
      %3398 = vmatmul.bf16.gmra.mxu0 %v3361
      %v3399 = vpop.f32.mrf.mxu0
      %v3400 = vadd.f32 0.0, %v3399
      %v3401 = vpop.f32.mrf.mxu0
      %v3402 = vadd.f32 0.0, %v3401
      %3403 = vmatmul.bf16.gmra.mxu0 %v3364
      %v3404 = vpop.f32.mrf.mxu0
      %v3405 = vadd.f32 0.0, %v3404
      %v3406 = vpop.f32.mrf.mxu0
      %v3407 = vadd.f32 0.0, %v3406
      %3408 = vmatmul.bf16.gmra.mxu0 %v3367
      %v3409 = vpop.f32.mrf.mxu0
      %v3410 = vadd.f32 0.0, %v3409
      %v3411 = vpop.f32.mrf.mxu0
      %v3412 = vadd.f32 0.0, %v3411
      %3413 = vmatmul.bf16.gmra.mxu0 %v3370
      %v3414 = vpop.f32.mrf.mxu0
      %v3415 = vadd.f32 0.0, %v3414
      %v3416 = vpop.f32.mrf.mxu0
      %v3417 = vadd.f32 0.0, %v3416
      %3418 = vmatmul.bf16.gmra.mxu0 %v3373
      %v3419 = vpop.f32.mrf.mxu0
      %v3420 = vadd.f32 0.0, %v3419
      %v3421 = vpop.f32.mrf.mxu0
      %v3422 = vadd.f32 0.0, %v3421
      %3423 = vmatmul.bf16.gmra.mxu0 %v3376
      %v3424 = vpop.f32.mrf.mxu0
      %v3425 = vadd.f32 0.0, %v3424
      %v3426 = vpop.f32.mrf.mxu0
      %v3427 = vadd.f32 0.0, %v3426
      %3428 = vmatmul.bf16.gmra.mxu0 %v3379
      %v3429 = vpop.f32.mrf.mxu0
      %v3430 = vadd.f32 0.0, %v3429
      %v3431 = vpop.f32.mrf.mxu0
      %v3432 = vadd.f32 0.0, %v3431
      %3433 = vmatmul.bf16.gmra.mxu0 %v3382
      %v3434 = vpop.f32.mrf.mxu0
      %v3435 = vadd.f32 0.0, %v3434
      %v3436 = vpop.f32.mrf.mxu0
      %v3437 = vadd.f32 0.0, %v3436
      %3438 = vmatmul.bf16.gmra.mxu0 %v3385
      %v3439 = vpop.f32.mrf.mxu0
      %v3440 = vadd.f32 0.0, %v3439
      %v3441 = vpop.f32.mrf.mxu0
      %v3442 = vadd.f32 0.0, %v3441
      %3443 = vmatmul.bf16.gmra.mxu0 %v3388
      %v3444 = vpop.f32.mrf.mxu0
      %v3445 = vadd.f32 0.0, %v3444
      %v3446 = vpop.f32.mrf.mxu0
      %v3447 = vadd.f32 0.0, %v3446
      %3448 = vdwg.mxu0
      %v3449 = vadd.f32 %v3167, %v3400
      %v3450 = vadd.f32 %v3168, %v3402
      %v3451 = vadd.f32 %v3169, %v3405
      %v3452 = vadd.f32 %v3170, %v3407
      %v3453 = vadd.f32 %v3171, %v3410
      %v3454 = vadd.f32 %v3172, %v3412
      %v3455 = vadd.f32 %v3173, %v3415
      %v3456 = vadd.f32 %v3174, %v3417
      %v3457 = vadd.f32 %v3175, %v3420
      %v3458 = vadd.f32 %v3176, %v3422
      %v3459 = vadd.f32 %v3177, %v3425
      %v3460 = vadd.f32 %v3178, %v3427
      %v3461 = vadd.f32 %v3179, %v3430
      %v3462 = vadd.f32 %v3180, %v3432
      %v3463 = vadd.f32 %v3181, %v3435
      %v3464 = vadd.f32 %v3182, %v3437
      %v3465 = vadd.f32 %v3183, %v3440
      %v3466 = vadd.f32 %v3184, %v3442
      %v3467 = vadd.f32 %v3185, %v3445
      %v3468 = vadd.f32 %v3186, %v3447
      %v3469 = vld [vmem:[%s2] sm:$0x1]
      %v3471 = vperm.slane %v3469, 0
      %v3473 = vadd.f32 %v3449, %v3471
      %v3474 = vadd.f32 %v3450, %v3471
      %v3475 = vadd.f32 %v3451, %v3471
      %v3476 = vadd.f32 %v3452, %v3471
      %v3477 = vadd.f32 %v3453, %v3471
      %v3478 = vadd.f32 %v3454, %v3471
      %v3479 = vadd.f32 %v3455, %v3471
      %v3480 = vadd.f32 %v3456, %v3471
      %v3481 = vadd.f32 %v3457, %v3471
      %v3482 = vadd.f32 %v3458, %v3471
      %v3483 = vadd.f32 %v3459, %v3471
      %v3484 = vadd.f32 %v3460, %v3471
      %v3485 = vadd.f32 %v3461, %v3471
      %v3486 = vadd.f32 %v3462, %v3471
      %v3487 = vadd.f32 %v3463, %v3471
      %v3488 = vadd.f32 %v3464, %v3471
      %v3489 = vadd.f32 %v3465, %v3471
      %v3490 = vadd.f32 %v3466, %v3471
      %v3491 = vadd.f32 %v3467, %v3471
      %v3492 = vadd.f32 %v3468, %v3471
      %v3493 = vmax.f32 %v3473, 0.0
      %v3494 = vmax.f32 %v3474, 0.0
      %v3495 = vmax.f32 %v3475, 0.0
      %v3496 = vmax.f32 %v3476, 0.0
      %v3497 = vmax.f32 %v3477, 0.0
      %v3498 = vmax.f32 %v3478, 0.0
      %v3499 = vmax.f32 %v3479, 0.0
      %v3500 = vmax.f32 %v3480, 0.0
      %v3501 = vmax.f32 %v3481, 0.0
      %v3502 = vmax.f32 %v3482, 0.0
      %v3503 = vmax.f32 %v3483, 0.0
      %v3504 = vmax.f32 %v3484, 0.0
      %v3505 = vmax.f32 %v3485, 0.0
      %v3506 = vmax.f32 %v3486, 0.0
      %v3507 = vmax.f32 %v3487, 0.0
      %v3508 = vmax.f32 %v3488, 0.0
      %v3509 = vmax.f32 %v3489, 0.0
      %v3510 = vmax.f32 %v3490, 0.0
      %v3511 = vmax.f32 %v3491, 0.0
      %v3512 = vmax.f32 %v3492, 0.0
      %v3513 = vld [vmem:[#allocation3] sm:$0x1]
      %v3514 = vsel %vm252, 0, %v3513
      %3515 = vst [vmem:[#allocation3] sm:$0x1] %v3514
      %v3516 = vld [vmem:[#allocation3 + $0xc] sm:$0x1]
      %v3517 = vsel %vm252, 0, %v3516
      %3518 = vst [vmem:[#allocation3 + $0xc] sm:$0x1] %v3517
      %v3519 = vld [vmem:[#allocation3 + $0x18] sm:$0x1]
      %v3520 = vsel %vm252, 0, %v3519
      %3521 = vst [vmem:[#allocation3 + $0x18] sm:$0x1] %v3520
      %v3522 = vld [vmem:[#allocation3 + $0x24] sm:$0x1]
      %v3523 = vsel %vm252, 0, %v3522
      %3524 = vst [vmem:[#allocation3 + $0x24] sm:$0x1] %v3523
      %v3525 = vld [vmem:[#allocation3 + $0x30] sm:$0x1]
      %v3526 = vsel %vm252, 0, %v3525
      %3527 = vst [vmem:[#allocation3 + $0x30] sm:$0x1] %v3526
      %v3528 = vld [vmem:[#allocation3 + $0x3c] sm:$0x1]
      %v3529 = vsel %vm252, 0, %v3528
      %3530 = vst [vmem:[#allocation3 + $0x3c] sm:$0x1] %v3529
      %v3531 = vld [vmem:[#allocation3 + $0x48] sm:$0x1]
      %v3532 = vsel %vm252, 0, %v3531
      %3533 = vst [vmem:[#allocation3 + $0x48] sm:$0x1] %v3532
      %v3534 = vld [vmem:[#allocation3 + $0x54] sm:$0x1]
      %v3535 = vsel %vm252, 0, %v3534
      %3536 = vst [vmem:[#allocation3 + $0x54] sm:$0x1] %v3535
      %v3537 = vld [vmem:[#allocation3 + $0x60] sm:$0x1]
      %v3538 = vsel %vm252, 0, %v3537
      %3539 = vst [vmem:[#allocation3 + $0x60] sm:$0x1] %v3538
      %v3540 = vld [vmem:[#allocation3 + $0x6c] sm:$0x1]
      %v3541 = vsel %vm252, 0, %v3540
      %3542 = vst [vmem:[#allocation3 + $0x6c] sm:$0x1] %v3541
      %v3543 = vld [vmem:[#allocation3 + $0x8] sm:$0x1]
      %v3544 = vsel %vm290, 0, %v3543
      %3545 = vst [vmem:[#allocation3 + $0x8] sm:$0x1] %v3544
      %v3546 = vld [vmem:[#allocation3 + $0x14] sm:$0x1]
      %v3547 = vsel %vm290, 0, %v3546
      %3548 = vst [vmem:[#allocation3 + $0x14] sm:$0x1] %v3547
      %v3549 = vld [vmem:[#allocation3 + $0x20] sm:$0x1]
      %v3550 = vsel %vm290, 0, %v3549
      %3551 = vst [vmem:[#allocation3 + $0x20] sm:$0x1] %v3550
      %v3552 = vld [vmem:[#allocation3 + $0x2c] sm:$0x1]
      %v3553 = vsel %vm290, 0, %v3552
      %3554 = vst [vmem:[#allocation3 + $0x2c] sm:$0x1] %v3553
      %v3555 = vld [vmem:[#allocation3 + $0x38] sm:$0x1]
      %v3556 = vsel %vm290, 0, %v3555
      %3557 = vst [vmem:[#allocation3 + $0x38] sm:$0x1] %v3556
      %v3558 = vld [vmem:[#allocation3 + $0x44] sm:$0x1]
      %v3559 = vsel %vm290, 0, %v3558
      %3560 = vst [vmem:[#allocation3 + $0x44] sm:$0x1] %v3559
      %v3561 = vld [vmem:[#allocation3 + $0x50] sm:$0x1]
      %v3562 = vsel %vm290, 0, %v3561
      %3563 = vst [vmem:[#allocation3 + $0x50] sm:$0x1] %v3562
      %v3564 = vld [vmem:[#allocation3 + $0x5c] sm:$0x1]
      %v3565 = vsel %vm290, 0, %v3564
      %3566 = vst [vmem:[#allocation3 + $0x5c] sm:$0x1] %v3565
      %v3567 = vld [vmem:[#allocation3 + $0x68] sm:$0x1]
      %v3568 = vsel %vm290, 0, %v3567
      %3569 = vst [vmem:[#allocation3 + $0x68] sm:$0x1] %v3568
      %v3570 = vld [vmem:[#allocation3 + $0x74] sm:$0x1]
      %v3571 = vsel %vm290, 0, %v3570
      %3572 = vst [vmem:[#allocation3 + $0x74] sm:$0x1] %v3571
      %v3573 = vpack.c.bf16 %v3493, %v3493
      %v3574 = vpack.c.bf16 %v3494, %v3494
      %v3575 = vpack.c.bf16 %v3495, %v3495
      %v3576 = vpack.c.bf16 %v3496, %v3496
      %v3577 = vpack.c.bf16 %v3497, %v3497
      %v3578 = vpack.c.bf16 %v3498, %v3498
      %v3579 = vpack.c.bf16 %v3499, %v3499
      %v3580 = vpack.c.bf16 %v3500, %v3500
      %v3581 = vpack.c.bf16 %v3501, %v3501
      %v3582 = vpack.c.bf16 %v3502, %v3502
      %v3583 = vpack.c.bf16 %v3503, %v3503
      %v3584 = vpack.c.bf16 %v3504, %v3504
      %v3585 = vpack.c.bf16 %v3505, %v3505
      %v3586 = vpack.c.bf16 %v3506, %v3506
      %v3587 = vpack.c.bf16 %v3507, %v3507
      %v3588 = vpack.c.bf16 %v3508, %v3508
      %v3589 = vpack.c.bf16 %v3509, %v3509
      %v3590 = vpack.c.bf16 %v3510, %v3510
      %v3591 = vpack.c.bf16 %v3511, %v3511
      %v3592 = vpack.c.bf16 %v3512, %v3512
      %v3594 = vshrl.u32 %v3573, 16
      %v3596 = vrot.slane %v3594, 7
      %v3597 = vshll.u32 %v3573, 16
      %v3599 = vor.u32 %v3596, %v3597
      %v3600 = vrot.slane %v3596, 4
      %v3602 = vshrl.u32 %v3574, 16
      %v3604 = vrot.slane %v3602, 7
      %v3605 = vshll.u32 %v3574, 16
      %v3607 = vor.u32 %v3604, %v3605
      %v3608 = vsel %vm347, %v3600, %v3607
      %v3609 = vrot.slane %v3604, 4
      %v3611 = vshrl.u32 %v3575, 16
      %v3613 = vrot.slane %v3611, 7
      %v3614 = vshll.u32 %v3575, 16
      %v3616 = vor.u32 %v3613, %v3614
      %v3617 = vrot.slane %v3613, 4
      %v3619 = vshrl.u32 %v3576, 16
      %v3621 = vrot.slane %v3619, 7
      %v3622 = vshll.u32 %v3576, 16
      %v3624 = vor.u32 %v3621, %v3622
      %v3625 = vsel %vm347, %v3617, %v3624
      %v3626 = vrot.slane %v3621, 4
      %v3628 = vshrl.u32 %v3577, 16
      %v3630 = vrot.slane %v3628, 7
      %v3631 = vshll.u32 %v3577, 16
      %v3633 = vor.u32 %v3630, %v3631
      %v3634 = vrot.slane %v3630, 4
      %v3636 = vshrl.u32 %v3578, 16
      %v3638 = vrot.slane %v3636, 7
      %v3639 = vshll.u32 %v3578, 16
      %v3641 = vor.u32 %v3638, %v3639
      %v3642 = vsel %vm347, %v3634, %v3641
      %v3643 = vrot.slane %v3638, 4
      %v3645 = vshrl.u32 %v3579, 16
      %v3647 = vrot.slane %v3645, 7
      %v3648 = vshll.u32 %v3579, 16
      %v3650 = vor.u32 %v3647, %v3648
      %v3651 = vrot.slane %v3647, 4
      %v3653 = vshrl.u32 %v3580, 16
      %v3655 = vrot.slane %v3653, 7
      %v3656 = vshll.u32 %v3580, 16
      %v3658 = vor.u32 %v3655, %v3656
      %v3659 = vsel %vm347, %v3651, %v3658
      %v3660 = vrot.slane %v3655, 4
      %v3662 = vshrl.u32 %v3581, 16
      %v3664 = vrot.slane %v3662, 7
      %v3665 = vshll.u32 %v3581, 16
      %v3667 = vor.u32 %v3664, %v3665
      %v3668 = vrot.slane %v3664, 4
      %v3670 = vshrl.u32 %v3582, 16
      %v3672 = vrot.slane %v3670, 7
      %v3673 = vshll.u32 %v3582, 16
      %v3675 = vor.u32 %v3672, %v3673
      %v3676 = vsel %vm347, %v3668, %v3675
      %v3677 = vrot.slane %v3672, 4
      %v3679 = vshrl.u32 %v3583, 16
      %v3681 = vrot.slane %v3679, 7
      %v3682 = vshll.u32 %v3583, 16
      %v3684 = vor.u32 %v3681, %v3682
      %v3685 = vrot.slane %v3681, 4
      %v3687 = vshrl.u32 %v3584, 16
      %v3689 = vrot.slane %v3687, 7
      %v3690 = vshll.u32 %v3584, 16
      %v3692 = vor.u32 %v3689, %v3690
      %v3693 = vsel %vm347, %v3685, %v3692
      %v3694 = vrot.slane %v3689, 4
      %v3696 = vshrl.u32 %v3585, 16
      %v3698 = vrot.slane %v3696, 7
      %v3699 = vshll.u32 %v3585, 16
      %v3701 = vor.u32 %v3698, %v3699
      %v3702 = vrot.slane %v3698, 4
      %v3704 = vshrl.u32 %v3586, 16
      %v3706 = vrot.slane %v3704, 7
      %v3707 = vshll.u32 %v3586, 16
      %v3709 = vor.u32 %v3706, %v3707
      %v3710 = vsel %vm347, %v3702, %v3709
      %v3711 = vrot.slane %v3706, 4
      %v3713 = vshrl.u32 %v3587, 16
      %v3715 = vrot.slane %v3713, 7
      %v3716 = vshll.u32 %v3587, 16
      %v3718 = vor.u32 %v3715, %v3716
      %v3719 = vrot.slane %v3715, 4
      %v3721 = vshrl.u32 %v3588, 16
      %v3723 = vrot.slane %v3721, 7
      %v3724 = vshll.u32 %v3588, 16
      %v3726 = vor.u32 %v3723, %v3724
      %v3727 = vsel %vm347, %v3719, %v3726
      %v3728 = vrot.slane %v3723, 4
      %v3730 = vshrl.u32 %v3589, 16
      %v3732 = vrot.slane %v3730, 7
      %v3733 = vshll.u32 %v3589, 16
      %v3735 = vor.u32 %v3732, %v3733
      %v3736 = vrot.slane %v3732, 4
      %v3738 = vshrl.u32 %v3590, 16
      %v3740 = vrot.slane %v3738, 7
      %v3741 = vshll.u32 %v3590, 16
      %v3743 = vor.u32 %v3740, %v3741
      %v3744 = vsel %vm347, %v3736, %v3743
      %v3745 = vrot.slane %v3740, 4
      %v3747 = vshrl.u32 %v3591, 16
      %v3749 = vrot.slane %v3747, 7
      %v3750 = vshll.u32 %v3591, 16
      %v3752 = vor.u32 %v3749, %v3750
      %v3753 = vrot.slane %v3749, 4
      %v3755 = vshrl.u32 %v3592, 16
      %v3757 = vrot.slane %v3755, 7
      %v3758 = vshll.u32 %v3592, 16
      %v3760 = vor.u32 %v3757, %v3758
      %v3761 = vsel %vm347, %v3753, %v3760
      %v3762 = vrot.slane %v3757, 4
      %v3793 = vld [vmem:[#allocation3] sm:$0xf]
      %v3794 = vsel %vm510, %v3599, %v3793
      %3795 = vst [vmem:[#allocation3] sm:$0xf] %v3794
      %3796 = vst.msk [vmem:[#allocation3 + $0x4] sm:$0xf] %vm514, %v3608
      %v3797 = vld [vmem:[#allocation3 + $0x8] sm:$0x1]
      %v3798 = vsel %vm252, %v3609, %v3797
      %3799 = vst [vmem:[#allocation3 + $0x8] sm:$0x1] %v3798
      %v3800 = vld [vmem:[#allocation3 + $0xc] sm:$0xf]
      %v3801 = vsel %vm510, %v3616, %v3800
      %3802 = vst [vmem:[#allocation3 + $0xc] sm:$0xf] %v3801
      %3803 = vst.msk [vmem:[#allocation3 + $0x10] sm:$0xf] %vm514, %v3625
      %v3804 = vld [vmem:[#allocation3 + $0x14] sm:$0x1]
      %v3805 = vsel %vm252, %v3626, %v3804
      %3806 = vst [vmem:[#allocation3 + $0x14] sm:$0x1] %v3805
      %v3807 = vld [vmem:[#allocation3 + $0x18] sm:$0xf]
      %v3808 = vsel %vm510, %v3633, %v3807
      %3809 = vst [vmem:[#allocation3 + $0x18] sm:$0xf] %v3808
      %3810 = vst.msk [vmem:[#allocation3 + $0x1c] sm:$0xf] %vm514, %v3642
      %v3811 = vld [vmem:[#allocation3 + $0x20] sm:$0x1]
      %v3812 = vsel %vm252, %v3643, %v3811
      %3813 = vst [vmem:[#allocation3 + $0x20] sm:$0x1] %v3812
      %v3814 = vld [vmem:[#allocation3 + $0x24] sm:$0xf]
      %v3815 = vsel %vm510, %v3650, %v3814
      %3816 = vst [vmem:[#allocation3 + $0x24] sm:$0xf] %v3815
      %3817 = vst.msk [vmem:[#allocation3 + $0x28] sm:$0xf] %vm514, %v3659
      %v3818 = vld [vmem:[#allocation3 + $0x2c] sm:$0x1]
      %v3819 = vsel %vm252, %v3660, %v3818
      %3820 = vst [vmem:[#allocation3 + $0x2c] sm:$0x1] %v3819
      %v3821 = vld [vmem:[#allocation3 + $0x30] sm:$0xf]
      %v3822 = vsel %vm510, %v3667, %v3821
      %3823 = vst [vmem:[#allocation3 + $0x30] sm:$0xf] %v3822
      %3824 = vst.msk [vmem:[#allocation3 + $0x34] sm:$0xf] %vm514, %v3676
      %v3825 = vld [vmem:[#allocation3 + $0x38] sm:$0x1]
      %v3826 = vsel %vm252, %v3677, %v3825
      %3827 = vst [vmem:[#allocation3 + $0x38] sm:$0x1] %v3826
      %v3828 = vld [vmem:[#allocation3 + $0x3c] sm:$0xf]
      %v3829 = vsel %vm510, %v3684, %v3828
      %3830 = vst [vmem:[#allocation3 + $0x3c] sm:$0xf] %v3829
      %3831 = vst.msk [vmem:[#allocation3 + $0x40] sm:$0xf] %vm514, %v3693
      %v3832 = vld [vmem:[#allocation3 + $0x44] sm:$0x1]
      %v3833 = vsel %vm252, %v3694, %v3832
      %3834 = vst [vmem:[#allocation3 + $0x44] sm:$0x1] %v3833
      %v3835 = vld [vmem:[#allocation3 + $0x48] sm:$0xf]
      %v3836 = vsel %vm510, %v3701, %v3835
      %3837 = vst [vmem:[#allocation3 + $0x48] sm:$0xf] %v3836
      %3838 = vst.msk [vmem:[#allocation3 + $0x4c] sm:$0xf] %vm514, %v3710
      %v3839 = vld [vmem:[#allocation3 + $0x50] sm:$0x1]
      %v3840 = vsel %vm252, %v3711, %v3839
      %3841 = vst [vmem:[#allocation3 + $0x50] sm:$0x1] %v3840
      %v3842 = vld [vmem:[#allocation3 + $0x54] sm:$0xf]
      %v3843 = vsel %vm510, %v3718, %v3842
      %3844 = vst [vmem:[#allocation3 + $0x54] sm:$0xf] %v3843
      %3845 = vst.msk [vmem:[#allocation3 + $0x58] sm:$0xf] %vm514, %v3727
      %v3846 = vld [vmem:[#allocation3 + $0x5c] sm:$0x1]
      %v3847 = vsel %vm252, %v3728, %v3846
      %3848 = vst [vmem:[#allocation3 + $0x5c] sm:$0x1] %v3847
      %v3849 = vld [vmem:[#allocation3 + $0x60] sm:$0xf]
      %v3850 = vsel %vm510, %v3735, %v3849
      %3851 = vst [vmem:[#allocation3 + $0x60] sm:$0xf] %v3850
      %3852 = vst.msk [vmem:[#allocation3 + $0x64] sm:$0xf] %vm514, %v3744
      %v3853 = vld [vmem:[#allocation3 + $0x68] sm:$0x1]
      %v3854 = vsel %vm252, %v3745, %v3853
      %3855 = vst [vmem:[#allocation3 + $0x68] sm:$0x1] %v3854
      %v3856 = vld [vmem:[#allocation3 + $0x6c] sm:$0xf]
      %v3857 = vsel %vm510, %v3752, %v3856
      %3858 = vst [vmem:[#allocation3 + $0x6c] sm:$0xf] %v3857
      %3859 = vst.msk [vmem:[#allocation3 + $0x70] sm:$0xf] %vm514, %v3761
      %v3860 = vld [vmem:[#allocation3 + $0x74] sm:$0x1]
      %v3861 = vsel %vm252, %v3762, %v3860
      %3862 = vst [vmem:[#allocation3 + $0x74] sm:$0x1] %v3861
      // Predicated region
      $region57: #{plain_cnn_forward.1} parent=39 // pred_check
        %p3863 = pneg %p634
      $region58: #{plain_cnn_forward.1} parent=39 // pred_check_branch
        %3865 = sbr.rel (%p3863) target = $region60
      $region59: #{plain_cnn_forward.1} parent=39 // pred_region
        %3866 = vst.msk [vmem:[#allocation3] sm:$0xf] %vm514, 0
        %3867 = vst.msk [vmem:[#allocation3 + $0x4] sm:$0xf] %vm514, 0
        %vm3868 = vcmask 516096
        %3869 = vst.msk [vmem:[#allocation3 + $0x8] sm:$0x1] %vm3868, 0
      $region60: #{plain_cnn_forward.1} parent=39 // pred_fallthru
        _
      // Predicated region
      $region61: #{plain_cnn_forward.1} parent=39 // pred_check
        %p3870 = pneg %p712
      $region62: #{plain_cnn_forward.1} parent=39 // pred_check_branch
        %3872 = sbr.rel (%p3870) target = $region64
      $region63: #{plain_cnn_forward.1} parent=39 // pred_region
        %s3873 = scalar_lea.vmem [#allocation3], 108
        %3874 = vst.msk [vmem:[%s3873] sm:$0xf] %vm514, 0
        %3875 = vst.msk [vmem:[%s3873 + $0x4] sm:$0xf] %vm514, 0
        %vm3876 = vcmask 516096
        %3877 = vst.msk [vmem:[%s3873 + $0x8] sm:$0x1] %vm3876, 0
      $region64: #{plain_cnn_forward.1} parent=39 // pred_fallthru
        _
      %v3878 = vld [vmem:[#allocation3] sm:$0xf]
      %v3879 = vld [vmem:[#allocation3 + $0x4] sm:$0xf]
      %v3880 = vld [vmem:[#allocation3 + $0xc] sm:$0xf]
      %v3881 = vld [vmem:[#allocation3 + $0x10] sm:$0xf]
      %v3882 = vld [vmem:[#allocation3 + $0x18] sm:$0xf]
      %v3883 = vld [vmem:[#allocation3 + $0x1c] sm:$0xf]
      %v3884 = vld [vmem:[#allocation3 + $0x24] sm:$0xf]
      %v3885 = vld [vmem:[#allocation3 + $0x28] sm:$0xf]
      %v3886 = vld [vmem:[#allocation3 + $0x30] sm:$0xf]
      %v3887 = vld [vmem:[#allocation3 + $0x34] sm:$0xf]
      %v3888 = vld [vmem:[#allocation3 + $0x3c] sm:$0xf]
      %v3889 = vld [vmem:[#allocation3 + $0x40] sm:$0xf]
      %v3890 = vld [vmem:[#allocation3 + $0x48] sm:$0xf]
      %v3891 = vld [vmem:[#allocation3 + $0x4c] sm:$0xf]
      %v3892 = vld [vmem:[#allocation3 + $0x54] sm:$0xf]
      %v3893 = vld [vmem:[#allocation3 + $0x58] sm:$0xf]
      %v3894 = vld [vmem:[%s3] sm:$0xf]
      %v3895 = vld [vmem:[%s3 + $0x4] sm:$0xf]
      %v3896 = vld [vmem:[%s3 + $0x8] sm:$0xf]
      %v3897 = vld [vmem:[%s3 + $0xc] sm:$0xf]
      %v3898 = vld [vmem:[%s3 + $0x10] sm:$0xf]
      %v3899 = vld [vmem:[%s3 + $0x14] sm:$0xf]
      %v3900 = vld [vmem:[%s3 + $0x18] sm:$0xf]
      %v3901 = vld [vmem:[%s3 + $0x1c] sm:$0xf]
      %v3902 = vld [vmem:[#allocation3 + $0x8] sm:$0x1]
      %v3903 = vld [vmem:[#allocation3 + $0x14] sm:$0x1]
      %v3904 = vld [vmem:[#allocation3 + $0x20] sm:$0x1]
      %v3905 = vld [vmem:[#allocation3 + $0x2c] sm:$0x1]
      %v3906 = vld [vmem:[#allocation3 + $0x38] sm:$0x1]
      %v3907 = vld [vmem:[#allocation3 + $0x44] sm:$0x1]
      %v3908 = vld [vmem:[#allocation3 + $0x50] sm:$0x1]
      %v3909 = vld [vmem:[#allocation3 + $0x5c] sm:$0x1]
      %v3911 = vshrl.u32 %v3878, 16
      %v3913 = vrot.slane %v3911, 4
      %v3914 = vshll.u32 %v3878, 16
      %v3916 = vrot.slane %v3914, 5
      %v3917 = vor.u32 %v3913, %v3916
      %v3918 = vrot.slane %v3917, 4
      %v3920 = vshll.u32 %v3879, 16
      %v3922 = vrot.slane %v3920, 5
      %v3923 = vsel %vm764, %v3918, %v3922
      %v3924 = vshrl.u32 %v3879, 16
      %v3926 = vrot.slane %v3924, 4
      %v3927 = vor.u32 %v3926, %v3922
      %v3928 = vrot.slane %v3927, 4
      %v3930 = vshll.u32 %v3902, 16
      %v3932 = vrot.slane %v3930, 5
      %v3933 = vsel %vm764, %v3928, %v3932
      %v3935 = vshrl.u32 %v3880, 16
      %v3937 = vrot.slane %v3935, 4
      %v3938 = vshll.u32 %v3880, 16
      %v3940 = vrot.slane %v3938, 5
      %v3941 = vor.u32 %v3937, %v3940
      %v3942 = vrot.slane %v3941, 4
      %v3944 = vshll.u32 %v3881, 16
      %v3946 = vrot.slane %v3944, 5
      %v3947 = vsel %vm764, %v3942, %v3946
      %v3948 = vshrl.u32 %v3881, 16
      %v3950 = vrot.slane %v3948, 4
      %v3951 = vor.u32 %v3950, %v3946
      %v3952 = vrot.slane %v3951, 4
      %v3954 = vshll.u32 %v3903, 16
      %v3956 = vrot.slane %v3954, 5
      %v3957 = vsel %vm764, %v3952, %v3956
      %v3959 = vshrl.u32 %v3882, 16
      %v3961 = vrot.slane %v3959, 4
      %v3962 = vshll.u32 %v3882, 16
      %v3964 = vrot.slane %v3962, 5
      %v3965 = vor.u32 %v3961, %v3964
      %v3966 = vrot.slane %v3965, 4
      %v3968 = vshll.u32 %v3883, 16
      %v3970 = vrot.slane %v3968, 5
      %v3971 = vsel %vm764, %v3966, %v3970
      %v3972 = vshrl.u32 %v3883, 16
      %v3974 = vrot.slane %v3972, 4
      %v3975 = vor.u32 %v3974, %v3970
      %v3976 = vrot.slane %v3975, 4
      %v3978 = vshll.u32 %v3904, 16
      %v3980 = vrot.slane %v3978, 5
      %v3981 = vsel %vm764, %v3976, %v3980
      %v3983 = vshrl.u32 %v3884, 16
      %v3985 = vrot.slane %v3983, 4
      %v3986 = vshll.u32 %v3884, 16
      %v3988 = vrot.slane %v3986, 5
      %v3989 = vor.u32 %v3985, %v3988
      %v3990 = vrot.slane %v3989, 4
      %v3992 = vshll.u32 %v3885, 16
      %v3994 = vrot.slane %v3992, 5
      %v3995 = vsel %vm764, %v3990, %v3994
      %v3996 = vshrl.u32 %v3885, 16
      %v3998 = vrot.slane %v3996, 4
      %v3999 = vor.u32 %v3998, %v3994
      %v4000 = vrot.slane %v3999, 4
      %v4002 = vshll.u32 %v3905, 16
      %v4004 = vrot.slane %v4002, 5
      %v4005 = vsel %vm764, %v4000, %v4004
      %v4007 = vshrl.u32 %v3886, 16
      %v4009 = vrot.slane %v4007, 4
      %v4010 = vshll.u32 %v3886, 16
      %v4012 = vrot.slane %v4010, 5
      %v4013 = vor.u32 %v4009, %v4012
      %v4014 = vrot.slane %v4013, 4
      %v4016 = vshll.u32 %v3887, 16
      %v4018 = vrot.slane %v4016, 5
      %v4019 = vsel %vm764, %v4014, %v4018
      %v4020 = vshrl.u32 %v3887, 16
      %v4022 = vrot.slane %v4020, 4
      %v4023 = vor.u32 %v4022, %v4018
      %v4024 = vrot.slane %v4023, 4
      %v4026 = vshll.u32 %v3906, 16
      %v4028 = vrot.slane %v4026, 5
      %v4029 = vsel %vm764, %v4024, %v4028
      %v4031 = vshrl.u32 %v3888, 16
      %v4033 = vrot.slane %v4031, 4
      %v4034 = vshll.u32 %v3888, 16
      %v4036 = vrot.slane %v4034, 5
      %v4037 = vor.u32 %v4033, %v4036
      %v4038 = vrot.slane %v4037, 4
      %v4040 = vshll.u32 %v3889, 16
      %v4042 = vrot.slane %v4040, 5
      %v4043 = vsel %vm764, %v4038, %v4042
      %v4044 = vshrl.u32 %v3889, 16
      %v4046 = vrot.slane %v4044, 4
      %v4047 = vor.u32 %v4046, %v4042
      %v4048 = vrot.slane %v4047, 4
      %v4050 = vshll.u32 %v3907, 16
      %v4052 = vrot.slane %v4050, 5
      %v4053 = vsel %vm764, %v4048, %v4052
      %v4055 = vshrl.u32 %v3890, 16
      %v4057 = vrot.slane %v4055, 4
      %v4058 = vshll.u32 %v3890, 16
      %v4060 = vrot.slane %v4058, 5
      %v4061 = vor.u32 %v4057, %v4060
      %v4062 = vrot.slane %v4061, 4
      %v4064 = vshll.u32 %v3891, 16
      %v4066 = vrot.slane %v4064, 5
      %v4067 = vsel %vm764, %v4062, %v4066
      %v4068 = vshrl.u32 %v3891, 16
      %v4070 = vrot.slane %v4068, 4
      %v4071 = vor.u32 %v4070, %v4066
      %v4072 = vrot.slane %v4071, 4
      %v4074 = vshll.u32 %v3908, 16
      %v4076 = vrot.slane %v4074, 5
      %v4077 = vsel %vm764, %v4072, %v4076
      %v4079 = vshrl.u32 %v3892, 16
      %v4081 = vrot.slane %v4079, 4
      %v4082 = vshll.u32 %v3892, 16
      %v4084 = vrot.slane %v4082, 5
      %v4085 = vor.u32 %v4081, %v4084
      %v4086 = vrot.slane %v4085, 4
      %v4088 = vshll.u32 %v3893, 16
      %v4090 = vrot.slane %v4088, 5
      %v4091 = vsel %vm764, %v4086, %v4090
      %v4092 = vshrl.u32 %v3893, 16
      %v4094 = vrot.slane %v4092, 4
      %v4095 = vor.u32 %v4094, %v4090
      %v4096 = vrot.slane %v4095, 4
      %v4098 = vshll.u32 %v3909, 16
      %v4100 = vrot.slane %v4098, 5
      %v4101 = vsel %vm764, %v4096, %v4100
      %s4102 = scalar_lea.vmem %s3, 32
      %v4103 = vld [vmem:[%s4102] sm:$0xf]
      %v4104 = vld [vmem:[%s4102 + $0x4] sm:$0xf]
      %v4105 = vld [vmem:[%s4102 + $0x8] sm:$0xf]
      %v4106 = vld [vmem:[%s4102 + $0xc] sm:$0xf]
      %v4107 = vld [vmem:[%s4102 + $0x10] sm:$0xf]
      %v4108 = vld [vmem:[%s4102 + $0x14] sm:$0xf]
      %v4109 = vld [vmem:[%s4102 + $0x18] sm:$0xf]
      %v4110 = vld [vmem:[%s4102 + $0x1c] sm:$0xf]
      %v4111 = vunpack.c.l.b16 %v3923
      %v4112 = vunpack.c.l.b16 %v3933
      %v4113 = vunpack.c.l.b16 %v3947
      %v4114 = vunpack.c.l.b16 %v3957
      %v4115 = vunpack.c.l.b16 %v3971
      %v4116 = vunpack.c.l.b16 %v3981
      %v4117 = vunpack.c.l.b16 %v3995
      %v4118 = vunpack.c.l.b16 %v4005
      %v4119 = vunpack.c.l.b16 %v4019
      %v4120 = vunpack.c.l.b16 %v4029
      %v4121 = vunpack.c.l.b16 %v4043
      %v4122 = vunpack.c.l.b16 %v4053
      %v4123 = vunpack.c.l.b16 %v4067
      %v4124 = vunpack.c.l.b16 %v4077
      %v4125 = vunpack.c.l.b16 %v4091
      %v4126 = vunpack.c.l.b16 %v4101
      %v4127 = vpack.c.b16 %v4112, %v4111
      %v4128 = vpack.c.b16 %v4114, %v4113
      %v4129 = vpack.c.b16 %v4116, %v4115
      %v4130 = vpack.c.b16 %v4118, %v4117
      %v4131 = vpack.c.b16 %v4120, %v4119
      %v4132 = vpack.c.b16 %v4122, %v4121
      %v4133 = vpack.c.b16 %v4124, %v4123
      %v4134 = vpack.c.b16 %v4126, %v4125
      %v4143 = vunpack.c.l.b16 %v4103
      %v4144 = vunpack.c.l.b16 %v4104
      %v4145 = vunpack.c.l.b16 %v4105
      %v4146 = vunpack.c.l.b16 %v4106
      %v4147 = vunpack.c.l.b16 %v4107
      %v4148 = vunpack.c.l.b16 %v4108
      %v4149 = vunpack.c.l.b16 %v4109
      %v4150 = vunpack.c.l.b16 %v4110
      %v4151 = vpack.c.b16 %v4144, %v4143
      %v4152 = vpack.c.b16 %v4146, %v4145
      %v4153 = vpack.c.b16 %v4148, %v4147
      %v4154 = vpack.c.b16 %v4150, %v4149
      %v4160 = vsel %vm1068, %v4127, 0
      %v4163 = vsel %vm1068, %v4128, 0
      %v4166 = vsel %vm1068, %v4129, 0
      %v4169 = vsel %vm1068, %v4130, 0
      %v4172 = vsel %vm1068, %v4131, 0
      %v4175 = vsel %vm1068, %v4132, 0
      %v4178 = vsel %vm1068, %v4133, 0
      %v4181 = vsel %vm1068, %v4134, 0
      %4183 = vmatpush.bf16.msra.mxu0 0
      %4184 = vmatpush.bf16.msra.mxu0 0
      %4185 = vmatpush.bf16.msra.mxu0 0
      %4186 = vmatpush.bf16.msra.mxu0 0
      %4187 = vmatpush.bf16.msra.mxu0 %v4154
      %4188 = vmatpush.bf16.msra.mxu0 %v4153
      %4189 = vmatpush.bf16.msra.mxu0 %v4152
      %4190 = vmatpush.bf16.msra.mxu0 %v4151
      %4191 = vmatmul.bf16.gmra.mxu0 %v4160
      %v4192 = vpop.f32.mrf.mxu0
      %v4193 = vadd.f32 0.0, %v4192
      %v4194 = vpop.f32.mrf.mxu0
      %v4195 = vadd.f32 0.0, %v4194
      %4196 = vmatmul.bf16.gmra.mxu0 %v4163
      %v4197 = vpop.f32.mrf.mxu0
      %v4198 = vadd.f32 0.0, %v4197
      %v4199 = vpop.f32.mrf.mxu0
      %v4200 = vadd.f32 0.0, %v4199
      %4201 = vmatmul.bf16.gmra.mxu0 %v4166
      %v4202 = vpop.f32.mrf.mxu0
      %v4203 = vadd.f32 0.0, %v4202
      %v4204 = vpop.f32.mrf.mxu0
      %v4205 = vadd.f32 0.0, %v4204
      %4206 = vmatmul.bf16.gmra.mxu0 %v4169
      %v4207 = vpop.f32.mrf.mxu0
      %v4208 = vadd.f32 0.0, %v4207
      %v4209 = vpop.f32.mrf.mxu0
      %v4210 = vadd.f32 0.0, %v4209
      %4211 = vmatmul.bf16.gmra.mxu0 %v4172
      %v4212 = vpop.f32.mrf.mxu0
      %v4213 = vadd.f32 0.0, %v4212
      %v4214 = vpop.f32.mrf.mxu0
      %v4215 = vadd.f32 0.0, %v4214
      %4216 = vmatmul.bf16.gmra.mxu0 %v4175
      %v4217 = vpop.f32.mrf.mxu0
      %v4218 = vadd.f32 0.0, %v4217
      %v4219 = vpop.f32.mrf.mxu0
      %v4220 = vadd.f32 0.0, %v4219
      %4221 = vmatmul.bf16.gmra.mxu0 %v4178
      %v4222 = vpop.f32.mrf.mxu0
      %v4223 = vadd.f32 0.0, %v4222
      %v4224 = vpop.f32.mrf.mxu0
      %v4225 = vadd.f32 0.0, %v4224
      %4226 = vmatmul.bf16.gmra.mxu0 %v4181
      %v4227 = vpop.f32.mrf.mxu0
      %v4228 = vadd.f32 0.0, %v4227
      %v4229 = vpop.f32.mrf.mxu0
      %v4230 = vadd.f32 0.0, %v4229
      %4231 = vdwg.mxu0
      %v4248 = vunpack.c.l.b16 %v3878
      %v4249 = vunpack.c.l.b16 %v3879
      %v4250 = vunpack.c.l.b16 %v3880
      %v4251 = vunpack.c.l.b16 %v3881
      %v4252 = vunpack.c.l.b16 %v3882
      %v4253 = vunpack.c.l.b16 %v3883
      %v4254 = vunpack.c.l.b16 %v3884
      %v4255 = vunpack.c.l.b16 %v3885
      %v4256 = vunpack.c.l.b16 %v3886
      %v4257 = vunpack.c.l.b16 %v3887
      %v4258 = vunpack.c.l.b16 %v3888
      %v4259 = vunpack.c.l.b16 %v3889
      %v4260 = vunpack.c.l.b16 %v3890
      %v4261 = vunpack.c.l.b16 %v3891
      %v4262 = vunpack.c.l.b16 %v3892
      %v4263 = vunpack.c.l.b16 %v3893
      %v4264 = vpack.c.b16 %v4249, %v4248
      %v4265 = vpack.c.b16 %v4251, %v4250
      %v4266 = vpack.c.b16 %v4253, %v4252
      %v4267 = vpack.c.b16 %v4255, %v4254
      %v4268 = vpack.c.b16 %v4257, %v4256
      %v4269 = vpack.c.b16 %v4259, %v4258
      %v4270 = vpack.c.b16 %v4261, %v4260
      %v4271 = vpack.c.b16 %v4263, %v4262
      %v4280 = vunpack.c.l.b16 %v3894
      %v4281 = vunpack.c.l.b16 %v3895
      %v4282 = vunpack.c.l.b16 %v3896
      %v4283 = vunpack.c.l.b16 %v3897
      %v4284 = vunpack.c.l.b16 %v3898
      %v4285 = vunpack.c.l.b16 %v3899
      %v4286 = vunpack.c.l.b16 %v3900
      %v4287 = vunpack.c.l.b16 %v3901
      %v4288 = vpack.c.b16 %v4281, %v4280
      %v4289 = vpack.c.b16 %v4283, %v4282
      %v4290 = vpack.c.b16 %v4285, %v4284
      %v4291 = vpack.c.b16 %v4287, %v4286
      %v4297 = vsel %vm1068, %v4264, 0
      %v4300 = vsel %vm1068, %v4265, 0
      %v4303 = vsel %vm1068, %v4266, 0
      %v4306 = vsel %vm1068, %v4267, 0
      %v4309 = vsel %vm1068, %v4268, 0
      %v4312 = vsel %vm1068, %v4269, 0
      %v4315 = vsel %vm1068, %v4270, 0
      %v4318 = vsel %vm1068, %v4271, 0
      %4320 = vmatpush.bf16.msra.mxu0 0
      %4321 = vmatpush.bf16.msra.mxu0 0
      %4322 = vmatpush.bf16.msra.mxu0 0
      %4323 = vmatpush.bf16.msra.mxu0 0
      %4324 = vmatpush.bf16.msra.mxu0 %v4291
      %4325 = vmatpush.bf16.msra.mxu0 %v4290
      %4326 = vmatpush.bf16.msra.mxu0 %v4289
      %4327 = vmatpush.bf16.msra.mxu0 %v4288
      %4328 = vmatmul.bf16.gmra.mxu0 %v4297
      %v4329 = vpop.f32.mrf.mxu0
      %v4330 = vadd.f32 %v4193, %v4329
      %v4331 = vpop.f32.mrf.mxu0
      %v4332 = vadd.f32 %v4195, %v4331
      %4333 = vmatmul.bf16.gmra.mxu0 %v4300
      %v4334 = vpop.f32.mrf.mxu0
      %v4335 = vadd.f32 %v4198, %v4334
      %v4336 = vpop.f32.mrf.mxu0
      %v4337 = vadd.f32 %v4200, %v4336
      %4338 = vmatmul.bf16.gmra.mxu0 %v4303
      %v4339 = vpop.f32.mrf.mxu0
      %v4340 = vadd.f32 %v4203, %v4339
      %v4341 = vpop.f32.mrf.mxu0
      %v4342 = vadd.f32 %v4205, %v4341
      %4343 = vmatmul.bf16.gmra.mxu0 %v4306
      %v4344 = vpop.f32.mrf.mxu0
      %v4345 = vadd.f32 %v4208, %v4344
      %v4346 = vpop.f32.mrf.mxu0
      %v4347 = vadd.f32 %v4210, %v4346
      %4348 = vmatmul.bf16.gmra.mxu0 %v4309
      %v4349 = vpop.f32.mrf.mxu0
      %v4350 = vadd.f32 %v4213, %v4349
      %v4351 = vpop.f32.mrf.mxu0
      %v4352 = vadd.f32 %v4215, %v4351
      %4353 = vmatmul.bf16.gmra.mxu0 %v4312
      %v4354 = vpop.f32.mrf.mxu0
      %v4355 = vadd.f32 %v4218, %v4354
      %v4356 = vpop.f32.mrf.mxu0
      %v4357 = vadd.f32 %v4220, %v4356
      %4358 = vmatmul.bf16.gmra.mxu0 %v4315
      %v4359 = vpop.f32.mrf.mxu0
      %v4360 = vadd.f32 %v4223, %v4359
      %v4361 = vpop.f32.mrf.mxu0
      %v4362 = vadd.f32 %v4225, %v4361
      %4363 = vmatmul.bf16.gmra.mxu0 %v4318
      %v4364 = vpop.f32.mrf.mxu0
      %v4365 = vadd.f32 %v4228, %v4364
      %v4366 = vpop.f32.mrf.mxu0
      %v4367 = vadd.f32 %v4230, %v4366
      %4368 = vdwg.mxu0
      %v4369 = vld [vmem:[#allocation3] sm:$0xe]
      %v4370 = vld [vmem:[#allocation3 + $0xc] sm:$0xe]
      %v4371 = vld [vmem:[#allocation3 + $0x18] sm:$0xe]
      %v4372 = vld [vmem:[#allocation3 + $0x24] sm:$0xe]
      %v4373 = vld [vmem:[#allocation3 + $0x30] sm:$0xe]
      %v4374 = vld [vmem:[#allocation3 + $0x3c] sm:$0xe]
      %v4375 = vld [vmem:[#allocation3 + $0x48] sm:$0xe]
      %v4376 = vld [vmem:[#allocation3 + $0x54] sm:$0xe]
      %v4393 = vrot.slane %v4369, 5
      %v4394 = vrot.slane %v4393, 4
      %v4395 = vrot.slane %v3879, 5
      %v4396 = vsel %vm1353, %v4394, %v4395
      %v4397 = vrot.slane %v4395, 4
      %v4398 = vrot.slane %v3902, 5
      %v4399 = vsel %vm1353, %v4397, %v4398
      %v4400 = vrot.slane %v4370, 5
      %v4401 = vrot.slane %v4400, 4
      %v4402 = vrot.slane %v3881, 5
      %v4403 = vsel %vm1353, %v4401, %v4402
      %v4404 = vrot.slane %v4402, 4
      %v4405 = vrot.slane %v3903, 5
      %v4406 = vsel %vm1353, %v4404, %v4405
      %v4407 = vrot.slane %v4371, 5
      %v4408 = vrot.slane %v4407, 4
      %v4409 = vrot.slane %v3883, 5
      %v4410 = vsel %vm1353, %v4408, %v4409
      %v4411 = vrot.slane %v4409, 4
      %v4412 = vrot.slane %v3904, 5
      %v4413 = vsel %vm1353, %v4411, %v4412
      %v4414 = vrot.slane %v4372, 5
      %v4415 = vrot.slane %v4414, 4
      %v4416 = vrot.slane %v3885, 5
      %v4417 = vsel %vm1353, %v4415, %v4416
      %v4418 = vrot.slane %v4416, 4
      %v4419 = vrot.slane %v3905, 5
      %v4420 = vsel %vm1353, %v4418, %v4419
      %v4421 = vrot.slane %v4373, 5
      %v4422 = vrot.slane %v4421, 4
      %v4423 = vrot.slane %v3887, 5
      %v4424 = vsel %vm1353, %v4422, %v4423
      %v4425 = vrot.slane %v4423, 4
      %v4426 = vrot.slane %v3906, 5
      %v4427 = vsel %vm1353, %v4425, %v4426
      %v4428 = vrot.slane %v4374, 5
      %v4429 = vrot.slane %v4428, 4
      %v4430 = vrot.slane %v3889, 5
      %v4431 = vsel %vm1353, %v4429, %v4430
      %v4432 = vrot.slane %v4430, 4
      %v4433 = vrot.slane %v3907, 5
      %v4434 = vsel %vm1353, %v4432, %v4433
      %v4435 = vrot.slane %v4375, 5
      %v4436 = vrot.slane %v4435, 4
      %v4437 = vrot.slane %v3891, 5
      %v4438 = vsel %vm1353, %v4436, %v4437
      %v4439 = vrot.slane %v4437, 4
      %v4440 = vrot.slane %v3908, 5
      %v4441 = vsel %vm1353, %v4439, %v4440
      %v4442 = vrot.slane %v4376, 5
      %v4443 = vrot.slane %v4442, 4
      %v4444 = vrot.slane %v3893, 5
      %v4445 = vsel %vm1353, %v4443, %v4444
      %v4446 = vrot.slane %v4444, 4
      %v4447 = vrot.slane %v3909, 5
      %v4448 = vsel %vm1353, %v4446, %v4447
      %s4449 = scalar_lea.vmem %s3, 64
      %v4450 = vld [vmem:[%s4449] sm:$0xf]
      %v4451 = vld [vmem:[%s4449 + $0x4] sm:$0xf]
      %v4452 = vld [vmem:[%s4449 + $0x8] sm:$0xf]
      %v4453 = vld [vmem:[%s4449 + $0xc] sm:$0xf]
      %v4454 = vld [vmem:[%s4449 + $0x10] sm:$0xf]
      %v4455 = vld [vmem:[%s4449 + $0x14] sm:$0xf]
      %v4456 = vld [vmem:[%s4449 + $0x18] sm:$0xf]
      %v4457 = vld [vmem:[%s4449 + $0x1c] sm:$0xf]
      %v4458 = vunpack.c.l.b16 %v4396
      %v4459 = vunpack.c.l.b16 %v4399
      %v4460 = vunpack.c.l.b16 %v4403
      %v4461 = vunpack.c.l.b16 %v4406
      %v4462 = vunpack.c.l.b16 %v4410
      %v4463 = vunpack.c.l.b16 %v4413
      %v4464 = vunpack.c.l.b16 %v4417
      %v4465 = vunpack.c.l.b16 %v4420
      %v4466 = vunpack.c.l.b16 %v4424
      %v4467 = vunpack.c.l.b16 %v4427
      %v4468 = vunpack.c.l.b16 %v4431
      %v4469 = vunpack.c.l.b16 %v4434
      %v4470 = vunpack.c.l.b16 %v4438
      %v4471 = vunpack.c.l.b16 %v4441
      %v4472 = vunpack.c.l.b16 %v4445
      %v4473 = vunpack.c.l.b16 %v4448
      %v4474 = vpack.c.b16 %v4459, %v4458
      %v4475 = vpack.c.b16 %v4461, %v4460
      %v4476 = vpack.c.b16 %v4463, %v4462
      %v4477 = vpack.c.b16 %v4465, %v4464
      %v4478 = vpack.c.b16 %v4467, %v4466
      %v4479 = vpack.c.b16 %v4469, %v4468
      %v4480 = vpack.c.b16 %v4471, %v4470
      %v4481 = vpack.c.b16 %v4473, %v4472
      %v4490 = vunpack.c.l.b16 %v4450
      %v4491 = vunpack.c.l.b16 %v4451
      %v4492 = vunpack.c.l.b16 %v4452
      %v4493 = vunpack.c.l.b16 %v4453
      %v4494 = vunpack.c.l.b16 %v4454
      %v4495 = vunpack.c.l.b16 %v4455
      %v4496 = vunpack.c.l.b16 %v4456
      %v4497 = vunpack.c.l.b16 %v4457
      %v4498 = vpack.c.b16 %v4491, %v4490
      %v4499 = vpack.c.b16 %v4493, %v4492
      %v4500 = vpack.c.b16 %v4495, %v4494
      %v4501 = vpack.c.b16 %v4497, %v4496
      %v4507 = vsel %vm1068, %v4474, 0
      %v4510 = vsel %vm1068, %v4475, 0
      %v4513 = vsel %vm1068, %v4476, 0
      %v4516 = vsel %vm1068, %v4477, 0
      %v4519 = vsel %vm1068, %v4478, 0
      %v4522 = vsel %vm1068, %v4479, 0
      %v4525 = vsel %vm1068, %v4480, 0
      %v4528 = vsel %vm1068, %v4481, 0
      %4530 = vmatpush.bf16.msra.mxu0 0
      %4531 = vmatpush.bf16.msra.mxu0 0
      %4532 = vmatpush.bf16.msra.mxu0 0
      %4533 = vmatpush.bf16.msra.mxu0 0
      %4534 = vmatpush.bf16.msra.mxu0 %v4501
      %4535 = vmatpush.bf16.msra.mxu0 %v4500
      %4536 = vmatpush.bf16.msra.mxu0 %v4499
      %4537 = vmatpush.bf16.msra.mxu0 %v4498
      %4538 = vmatmul.bf16.gmra.mxu0 %v4507
      %v4539 = vpop.f32.mrf.mxu0
      %v4540 = vadd.f32 0.0, %v4539
      %v4541 = vpop.f32.mrf.mxu0
      %v4542 = vadd.f32 0.0, %v4541
      %4543 = vmatmul.bf16.gmra.mxu0 %v4510
      %v4544 = vpop.f32.mrf.mxu0
      %v4545 = vadd.f32 0.0, %v4544
      %v4546 = vpop.f32.mrf.mxu0
      %v4547 = vadd.f32 0.0, %v4546
      %4548 = vmatmul.bf16.gmra.mxu0 %v4513
      %v4549 = vpop.f32.mrf.mxu0
      %v4550 = vadd.f32 0.0, %v4549
      %v4551 = vpop.f32.mrf.mxu0
      %v4552 = vadd.f32 0.0, %v4551
      %4553 = vmatmul.bf16.gmra.mxu0 %v4516
      %v4554 = vpop.f32.mrf.mxu0
      %v4555 = vadd.f32 0.0, %v4554
      %v4556 = vpop.f32.mrf.mxu0
      %v4557 = vadd.f32 0.0, %v4556
      %4558 = vmatmul.bf16.gmra.mxu0 %v4519
      %v4559 = vpop.f32.mrf.mxu0
      %v4560 = vadd.f32 0.0, %v4559
      %v4561 = vpop.f32.mrf.mxu0
      %v4562 = vadd.f32 0.0, %v4561
      %4563 = vmatmul.bf16.gmra.mxu0 %v4522
      %v4564 = vpop.f32.mrf.mxu0
      %v4565 = vadd.f32 0.0, %v4564
      %v4566 = vpop.f32.mrf.mxu0
      %v4567 = vadd.f32 0.0, %v4566
      %4568 = vmatmul.bf16.gmra.mxu0 %v4525
      %v4569 = vpop.f32.mrf.mxu0
      %v4570 = vadd.f32 0.0, %v4569
      %v4571 = vpop.f32.mrf.mxu0
      %v4572 = vadd.f32 0.0, %v4571
      %4573 = vmatmul.bf16.gmra.mxu0 %v4528
      %v4574 = vpop.f32.mrf.mxu0
      %v4575 = vadd.f32 0.0, %v4574
      %v4576 = vpop.f32.mrf.mxu0
      %v4577 = vadd.f32 0.0, %v4576
      %4578 = vdwg.mxu0
      %v4579 = vadd.f32 %v4330, %v4540
      %v4580 = vadd.f32 %v4332, %v4542
      %v4581 = vadd.f32 %v4335, %v4545
      %v4582 = vadd.f32 %v4337, %v4547
      %v4583 = vadd.f32 %v4340, %v4550
      %v4584 = vadd.f32 %v4342, %v4552
      %v4585 = vadd.f32 %v4345, %v4555
      %v4586 = vadd.f32 %v4347, %v4557
      %v4587 = vadd.f32 %v4350, %v4560
      %v4588 = vadd.f32 %v4352, %v4562
      %v4589 = vadd.f32 %v4355, %v4565
      %v4590 = vadd.f32 %v4357, %v4567
      %v4591 = vadd.f32 %v4360, %v4570
      %v4592 = vadd.f32 %v4362, %v4572
      %v4593 = vadd.f32 %v4365, %v4575
      %v4594 = vadd.f32 %v4367, %v4577
      %s4595 = scalar_lea.vmem [#allocation3], 12
      %v4596 = vld [vmem:[%s4595] sm:$0xf]
      %v4597 = vld [vmem:[%s4595 + $0x4] sm:$0xf]
      %v4598 = vld [vmem:[%s4595 + $0xc] sm:$0xf]
      %v4599 = vld [vmem:[%s4595 + $0x10] sm:$0xf]
      %v4600 = vld [vmem:[%s4595 + $0x18] sm:$0xf]
      %v4601 = vld [vmem:[%s4595 + $0x1c] sm:$0xf]
      %v4602 = vld [vmem:[%s4595 + $0x24] sm:$0xf]
      %v4603 = vld [vmem:[%s4595 + $0x28] sm:$0xf]
      %v4604 = vld [vmem:[%s4595 + $0x30] sm:$0xf]
      %v4605 = vld [vmem:[%s4595 + $0x34] sm:$0xf]
      %v4606 = vld [vmem:[%s4595 + $0x3c] sm:$0xf]
      %v4607 = vld [vmem:[%s4595 + $0x40] sm:$0xf]
      %v4608 = vld [vmem:[%s4595 + $0x48] sm:$0xf]
      %v4609 = vld [vmem:[%s4595 + $0x4c] sm:$0xf]
      %v4610 = vld [vmem:[%s4595 + $0x54] sm:$0xf]
      %v4611 = vld [vmem:[%s4595 + $0x58] sm:$0xf]
      %s4612 = scalar_lea.vmem %s3, 96
      %v4613 = vld [vmem:[%s4612] sm:$0xf]
      %v4614 = vld [vmem:[%s4612 + $0x4] sm:$0xf]
      %v4615 = vld [vmem:[%s4612 + $0x8] sm:$0xf]
      %v4616 = vld [vmem:[%s4612 + $0xc] sm:$0xf]
      %v4617 = vld [vmem:[%s4612 + $0x10] sm:$0xf]
      %v4618 = vld [vmem:[%s4612 + $0x14] sm:$0xf]
      %v4619 = vld [vmem:[%s4612 + $0x18] sm:$0xf]
      %v4620 = vld [vmem:[%s4612 + $0x1c] sm:$0xf]
      %v4637 = vunpack.c.l.b16 %v4596
      %v4638 = vunpack.c.l.b16 %v4597
      %v4639 = vunpack.c.l.b16 %v4598
      %v4640 = vunpack.c.l.b16 %v4599
      %v4641 = vunpack.c.l.b16 %v4600
      %v4642 = vunpack.c.l.b16 %v4601
      %v4643 = vunpack.c.l.b16 %v4602
      %v4644 = vunpack.c.l.b16 %v4603
      %v4645 = vunpack.c.l.b16 %v4604
      %v4646 = vunpack.c.l.b16 %v4605
      %v4647 = vunpack.c.l.b16 %v4606
      %v4648 = vunpack.c.l.b16 %v4607
      %v4649 = vunpack.c.l.b16 %v4608
      %v4650 = vunpack.c.l.b16 %v4609
      %v4651 = vunpack.c.l.b16 %v4610
      %v4652 = vunpack.c.l.b16 %v4611
      %v4653 = vpack.c.b16 %v4638, %v4637
      %v4654 = vpack.c.b16 %v4640, %v4639
      %v4655 = vpack.c.b16 %v4642, %v4641
      %v4656 = vpack.c.b16 %v4644, %v4643
      %v4657 = vpack.c.b16 %v4646, %v4645
      %v4658 = vpack.c.b16 %v4648, %v4647
      %v4659 = vpack.c.b16 %v4650, %v4649
      %v4660 = vpack.c.b16 %v4652, %v4651
      %v4669 = vunpack.c.l.b16 %v4613
      %v4670 = vunpack.c.l.b16 %v4614
      %v4671 = vunpack.c.l.b16 %v4615
      %v4672 = vunpack.c.l.b16 %v4616
      %v4673 = vunpack.c.l.b16 %v4617
      %v4674 = vunpack.c.l.b16 %v4618
      %v4675 = vunpack.c.l.b16 %v4619
      %v4676 = vunpack.c.l.b16 %v4620
      %v4677 = vpack.c.b16 %v4670, %v4669
      %v4678 = vpack.c.b16 %v4672, %v4671
      %v4679 = vpack.c.b16 %v4674, %v4673
      %v4680 = vpack.c.b16 %v4676, %v4675
      %v4686 = vsel %vm1068, %v4653, 0
      %v4689 = vsel %vm1068, %v4654, 0
      %v4692 = vsel %vm1068, %v4655, 0
      %v4695 = vsel %vm1068, %v4656, 0
      %v4698 = vsel %vm1068, %v4657, 0
      %v4701 = vsel %vm1068, %v4658, 0
      %v4704 = vsel %vm1068, %v4659, 0
      %v4707 = vsel %vm1068, %v4660, 0
      %4709 = vmatpush.bf16.msra.mxu0 0
      %4710 = vmatpush.bf16.msra.mxu0 0
      %4711 = vmatpush.bf16.msra.mxu0 0
      %4712 = vmatpush.bf16.msra.mxu0 0
      %4713 = vmatpush.bf16.msra.mxu0 %v4680
      %4714 = vmatpush.bf16.msra.mxu0 %v4679
      %4715 = vmatpush.bf16.msra.mxu0 %v4678
      %4716 = vmatpush.bf16.msra.mxu0 %v4677
      %4717 = vmatmul.bf16.gmra.mxu0 %v4686
      %v4718 = vpop.f32.mrf.mxu0
      %v4719 = vadd.f32 0.0, %v4718
      %v4720 = vpop.f32.mrf.mxu0
      %v4721 = vadd.f32 0.0, %v4720
      %4722 = vmatmul.bf16.gmra.mxu0 %v4689
      %v4723 = vpop.f32.mrf.mxu0
      %v4724 = vadd.f32 0.0, %v4723
      %v4725 = vpop.f32.mrf.mxu0
      %v4726 = vadd.f32 0.0, %v4725
      %4727 = vmatmul.bf16.gmra.mxu0 %v4692
      %v4728 = vpop.f32.mrf.mxu0
      %v4729 = vadd.f32 0.0, %v4728
      %v4730 = vpop.f32.mrf.mxu0
      %v4731 = vadd.f32 0.0, %v4730
      %4732 = vmatmul.bf16.gmra.mxu0 %v4695
      %v4733 = vpop.f32.mrf.mxu0
      %v4734 = vadd.f32 0.0, %v4733
      %v4735 = vpop.f32.mrf.mxu0
      %v4736 = vadd.f32 0.0, %v4735
      %4737 = vmatmul.bf16.gmra.mxu0 %v4698
      %v4738 = vpop.f32.mrf.mxu0
      %v4739 = vadd.f32 0.0, %v4738
      %v4740 = vpop.f32.mrf.mxu0
      %v4741 = vadd.f32 0.0, %v4740
      %4742 = vmatmul.bf16.gmra.mxu0 %v4701
      %v4743 = vpop.f32.mrf.mxu0
      %v4744 = vadd.f32 0.0, %v4743
      %v4745 = vpop.f32.mrf.mxu0
      %v4746 = vadd.f32 0.0, %v4745
      %4747 = vmatmul.bf16.gmra.mxu0 %v4704
      %v4748 = vpop.f32.mrf.mxu0
      %v4749 = vadd.f32 0.0, %v4748
      %v4750 = vpop.f32.mrf.mxu0
      %v4751 = vadd.f32 0.0, %v4750
      %4752 = vmatmul.bf16.gmra.mxu0 %v4707
      %v4753 = vpop.f32.mrf.mxu0
      %v4754 = vadd.f32 0.0, %v4753
      %v4755 = vpop.f32.mrf.mxu0
      %v4756 = vadd.f32 0.0, %v4755
      %4757 = vdwg.mxu0
      %v4758 = vadd.f32 %v4579, %v4719
      %v4759 = vadd.f32 %v4580, %v4721
      %v4760 = vadd.f32 %v4581, %v4724
      %v4761 = vadd.f32 %v4582, %v4726
      %v4762 = vadd.f32 %v4583, %v4729
      %v4763 = vadd.f32 %v4584, %v4731
      %v4764 = vadd.f32 %v4585, %v4734
      %v4765 = vadd.f32 %v4586, %v4736
      %v4766 = vadd.f32 %v4587, %v4739
      %v4767 = vadd.f32 %v4588, %v4741
      %v4768 = vadd.f32 %v4589, %v4744
      %v4769 = vadd.f32 %v4590, %v4746
      %v4770 = vadd.f32 %v4591, %v4749
      %v4771 = vadd.f32 %v4592, %v4751
      %v4772 = vadd.f32 %v4593, %v4754
      %v4773 = vadd.f32 %v4594, %v4756
      %v4774 = vld [vmem:[%s4595] sm:$0xf]
      %v4775 = vld [vmem:[%s4595 + $0x4] sm:$0xf]
      %v4776 = vld [vmem:[%s4595 + $0x8] sm:$0x1]
      %v4777 = vld [vmem:[%s4595 + $0xc] sm:$0xf]
      %v4778 = vld [vmem:[%s4595 + $0x10] sm:$0xf]
      %v4779 = vld [vmem:[%s4595 + $0x14] sm:$0x1]
      %v4780 = vld [vmem:[%s4595 + $0x18] sm:$0xf]
      %v4781 = vld [vmem:[%s4595 + $0x1c] sm:$0xf]
      %v4782 = vld [vmem:[%s4595 + $0x20] sm:$0x1]
      %v4783 = vld [vmem:[%s4595 + $0x24] sm:$0xf]
      %v4784 = vld [vmem:[%s4595 + $0x28] sm:$0xf]
      %v4785 = vld [vmem:[%s4595 + $0x2c] sm:$0x1]
      %v4786 = vld [vmem:[%s4595 + $0x30] sm:$0xf]
      %v4787 = vld [vmem:[%s4595 + $0x34] sm:$0xf]
      %v4788 = vld [vmem:[%s4595 + $0x38] sm:$0x1]
      %v4789 = vld [vmem:[%s4595 + $0x3c] sm:$0xf]
      %v4790 = vld [vmem:[%s4595 + $0x40] sm:$0xf]
      %v4791 = vld [vmem:[%s4595 + $0x44] sm:$0x1]
      %v4792 = vld [vmem:[%s4595 + $0x48] sm:$0xf]
      %v4793 = vld [vmem:[%s4595 + $0x4c] sm:$0xf]
      %v4794 = vld [vmem:[%s4595 + $0x50] sm:$0x1]
      %v4795 = vld [vmem:[%s4595 + $0x54] sm:$0xf]
      %v4796 = vld [vmem:[%s4595 + $0x58] sm:$0xf]
      %v4797 = vld [vmem:[%s4595 + $0x5c] sm:$0x1]
      %v4799 = vshrl.u32 %v4774, 16
      %v4801 = vrot.slane %v4799, 4
      %v4802 = vshll.u32 %v4774, 16
      %v4804 = vrot.slane %v4802, 5
      %v4805 = vor.u32 %v4801, %v4804
      %v4806 = vrot.slane %v4805, 4
      %v4808 = vshll.u32 %v4775, 16
      %v4810 = vrot.slane %v4808, 5
      %v4811 = vsel %vm764, %v4806, %v4810
      %v4812 = vshrl.u32 %v4775, 16
      %v4814 = vrot.slane %v4812, 4
      %v4815 = vor.u32 %v4814, %v4810
      %v4816 = vrot.slane %v4815, 4
      %v4818 = vshll.u32 %v4776, 16
      %v4820 = vrot.slane %v4818, 5
      %v4821 = vsel %vm764, %v4816, %v4820
      %v4823 = vshrl.u32 %v4777, 16
      %v4825 = vrot.slane %v4823, 4
      %v4826 = vshll.u32 %v4777, 16
      %v4828 = vrot.slane %v4826, 5
      %v4829 = vor.u32 %v4825, %v4828
      %v4830 = vrot.slane %v4829, 4
      %v4832 = vshll.u32 %v4778, 16
      %v4834 = vrot.slane %v4832, 5
      %v4835 = vsel %vm764, %v4830, %v4834
      %v4836 = vshrl.u32 %v4778, 16
      %v4838 = vrot.slane %v4836, 4
      %v4839 = vor.u32 %v4838, %v4834
      %v4840 = vrot.slane %v4839, 4
      %v4842 = vshll.u32 %v4779, 16
      %v4844 = vrot.slane %v4842, 5
      %v4845 = vsel %vm764, %v4840, %v4844
      %v4847 = vshrl.u32 %v4780, 16
      %v4849 = vrot.slane %v4847, 4
      %v4850 = vshll.u32 %v4780, 16
      %v4852 = vrot.slane %v4850, 5
      %v4853 = vor.u32 %v4849, %v4852
      %v4854 = vrot.slane %v4853, 4
      %v4856 = vshll.u32 %v4781, 16
      %v4858 = vrot.slane %v4856, 5
      %v4859 = vsel %vm764, %v4854, %v4858
      %v4860 = vshrl.u32 %v4781, 16
      %v4862 = vrot.slane %v4860, 4
      %v4863 = vor.u32 %v4862, %v4858
      %v4864 = vrot.slane %v4863, 4
      %v4866 = vshll.u32 %v4782, 16
      %v4868 = vrot.slane %v4866, 5
      %v4869 = vsel %vm764, %v4864, %v4868
      %v4871 = vshrl.u32 %v4783, 16
      %v4873 = vrot.slane %v4871, 4
      %v4874 = vshll.u32 %v4783, 16
      %v4876 = vrot.slane %v4874, 5
      %v4877 = vor.u32 %v4873, %v4876
      %v4878 = vrot.slane %v4877, 4
      %v4880 = vshll.u32 %v4784, 16
      %v4882 = vrot.slane %v4880, 5
      %v4883 = vsel %vm764, %v4878, %v4882
      %v4884 = vshrl.u32 %v4784, 16
      %v4886 = vrot.slane %v4884, 4
      %v4887 = vor.u32 %v4886, %v4882
      %v4888 = vrot.slane %v4887, 4
      %v4890 = vshll.u32 %v4785, 16
      %v4892 = vrot.slane %v4890, 5
      %v4893 = vsel %vm764, %v4888, %v4892
      %v4895 = vshrl.u32 %v4786, 16
      %v4897 = vrot.slane %v4895, 4
      %v4898 = vshll.u32 %v4786, 16
      %v4900 = vrot.slane %v4898, 5
      %v4901 = vor.u32 %v4897, %v4900
      %v4902 = vrot.slane %v4901, 4
      %v4904 = vshll.u32 %v4787, 16
      %v4906 = vrot.slane %v4904, 5
      %v4907 = vsel %vm764, %v4902, %v4906
      %v4908 = vshrl.u32 %v4787, 16
      %v4910 = vrot.slane %v4908, 4
      %v4911 = vor.u32 %v4910, %v4906
      %v4912 = vrot.slane %v4911, 4
      %v4914 = vshll.u32 %v4788, 16
      %v4916 = vrot.slane %v4914, 5
      %v4917 = vsel %vm764, %v4912, %v4916
      %v4919 = vshrl.u32 %v4789, 16
      %v4921 = vrot.slane %v4919, 4
      %v4922 = vshll.u32 %v4789, 16
      %v4924 = vrot.slane %v4922, 5
      %v4925 = vor.u32 %v4921, %v4924
      %v4926 = vrot.slane %v4925, 4
      %v4928 = vshll.u32 %v4790, 16
      %v4930 = vrot.slane %v4928, 5
      %v4931 = vsel %vm764, %v4926, %v4930
      %v4932 = vshrl.u32 %v4790, 16
      %v4934 = vrot.slane %v4932, 4
      %v4935 = vor.u32 %v4934, %v4930
      %v4936 = vrot.slane %v4935, 4
      %v4938 = vshll.u32 %v4791, 16
      %v4940 = vrot.slane %v4938, 5
      %v4941 = vsel %vm764, %v4936, %v4940
      %v4943 = vshrl.u32 %v4792, 16
      %v4945 = vrot.slane %v4943, 4
      %v4946 = vshll.u32 %v4792, 16
      %v4948 = vrot.slane %v4946, 5
      %v4949 = vor.u32 %v4945, %v4948
      %v4950 = vrot.slane %v4949, 4
      %v4952 = vshll.u32 %v4793, 16
      %v4954 = vrot.slane %v4952, 5
      %v4955 = vsel %vm764, %v4950, %v4954
      %v4956 = vshrl.u32 %v4793, 16
      %v4958 = vrot.slane %v4956, 4
      %v4959 = vor.u32 %v4958, %v4954
      %v4960 = vrot.slane %v4959, 4
      %v4962 = vshll.u32 %v4794, 16
      %v4964 = vrot.slane %v4962, 5
      %v4965 = vsel %vm764, %v4960, %v4964
      %v4967 = vshrl.u32 %v4795, 16
      %v4969 = vrot.slane %v4967, 4
      %v4970 = vshll.u32 %v4795, 16
      %v4972 = vrot.slane %v4970, 5
      %v4973 = vor.u32 %v4969, %v4972
      %v4974 = vrot.slane %v4973, 4
      %v4976 = vshll.u32 %v4796, 16
      %v4978 = vrot.slane %v4976, 5
      %v4979 = vsel %vm764, %v4974, %v4978
      %v4980 = vshrl.u32 %v4796, 16
      %v4982 = vrot.slane %v4980, 4
      %v4983 = vor.u32 %v4982, %v4978
      %v4984 = vrot.slane %v4983, 4
      %v4986 = vshll.u32 %v4797, 16
      %v4988 = vrot.slane %v4986, 5
      %v4989 = vsel %vm764, %v4984, %v4988
      %s4990 = scalar_lea.vmem %s3, 128
      %v4991 = vld [vmem:[%s4990] sm:$0xf]
      %v4992 = vld [vmem:[%s4990 + $0x4] sm:$0xf]
      %v4993 = vld [vmem:[%s4990 + $0x8] sm:$0xf]
      %v4994 = vld [vmem:[%s4990 + $0xc] sm:$0xf]
      %v4995 = vld [vmem:[%s4990 + $0x10] sm:$0xf]
      %v4996 = vld [vmem:[%s4990 + $0x14] sm:$0xf]
      %v4997 = vld [vmem:[%s4990 + $0x18] sm:$0xf]
      %v4998 = vld [vmem:[%s4990 + $0x1c] sm:$0xf]
      %v4999 = vunpack.c.l.b16 %v4811
      %v5000 = vunpack.c.l.b16 %v4821
      %v5001 = vunpack.c.l.b16 %v4835
      %v5002 = vunpack.c.l.b16 %v4845
      %v5003 = vunpack.c.l.b16 %v4859
      %v5004 = vunpack.c.l.b16 %v4869
      %v5005 = vunpack.c.l.b16 %v4883
      %v5006 = vunpack.c.l.b16 %v4893
      %v5007 = vunpack.c.l.b16 %v4907
      %v5008 = vunpack.c.l.b16 %v4917
      %v5009 = vunpack.c.l.b16 %v4931
      %v5010 = vunpack.c.l.b16 %v4941
      %v5011 = vunpack.c.l.b16 %v4955
      %v5012 = vunpack.c.l.b16 %v4965
      %v5013 = vunpack.c.l.b16 %v4979
      %v5014 = vunpack.c.l.b16 %v4989
      %v5015 = vpack.c.b16 %v5000, %v4999
      %v5016 = vpack.c.b16 %v5002, %v5001
      %v5017 = vpack.c.b16 %v5004, %v5003
      %v5018 = vpack.c.b16 %v5006, %v5005
      %v5019 = vpack.c.b16 %v5008, %v5007
      %v5020 = vpack.c.b16 %v5010, %v5009
      %v5021 = vpack.c.b16 %v5012, %v5011
      %v5022 = vpack.c.b16 %v5014, %v5013
      %v5031 = vunpack.c.l.b16 %v4991
      %v5032 = vunpack.c.l.b16 %v4992
      %v5033 = vunpack.c.l.b16 %v4993
      %v5034 = vunpack.c.l.b16 %v4994
      %v5035 = vunpack.c.l.b16 %v4995
      %v5036 = vunpack.c.l.b16 %v4996
      %v5037 = vunpack.c.l.b16 %v4997
      %v5038 = vunpack.c.l.b16 %v4998
      %v5039 = vpack.c.b16 %v5032, %v5031
      %v5040 = vpack.c.b16 %v5034, %v5033
      %v5041 = vpack.c.b16 %v5036, %v5035
      %v5042 = vpack.c.b16 %v5038, %v5037
      %v5048 = vsel %vm1068, %v5015, 0
      %v5051 = vsel %vm1068, %v5016, 0
      %v5054 = vsel %vm1068, %v5017, 0
      %v5057 = vsel %vm1068, %v5018, 0
      %v5060 = vsel %vm1068, %v5019, 0
      %v5063 = vsel %vm1068, %v5020, 0
      %v5066 = vsel %vm1068, %v5021, 0
      %v5069 = vsel %vm1068, %v5022, 0
      %5071 = vmatpush.bf16.msra.mxu0 0
      %5072 = vmatpush.bf16.msra.mxu0 0
      %5073 = vmatpush.bf16.msra.mxu0 0
      %5074 = vmatpush.bf16.msra.mxu0 0
      %5075 = vmatpush.bf16.msra.mxu0 %v5042
      %5076 = vmatpush.bf16.msra.mxu0 %v5041
      %5077 = vmatpush.bf16.msra.mxu0 %v5040
      %5078 = vmatpush.bf16.msra.mxu0 %v5039
      %5079 = vmatmul.bf16.gmra.mxu0 %v5048
      %v5080 = vpop.f32.mrf.mxu0
      %v5081 = vadd.f32 0.0, %v5080
      %v5082 = vpop.f32.mrf.mxu0
      %v5083 = vadd.f32 0.0, %v5082
      %5084 = vmatmul.bf16.gmra.mxu0 %v5051
      %v5085 = vpop.f32.mrf.mxu0
      %v5086 = vadd.f32 0.0, %v5085
      %v5087 = vpop.f32.mrf.mxu0
      %v5088 = vadd.f32 0.0, %v5087
      %5089 = vmatmul.bf16.gmra.mxu0 %v5054
      %v5090 = vpop.f32.mrf.mxu0
      %v5091 = vadd.f32 0.0, %v5090
      %v5092 = vpop.f32.mrf.mxu0
      %v5093 = vadd.f32 0.0, %v5092
      %5094 = vmatmul.bf16.gmra.mxu0 %v5057
      %v5095 = vpop.f32.mrf.mxu0
      %v5096 = vadd.f32 0.0, %v5095
      %v5097 = vpop.f32.mrf.mxu0
      %v5098 = vadd.f32 0.0, %v5097
      %5099 = vmatmul.bf16.gmra.mxu0 %v5060
      %v5100 = vpop.f32.mrf.mxu0
      %v5101 = vadd.f32 0.0, %v5100
      %v5102 = vpop.f32.mrf.mxu0
      %v5103 = vadd.f32 0.0, %v5102
      %5104 = vmatmul.bf16.gmra.mxu0 %v5063
      %v5105 = vpop.f32.mrf.mxu0
      %v5106 = vadd.f32 0.0, %v5105
      %v5107 = vpop.f32.mrf.mxu0
      %v5108 = vadd.f32 0.0, %v5107
      %5109 = vmatmul.bf16.gmra.mxu0 %v5066
      %v5110 = vpop.f32.mrf.mxu0
      %v5111 = vadd.f32 0.0, %v5110
      %v5112 = vpop.f32.mrf.mxu0
      %v5113 = vadd.f32 0.0, %v5112
      %5114 = vmatmul.bf16.gmra.mxu0 %v5069
      %v5115 = vpop.f32.mrf.mxu0
      %v5116 = vadd.f32 0.0, %v5115
      %v5117 = vpop.f32.mrf.mxu0
      %v5118 = vadd.f32 0.0, %v5117
      %5119 = vdwg.mxu0
      %v5120 = vadd.f32 %v4758, %v5081
      %v5121 = vadd.f32 %v4759, %v5083
      %v5122 = vadd.f32 %v4760, %v5086
      %v5123 = vadd.f32 %v4761, %v5088
      %v5124 = vadd.f32 %v4762, %v5091
      %v5125 = vadd.f32 %v4763, %v5093
      %v5126 = vadd.f32 %v4764, %v5096
      %v5127 = vadd.f32 %v4765, %v5098
      %v5128 = vadd.f32 %v4766, %v5101
      %v5129 = vadd.f32 %v4767, %v5103
      %v5130 = vadd.f32 %v4768, %v5106
      %v5131 = vadd.f32 %v4769, %v5108
      %v5132 = vadd.f32 %v4770, %v5111
      %v5133 = vadd.f32 %v4771, %v5113
      %v5134 = vadd.f32 %v4772, %v5116
      %v5135 = vadd.f32 %v4773, %v5118
      %v5136 = vld [vmem:[%s4595] sm:$0xe]
      %v5137 = vld [vmem:[%s4595 + $0xc] sm:$0xe]
      %v5138 = vld [vmem:[%s4595 + $0x18] sm:$0xe]
      %v5139 = vld [vmem:[%s4595 + $0x24] sm:$0xe]
      %v5140 = vld [vmem:[%s4595 + $0x30] sm:$0xe]
      %v5141 = vld [vmem:[%s4595 + $0x3c] sm:$0xe]
      %v5142 = vld [vmem:[%s4595 + $0x48] sm:$0xe]
      %v5143 = vld [vmem:[%s4595 + $0x54] sm:$0xe]
      %v5168 = vrot.slane %v5136, 5
      %v5169 = vrot.slane %v5168, 4
      %v5170 = vrot.slane %v4775, 5
      %v5171 = vsel %vm1353, %v5169, %v5170
      %v5172 = vrot.slane %v5170, 4
      %v5173 = vrot.slane %v4776, 5
      %v5174 = vsel %vm1353, %v5172, %v5173
      %v5175 = vrot.slane %v5137, 5
      %v5176 = vrot.slane %v5175, 4
      %v5177 = vrot.slane %v4778, 5
      %v5178 = vsel %vm1353, %v5176, %v5177
      %v5179 = vrot.slane %v5177, 4
      %v5180 = vrot.slane %v4779, 5
      %v5181 = vsel %vm1353, %v5179, %v5180
      %v5182 = vrot.slane %v5138, 5
      %v5183 = vrot.slane %v5182, 4
      %v5184 = vrot.slane %v4781, 5
      %v5185 = vsel %vm1353, %v5183, %v5184
      %v5186 = vrot.slane %v5184, 4
      %v5187 = vrot.slane %v4782, 5
      %v5188 = vsel %vm1353, %v5186, %v5187
      %v5189 = vrot.slane %v5139, 5
      %v5190 = vrot.slane %v5189, 4
      %v5191 = vrot.slane %v4784, 5
      %v5192 = vsel %vm1353, %v5190, %v5191
      %v5193 = vrot.slane %v5191, 4
      %v5194 = vrot.slane %v4785, 5
      %v5195 = vsel %vm1353, %v5193, %v5194
      %v5196 = vrot.slane %v5140, 5
      %v5197 = vrot.slane %v5196, 4
      %v5198 = vrot.slane %v4787, 5
      %v5199 = vsel %vm1353, %v5197, %v5198
      %v5200 = vrot.slane %v5198, 4
      %v5201 = vrot.slane %v4788, 5
      %v5202 = vsel %vm1353, %v5200, %v5201
      %v5203 = vrot.slane %v5141, 5
      %v5204 = vrot.slane %v5203, 4
      %v5205 = vrot.slane %v4790, 5
      %v5206 = vsel %vm1353, %v5204, %v5205
      %v5207 = vrot.slane %v5205, 4
      %v5208 = vrot.slane %v4791, 5
      %v5209 = vsel %vm1353, %v5207, %v5208
      %v5210 = vrot.slane %v5142, 5
      %v5211 = vrot.slane %v5210, 4
      %v5212 = vrot.slane %v4793, 5
      %v5213 = vsel %vm1353, %v5211, %v5212
      %v5214 = vrot.slane %v5212, 4
      %v5215 = vrot.slane %v4794, 5
      %v5216 = vsel %vm1353, %v5214, %v5215
      %v5217 = vrot.slane %v5143, 5
      %v5218 = vrot.slane %v5217, 4
      %v5219 = vrot.slane %v4796, 5
      %v5220 = vsel %vm1353, %v5218, %v5219
      %v5221 = vrot.slane %v5219, 4
      %v5222 = vrot.slane %v4797, 5
      %v5223 = vsel %vm1353, %v5221, %v5222
      %s5224 = scalar_lea.vmem %s3, 160
      %v5225 = vld [vmem:[%s5224] sm:$0xf]
      %v5226 = vld [vmem:[%s5224 + $0x4] sm:$0xf]
      %v5227 = vld [vmem:[%s5224 + $0x8] sm:$0xf]
      %v5228 = vld [vmem:[%s5224 + $0xc] sm:$0xf]
      %v5229 = vld [vmem:[%s5224 + $0x10] sm:$0xf]
      %v5230 = vld [vmem:[%s5224 + $0x14] sm:$0xf]
      %v5231 = vld [vmem:[%s5224 + $0x18] sm:$0xf]
      %v5232 = vld [vmem:[%s5224 + $0x1c] sm:$0xf]
      %v5233 = vunpack.c.l.b16 %v5171
      %v5234 = vunpack.c.l.b16 %v5174
      %v5235 = vunpack.c.l.b16 %v5178
      %v5236 = vunpack.c.l.b16 %v5181
      %v5237 = vunpack.c.l.b16 %v5185
      %v5238 = vunpack.c.l.b16 %v5188
      %v5239 = vunpack.c.l.b16 %v5192
      %v5240 = vunpack.c.l.b16 %v5195
      %v5241 = vunpack.c.l.b16 %v5199
      %v5242 = vunpack.c.l.b16 %v5202
      %v5243 = vunpack.c.l.b16 %v5206
      %v5244 = vunpack.c.l.b16 %v5209
      %v5245 = vunpack.c.l.b16 %v5213
      %v5246 = vunpack.c.l.b16 %v5216
      %v5247 = vunpack.c.l.b16 %v5220
      %v5248 = vunpack.c.l.b16 %v5223
      %v5249 = vpack.c.b16 %v5234, %v5233
      %v5250 = vpack.c.b16 %v5236, %v5235
      %v5251 = vpack.c.b16 %v5238, %v5237
      %v5252 = vpack.c.b16 %v5240, %v5239
      %v5253 = vpack.c.b16 %v5242, %v5241
      %v5254 = vpack.c.b16 %v5244, %v5243
      %v5255 = vpack.c.b16 %v5246, %v5245
      %v5256 = vpack.c.b16 %v5248, %v5247
      %v5265 = vunpack.c.l.b16 %v5225
      %v5266 = vunpack.c.l.b16 %v5226
      %v5267 = vunpack.c.l.b16 %v5227
      %v5268 = vunpack.c.l.b16 %v5228
      %v5269 = vunpack.c.l.b16 %v5229
      %v5270 = vunpack.c.l.b16 %v5230
      %v5271 = vunpack.c.l.b16 %v5231
      %v5272 = vunpack.c.l.b16 %v5232
      %v5273 = vpack.c.b16 %v5266, %v5265
      %v5274 = vpack.c.b16 %v5268, %v5267
      %v5275 = vpack.c.b16 %v5270, %v5269
      %v5276 = vpack.c.b16 %v5272, %v5271
      %v5282 = vsel %vm1068, %v5249, 0
      %v5285 = vsel %vm1068, %v5250, 0
      %v5288 = vsel %vm1068, %v5251, 0
      %v5291 = vsel %vm1068, %v5252, 0
      %v5294 = vsel %vm1068, %v5253, 0
      %v5297 = vsel %vm1068, %v5254, 0
      %v5300 = vsel %vm1068, %v5255, 0
      %v5303 = vsel %vm1068, %v5256, 0
      %5305 = vmatpush.bf16.msra.mxu0 0
      %5306 = vmatpush.bf16.msra.mxu0 0
      %5307 = vmatpush.bf16.msra.mxu0 0
      %5308 = vmatpush.bf16.msra.mxu0 0
      %5309 = vmatpush.bf16.msra.mxu0 %v5276
      %5310 = vmatpush.bf16.msra.mxu0 %v5275
      %5311 = vmatpush.bf16.msra.mxu0 %v5274
      %5312 = vmatpush.bf16.msra.mxu0 %v5273
      %5313 = vmatmul.bf16.gmra.mxu0 %v5282
      %v5314 = vpop.f32.mrf.mxu0
      %v5315 = vadd.f32 0.0, %v5314
      %v5316 = vpop.f32.mrf.mxu0
      %v5317 = vadd.f32 0.0, %v5316
      %5318 = vmatmul.bf16.gmra.mxu0 %v5285
      %v5319 = vpop.f32.mrf.mxu0
      %v5320 = vadd.f32 0.0, %v5319
      %v5321 = vpop.f32.mrf.mxu0
      %v5322 = vadd.f32 0.0, %v5321
      %5323 = vmatmul.bf16.gmra.mxu0 %v5288
      %v5324 = vpop.f32.mrf.mxu0
      %v5325 = vadd.f32 0.0, %v5324
      %v5326 = vpop.f32.mrf.mxu0
      %v5327 = vadd.f32 0.0, %v5326
      %5328 = vmatmul.bf16.gmra.mxu0 %v5291
      %v5329 = vpop.f32.mrf.mxu0
      %v5330 = vadd.f32 0.0, %v5329
      %v5331 = vpop.f32.mrf.mxu0
      %v5332 = vadd.f32 0.0, %v5331
      %5333 = vmatmul.bf16.gmra.mxu0 %v5294
      %v5334 = vpop.f32.mrf.mxu0
      %v5335 = vadd.f32 0.0, %v5334
      %v5336 = vpop.f32.mrf.mxu0
      %v5337 = vadd.f32 0.0, %v5336
      %5338 = vmatmul.bf16.gmra.mxu0 %v5297
      %v5339 = vpop.f32.mrf.mxu0
      %v5340 = vadd.f32 0.0, %v5339
      %v5341 = vpop.f32.mrf.mxu0
      %v5342 = vadd.f32 0.0, %v5341
      %5343 = vmatmul.bf16.gmra.mxu0 %v5300
      %v5344 = vpop.f32.mrf.mxu0
      %v5345 = vadd.f32 0.0, %v5344
      %v5346 = vpop.f32.mrf.mxu0
      %v5347 = vadd.f32 0.0, %v5346
      %5348 = vmatmul.bf16.gmra.mxu0 %v5303
      %v5349 = vpop.f32.mrf.mxu0
      %v5350 = vadd.f32 0.0, %v5349
      %v5351 = vpop.f32.mrf.mxu0
      %v5352 = vadd.f32 0.0, %v5351
      %5353 = vdwg.mxu0
      %v5354 = vadd.f32 %v5120, %v5315
      %v5355 = vadd.f32 %v5121, %v5317
      %v5356 = vadd.f32 %v5122, %v5320
      %v5357 = vadd.f32 %v5123, %v5322
      %v5358 = vadd.f32 %v5124, %v5325
      %v5359 = vadd.f32 %v5125, %v5327
      %v5360 = vadd.f32 %v5126, %v5330
      %v5361 = vadd.f32 %v5127, %v5332
      %v5362 = vadd.f32 %v5128, %v5335
      %v5363 = vadd.f32 %v5129, %v5337
      %v5364 = vadd.f32 %v5130, %v5340
      %v5365 = vadd.f32 %v5131, %v5342
      %v5366 = vadd.f32 %v5132, %v5345
      %v5367 = vadd.f32 %v5133, %v5347
      %v5368 = vadd.f32 %v5134, %v5350
      %v5369 = vadd.f32 %v5135, %v5352
      %s5370 = scalar_lea.vmem [#allocation3], 24
      %v5371 = vld [vmem:[%s5370] sm:$0xf]
      %v5372 = vld [vmem:[%s5370 + $0x4] sm:$0xf]
      %v5373 = vld [vmem:[%s5370 + $0xc] sm:$0xf]
      %v5374 = vld [vmem:[%s5370 + $0x10] sm:$0xf]
      %v5375 = vld [vmem:[%s5370 + $0x18] sm:$0xf]
      %v5376 = vld [vmem:[%s5370 + $0x1c] sm:$0xf]
      %v5377 = vld [vmem:[%s5370 + $0x24] sm:$0xf]
      %v5378 = vld [vmem:[%s5370 + $0x28] sm:$0xf]
      %v5379 = vld [vmem:[%s5370 + $0x30] sm:$0xf]
      %v5380 = vld [vmem:[%s5370 + $0x34] sm:$0xf]
      %v5381 = vld [vmem:[%s5370 + $0x3c] sm:$0xf]
      %v5382 = vld [vmem:[%s5370 + $0x40] sm:$0xf]
      %v5383 = vld [vmem:[%s5370 + $0x48] sm:$0xf]
      %v5384 = vld [vmem:[%s5370 + $0x4c] sm:$0xf]
      %v5385 = vld [vmem:[%s5370 + $0x54] sm:$0xf]
      %v5386 = vld [vmem:[%s5370 + $0x58] sm:$0xf]
      %s5387 = scalar_lea.vmem %s3, 192
      %v5388 = vld [vmem:[%s5387] sm:$0xf]
      %v5389 = vld [vmem:[%s5387 + $0x4] sm:$0xf]
      %v5390 = vld [vmem:[%s5387 + $0x8] sm:$0xf]
      %v5391 = vld [vmem:[%s5387 + $0xc] sm:$0xf]
      %v5392 = vld [vmem:[%s5387 + $0x10] sm:$0xf]
      %v5393 = vld [vmem:[%s5387 + $0x14] sm:$0xf]
      %v5394 = vld [vmem:[%s5387 + $0x18] sm:$0xf]
      %v5395 = vld [vmem:[%s5387 + $0x1c] sm:$0xf]
      %v5412 = vunpack.c.l.b16 %v5371
      %v5413 = vunpack.c.l.b16 %v5372
      %v5414 = vunpack.c.l.b16 %v5373
      %v5415 = vunpack.c.l.b16 %v5374
      %v5416 = vunpack.c.l.b16 %v5375
      %v5417 = vunpack.c.l.b16 %v5376
      %v5418 = vunpack.c.l.b16 %v5377
      %v5419 = vunpack.c.l.b16 %v5378
      %v5420 = vunpack.c.l.b16 %v5379
      %v5421 = vunpack.c.l.b16 %v5380
      %v5422 = vunpack.c.l.b16 %v5381
      %v5423 = vunpack.c.l.b16 %v5382
      %v5424 = vunpack.c.l.b16 %v5383
      %v5425 = vunpack.c.l.b16 %v5384
      %v5426 = vunpack.c.l.b16 %v5385
      %v5427 = vunpack.c.l.b16 %v5386
      %v5428 = vpack.c.b16 %v5413, %v5412
      %v5429 = vpack.c.b16 %v5415, %v5414
      %v5430 = vpack.c.b16 %v5417, %v5416
      %v5431 = vpack.c.b16 %v5419, %v5418
      %v5432 = vpack.c.b16 %v5421, %v5420
      %v5433 = vpack.c.b16 %v5423, %v5422
      %v5434 = vpack.c.b16 %v5425, %v5424
      %v5435 = vpack.c.b16 %v5427, %v5426
      %v5444 = vunpack.c.l.b16 %v5388
      %v5445 = vunpack.c.l.b16 %v5389
      %v5446 = vunpack.c.l.b16 %v5390
      %v5447 = vunpack.c.l.b16 %v5391
      %v5448 = vunpack.c.l.b16 %v5392
      %v5449 = vunpack.c.l.b16 %v5393
      %v5450 = vunpack.c.l.b16 %v5394
      %v5451 = vunpack.c.l.b16 %v5395
      %v5452 = vpack.c.b16 %v5445, %v5444
      %v5453 = vpack.c.b16 %v5447, %v5446
      %v5454 = vpack.c.b16 %v5449, %v5448
      %v5455 = vpack.c.b16 %v5451, %v5450
      %v5461 = vsel %vm1068, %v5428, 0
      %v5464 = vsel %vm1068, %v5429, 0
      %v5467 = vsel %vm1068, %v5430, 0
      %v5470 = vsel %vm1068, %v5431, 0
      %v5473 = vsel %vm1068, %v5432, 0
      %v5476 = vsel %vm1068, %v5433, 0
      %v5479 = vsel %vm1068, %v5434, 0
      %v5482 = vsel %vm1068, %v5435, 0
      %5484 = vmatpush.bf16.msra.mxu0 0
      %5485 = vmatpush.bf16.msra.mxu0 0
      %5486 = vmatpush.bf16.msra.mxu0 0
      %5487 = vmatpush.bf16.msra.mxu0 0
      %5488 = vmatpush.bf16.msra.mxu0 %v5455
      %5489 = vmatpush.bf16.msra.mxu0 %v5454
      %5490 = vmatpush.bf16.msra.mxu0 %v5453
      %5491 = vmatpush.bf16.msra.mxu0 %v5452
      %5492 = vmatmul.bf16.gmra.mxu0 %v5461
      %v5493 = vpop.f32.mrf.mxu0
      %v5494 = vadd.f32 0.0, %v5493
      %v5495 = vpop.f32.mrf.mxu0
      %v5496 = vadd.f32 0.0, %v5495
      %5497 = vmatmul.bf16.gmra.mxu0 %v5464
      %v5498 = vpop.f32.mrf.mxu0
      %v5499 = vadd.f32 0.0, %v5498
      %v5500 = vpop.f32.mrf.mxu0
      %v5501 = vadd.f32 0.0, %v5500
      %5502 = vmatmul.bf16.gmra.mxu0 %v5467
      %v5503 = vpop.f32.mrf.mxu0
      %v5504 = vadd.f32 0.0, %v5503
      %v5505 = vpop.f32.mrf.mxu0
      %v5506 = vadd.f32 0.0, %v5505
      %5507 = vmatmul.bf16.gmra.mxu0 %v5470
      %v5508 = vpop.f32.mrf.mxu0
      %v5509 = vadd.f32 0.0, %v5508
      %v5510 = vpop.f32.mrf.mxu0
      %v5511 = vadd.f32 0.0, %v5510
      %5512 = vmatmul.bf16.gmra.mxu0 %v5473
      %v5513 = vpop.f32.mrf.mxu0
      %v5514 = vadd.f32 0.0, %v5513
      %v5515 = vpop.f32.mrf.mxu0
      %v5516 = vadd.f32 0.0, %v5515
      %5517 = vmatmul.bf16.gmra.mxu0 %v5476
      %v5518 = vpop.f32.mrf.mxu0
      %v5519 = vadd.f32 0.0, %v5518
      %v5520 = vpop.f32.mrf.mxu0
      %v5521 = vadd.f32 0.0, %v5520
      %5522 = vmatmul.bf16.gmra.mxu0 %v5479
      %v5523 = vpop.f32.mrf.mxu0
      %v5524 = vadd.f32 0.0, %v5523
      %v5525 = vpop.f32.mrf.mxu0
      %v5526 = vadd.f32 0.0, %v5525
      %5527 = vmatmul.bf16.gmra.mxu0 %v5482
      %v5528 = vpop.f32.mrf.mxu0
      %v5529 = vadd.f32 0.0, %v5528
      %v5530 = vpop.f32.mrf.mxu0
      %v5531 = vadd.f32 0.0, %v5530
      %5532 = vdwg.mxu0
      %v5533 = vadd.f32 %v5354, %v5494
      %v5534 = vadd.f32 %v5355, %v5496
      %v5535 = vadd.f32 %v5356, %v5499
      %v5536 = vadd.f32 %v5357, %v5501
      %v5537 = vadd.f32 %v5358, %v5504
      %v5538 = vadd.f32 %v5359, %v5506
      %v5539 = vadd.f32 %v5360, %v5509
      %v5540 = vadd.f32 %v5361, %v5511
      %v5541 = vadd.f32 %v5362, %v5514
      %v5542 = vadd.f32 %v5363, %v5516
      %v5543 = vadd.f32 %v5364, %v5519
      %v5544 = vadd.f32 %v5365, %v5521
      %v5545 = vadd.f32 %v5366, %v5524
      %v5546 = vadd.f32 %v5367, %v5526
      %v5547 = vadd.f32 %v5368, %v5529
      %v5548 = vadd.f32 %v5369, %v5531
      %v5549 = vld [vmem:[%s5370] sm:$0xf]
      %v5550 = vld [vmem:[%s5370 + $0x4] sm:$0xf]
      %v5551 = vld [vmem:[%s5370 + $0x8] sm:$0x1]
      %v5552 = vld [vmem:[%s5370 + $0xc] sm:$0xf]
      %v5553 = vld [vmem:[%s5370 + $0x10] sm:$0xf]
      %v5554 = vld [vmem:[%s5370 + $0x14] sm:$0x1]
      %v5555 = vld [vmem:[%s5370 + $0x18] sm:$0xf]
      %v5556 = vld [vmem:[%s5370 + $0x1c] sm:$0xf]
      %v5557 = vld [vmem:[%s5370 + $0x20] sm:$0x1]
      %v5558 = vld [vmem:[%s5370 + $0x24] sm:$0xf]
      %v5559 = vld [vmem:[%s5370 + $0x28] sm:$0xf]
      %v5560 = vld [vmem:[%s5370 + $0x2c] sm:$0x1]
      %v5561 = vld [vmem:[%s5370 + $0x30] sm:$0xf]
      %v5562 = vld [vmem:[%s5370 + $0x34] sm:$0xf]
      %v5563 = vld [vmem:[%s5370 + $0x38] sm:$0x1]
      %v5564 = vld [vmem:[%s5370 + $0x3c] sm:$0xf]
      %v5565 = vld [vmem:[%s5370 + $0x40] sm:$0xf]
      %v5566 = vld [vmem:[%s5370 + $0x44] sm:$0x1]
      %v5567 = vld [vmem:[%s5370 + $0x48] sm:$0xf]
      %v5568 = vld [vmem:[%s5370 + $0x4c] sm:$0xf]
      %v5569 = vld [vmem:[%s5370 + $0x50] sm:$0x1]
      %v5570 = vld [vmem:[%s5370 + $0x54] sm:$0xf]
      %v5571 = vld [vmem:[%s5370 + $0x58] sm:$0xf]
      %v5572 = vld [vmem:[%s5370 + $0x5c] sm:$0x1]
      %v5574 = vshrl.u32 %v5549, 16
      %v5576 = vrot.slane %v5574, 4
      %v5577 = vshll.u32 %v5549, 16
      %v5579 = vrot.slane %v5577, 5
      %v5580 = vor.u32 %v5576, %v5579
      %v5581 = vrot.slane %v5580, 4
      %v5583 = vshll.u32 %v5550, 16
      %v5585 = vrot.slane %v5583, 5
      %v5586 = vsel %vm764, %v5581, %v5585
      %v5587 = vshrl.u32 %v5550, 16
      %v5589 = vrot.slane %v5587, 4
      %v5590 = vor.u32 %v5589, %v5585
      %v5591 = vrot.slane %v5590, 4
      %v5593 = vshll.u32 %v5551, 16
      %v5595 = vrot.slane %v5593, 5
      %v5596 = vsel %vm764, %v5591, %v5595
      %v5598 = vshrl.u32 %v5552, 16
      %v5600 = vrot.slane %v5598, 4
      %v5601 = vshll.u32 %v5552, 16
      %v5603 = vrot.slane %v5601, 5
      %v5604 = vor.u32 %v5600, %v5603
      %v5605 = vrot.slane %v5604, 4
      %v5607 = vshll.u32 %v5553, 16
      %v5609 = vrot.slane %v5607, 5
      %v5610 = vsel %vm764, %v5605, %v5609
      %v5611 = vshrl.u32 %v5553, 16
      %v5613 = vrot.slane %v5611, 4
      %v5614 = vor.u32 %v5613, %v5609
      %v5615 = vrot.slane %v5614, 4
      %v5617 = vshll.u32 %v5554, 16
      %v5619 = vrot.slane %v5617, 5
      %v5620 = vsel %vm764, %v5615, %v5619
      %v5622 = vshrl.u32 %v5555, 16
      %v5624 = vrot.slane %v5622, 4
      %v5625 = vshll.u32 %v5555, 16
      %v5627 = vrot.slane %v5625, 5
      %v5628 = vor.u32 %v5624, %v5627
      %v5629 = vrot.slane %v5628, 4
      %v5631 = vshll.u32 %v5556, 16
      %v5633 = vrot.slane %v5631, 5
      %v5634 = vsel %vm764, %v5629, %v5633
      %v5635 = vshrl.u32 %v5556, 16
      %v5637 = vrot.slane %v5635, 4
      %v5638 = vor.u32 %v5637, %v5633
      %v5639 = vrot.slane %v5638, 4
      %v5641 = vshll.u32 %v5557, 16
      %v5643 = vrot.slane %v5641, 5
      %v5644 = vsel %vm764, %v5639, %v5643
      %v5646 = vshrl.u32 %v5558, 16
      %v5648 = vrot.slane %v5646, 4
      %v5649 = vshll.u32 %v5558, 16
      %v5651 = vrot.slane %v5649, 5
      %v5652 = vor.u32 %v5648, %v5651
      %v5653 = vrot.slane %v5652, 4
      %v5655 = vshll.u32 %v5559, 16
      %v5657 = vrot.slane %v5655, 5
      %v5658 = vsel %vm764, %v5653, %v5657
      %v5659 = vshrl.u32 %v5559, 16
      %v5661 = vrot.slane %v5659, 4
      %v5662 = vor.u32 %v5661, %v5657
      %v5663 = vrot.slane %v5662, 4
      %v5665 = vshll.u32 %v5560, 16
      %v5667 = vrot.slane %v5665, 5
      %v5668 = vsel %vm764, %v5663, %v5667
      %v5670 = vshrl.u32 %v5561, 16
      %v5672 = vrot.slane %v5670, 4
      %v5673 = vshll.u32 %v5561, 16
      %v5675 = vrot.slane %v5673, 5
      %v5676 = vor.u32 %v5672, %v5675
      %v5677 = vrot.slane %v5676, 4
      %v5679 = vshll.u32 %v5562, 16
      %v5681 = vrot.slane %v5679, 5
      %v5682 = vsel %vm764, %v5677, %v5681
      %v5683 = vshrl.u32 %v5562, 16
      %v5685 = vrot.slane %v5683, 4
      %v5686 = vor.u32 %v5685, %v5681
      %v5687 = vrot.slane %v5686, 4
      %v5689 = vshll.u32 %v5563, 16
      %v5691 = vrot.slane %v5689, 5
      %v5692 = vsel %vm764, %v5687, %v5691
      %v5694 = vshrl.u32 %v5564, 16
      %v5696 = vrot.slane %v5694, 4
      %v5697 = vshll.u32 %v5564, 16
      %v5699 = vrot.slane %v5697, 5
      %v5700 = vor.u32 %v5696, %v5699
      %v5701 = vrot.slane %v5700, 4
      %v5703 = vshll.u32 %v5565, 16
      %v5705 = vrot.slane %v5703, 5
      %v5706 = vsel %vm764, %v5701, %v5705
      %v5707 = vshrl.u32 %v5565, 16
      %v5709 = vrot.slane %v5707, 4
      %v5710 = vor.u32 %v5709, %v5705
      %v5711 = vrot.slane %v5710, 4
      %v5713 = vshll.u32 %v5566, 16
      %v5715 = vrot.slane %v5713, 5
      %v5716 = vsel %vm764, %v5711, %v5715
      %v5718 = vshrl.u32 %v5567, 16
      %v5720 = vrot.slane %v5718, 4
      %v5721 = vshll.u32 %v5567, 16
      %v5723 = vrot.slane %v5721, 5
      %v5724 = vor.u32 %v5720, %v5723
      %v5725 = vrot.slane %v5724, 4
      %v5727 = vshll.u32 %v5568, 16
      %v5729 = vrot.slane %v5727, 5
      %v5730 = vsel %vm764, %v5725, %v5729
      %v5731 = vshrl.u32 %v5568, 16
      %v5733 = vrot.slane %v5731, 4
      %v5734 = vor.u32 %v5733, %v5729
      %v5735 = vrot.slane %v5734, 4
      %v5737 = vshll.u32 %v5569, 16
      %v5739 = vrot.slane %v5737, 5
      %v5740 = vsel %vm764, %v5735, %v5739
      %v5742 = vshrl.u32 %v5570, 16
      %v5744 = vrot.slane %v5742, 4
      %v5745 = vshll.u32 %v5570, 16
      %v5747 = vrot.slane %v5745, 5
      %v5748 = vor.u32 %v5744, %v5747
      %v5749 = vrot.slane %v5748, 4
      %v5751 = vshll.u32 %v5571, 16
      %v5753 = vrot.slane %v5751, 5
      %v5754 = vsel %vm764, %v5749, %v5753
      %v5755 = vshrl.u32 %v5571, 16
      %v5757 = vrot.slane %v5755, 4
      %v5758 = vor.u32 %v5757, %v5753
      %v5759 = vrot.slane %v5758, 4
      %v5761 = vshll.u32 %v5572, 16
      %v5763 = vrot.slane %v5761, 5
      %v5764 = vsel %vm764, %v5759, %v5763
      %s5765 = scalar_lea.vmem %s3, 224
      %v5766 = vld [vmem:[%s5765] sm:$0xf]
      %v5767 = vld [vmem:[%s5765 + $0x4] sm:$0xf]
      %v5768 = vld [vmem:[%s5765 + $0x8] sm:$0xf]
      %v5769 = vld [vmem:[%s5765 + $0xc] sm:$0xf]
      %v5770 = vld [vmem:[%s5765 + $0x10] sm:$0xf]
      %v5771 = vld [vmem:[%s5765 + $0x14] sm:$0xf]
      %v5772 = vld [vmem:[%s5765 + $0x18] sm:$0xf]
      %v5773 = vld [vmem:[%s5765 + $0x1c] sm:$0xf]
      %v5774 = vunpack.c.l.b16 %v5586
      %v5775 = vunpack.c.l.b16 %v5596
      %v5776 = vunpack.c.l.b16 %v5610
      %v5777 = vunpack.c.l.b16 %v5620
      %v5778 = vunpack.c.l.b16 %v5634
      %v5779 = vunpack.c.l.b16 %v5644
      %v5780 = vunpack.c.l.b16 %v5658
      %v5781 = vunpack.c.l.b16 %v5668
      %v5782 = vunpack.c.l.b16 %v5682
      %v5783 = vunpack.c.l.b16 %v5692
      %v5784 = vunpack.c.l.b16 %v5706
      %v5785 = vunpack.c.l.b16 %v5716
      %v5786 = vunpack.c.l.b16 %v5730
      %v5787 = vunpack.c.l.b16 %v5740
      %v5788 = vunpack.c.l.b16 %v5754
      %v5789 = vunpack.c.l.b16 %v5764
      %v5790 = vpack.c.b16 %v5775, %v5774
      %v5791 = vpack.c.b16 %v5777, %v5776
      %v5792 = vpack.c.b16 %v5779, %v5778
      %v5793 = vpack.c.b16 %v5781, %v5780
      %v5794 = vpack.c.b16 %v5783, %v5782
      %v5795 = vpack.c.b16 %v5785, %v5784
      %v5796 = vpack.c.b16 %v5787, %v5786
      %v5797 = vpack.c.b16 %v5789, %v5788
      %v5806 = vunpack.c.l.b16 %v5766
      %v5807 = vunpack.c.l.b16 %v5767
      %v5808 = vunpack.c.l.b16 %v5768
      %v5809 = vunpack.c.l.b16 %v5769
      %v5810 = vunpack.c.l.b16 %v5770
      %v5811 = vunpack.c.l.b16 %v5771
      %v5812 = vunpack.c.l.b16 %v5772
      %v5813 = vunpack.c.l.b16 %v5773
      %v5814 = vpack.c.b16 %v5807, %v5806
      %v5815 = vpack.c.b16 %v5809, %v5808
      %v5816 = vpack.c.b16 %v5811, %v5810
      %v5817 = vpack.c.b16 %v5813, %v5812
      %v5823 = vsel %vm1068, %v5790, 0
      %v5826 = vsel %vm1068, %v5791, 0
      %v5829 = vsel %vm1068, %v5792, 0
      %v5832 = vsel %vm1068, %v5793, 0
      %v5835 = vsel %vm1068, %v5794, 0
      %v5838 = vsel %vm1068, %v5795, 0
      %v5841 = vsel %vm1068, %v5796, 0
      %v5844 = vsel %vm1068, %v5797, 0
      %5846 = vmatpush.bf16.msra.mxu0 0
      %5847 = vmatpush.bf16.msra.mxu0 0
      %5848 = vmatpush.bf16.msra.mxu0 0
      %5849 = vmatpush.bf16.msra.mxu0 0
      %5850 = vmatpush.bf16.msra.mxu0 %v5817
      %5851 = vmatpush.bf16.msra.mxu0 %v5816
      %5852 = vmatpush.bf16.msra.mxu0 %v5815
      %5853 = vmatpush.bf16.msra.mxu0 %v5814
      %5854 = vmatmul.bf16.gmra.mxu0 %v5823
      %v5855 = vpop.f32.mrf.mxu0
      %v5856 = vadd.f32 0.0, %v5855
      %v5857 = vpop.f32.mrf.mxu0
      %v5858 = vadd.f32 0.0, %v5857
      %5859 = vmatmul.bf16.gmra.mxu0 %v5826
      %v5860 = vpop.f32.mrf.mxu0
      %v5861 = vadd.f32 0.0, %v5860
      %v5862 = vpop.f32.mrf.mxu0
      %v5863 = vadd.f32 0.0, %v5862
      %5864 = vmatmul.bf16.gmra.mxu0 %v5829
      %v5865 = vpop.f32.mrf.mxu0
      %v5866 = vadd.f32 0.0, %v5865
      %v5867 = vpop.f32.mrf.mxu0
      %v5868 = vadd.f32 0.0, %v5867
      %5869 = vmatmul.bf16.gmra.mxu0 %v5832
      %v5870 = vpop.f32.mrf.mxu0
      %v5871 = vadd.f32 0.0, %v5870
      %v5872 = vpop.f32.mrf.mxu0
      %v5873 = vadd.f32 0.0, %v5872
      %5874 = vmatmul.bf16.gmra.mxu0 %v5835
      %v5875 = vpop.f32.mrf.mxu0
      %v5876 = vadd.f32 0.0, %v5875
      %v5877 = vpop.f32.mrf.mxu0
      %v5878 = vadd.f32 0.0, %v5877
      %5879 = vmatmul.bf16.gmra.mxu0 %v5838
      %v5880 = vpop.f32.mrf.mxu0
      %v5881 = vadd.f32 0.0, %v5880
      %v5882 = vpop.f32.mrf.mxu0
      %v5883 = vadd.f32 0.0, %v5882
      %5884 = vmatmul.bf16.gmra.mxu0 %v5841
      %v5885 = vpop.f32.mrf.mxu0
      %v5886 = vadd.f32 0.0, %v5885
      %v5887 = vpop.f32.mrf.mxu0
      %v5888 = vadd.f32 0.0, %v5887
      %5889 = vmatmul.bf16.gmra.mxu0 %v5844
      %v5890 = vpop.f32.mrf.mxu0
      %v5891 = vadd.f32 0.0, %v5890
      %v5892 = vpop.f32.mrf.mxu0
      %v5893 = vadd.f32 0.0, %v5892
      %5894 = vdwg.mxu0
      %v5895 = vadd.f32 %v5533, %v5856
      %v5896 = vadd.f32 %v5534, %v5858
      %v5897 = vadd.f32 %v5535, %v5861
      %v5898 = vadd.f32 %v5536, %v5863
      %v5899 = vadd.f32 %v5537, %v5866
      %v5900 = vadd.f32 %v5538, %v5868
      %v5901 = vadd.f32 %v5539, %v5871
      %v5902 = vadd.f32 %v5540, %v5873
      %v5903 = vadd.f32 %v5541, %v5876
      %v5904 = vadd.f32 %v5542, %v5878
      %v5905 = vadd.f32 %v5543, %v5881
      %v5906 = vadd.f32 %v5544, %v5883
      %v5907 = vadd.f32 %v5545, %v5886
      %v5908 = vadd.f32 %v5546, %v5888
      %v5909 = vadd.f32 %v5547, %v5891
      %v5910 = vadd.f32 %v5548, %v5893
      %v5911 = vld [vmem:[%s5370] sm:$0xe]
      %v5912 = vld [vmem:[%s5370 + $0xc] sm:$0xe]
      %v5913 = vld [vmem:[%s5370 + $0x18] sm:$0xe]
      %v5914 = vld [vmem:[%s5370 + $0x24] sm:$0xe]
      %v5915 = vld [vmem:[%s5370 + $0x30] sm:$0xe]
      %v5916 = vld [vmem:[%s5370 + $0x3c] sm:$0xe]
      %v5917 = vld [vmem:[%s5370 + $0x48] sm:$0xe]
      %v5918 = vld [vmem:[%s5370 + $0x54] sm:$0xe]
      %v5943 = vrot.slane %v5911, 5
      %v5944 = vrot.slane %v5943, 4
      %v5945 = vrot.slane %v5550, 5
      %v5946 = vsel %vm1353, %v5944, %v5945
      %v5947 = vrot.slane %v5945, 4
      %v5948 = vrot.slane %v5551, 5
      %v5949 = vsel %vm1353, %v5947, %v5948
      %v5950 = vrot.slane %v5912, 5
      %v5951 = vrot.slane %v5950, 4
      %v5952 = vrot.slane %v5553, 5
      %v5953 = vsel %vm1353, %v5951, %v5952
      %v5954 = vrot.slane %v5952, 4
      %v5955 = vrot.slane %v5554, 5
      %v5956 = vsel %vm1353, %v5954, %v5955
      %v5957 = vrot.slane %v5913, 5
      %v5958 = vrot.slane %v5957, 4
      %v5959 = vrot.slane %v5556, 5
      %v5960 = vsel %vm1353, %v5958, %v5959
      %v5961 = vrot.slane %v5959, 4
      %v5962 = vrot.slane %v5557, 5
      %v5963 = vsel %vm1353, %v5961, %v5962
      %v5964 = vrot.slane %v5914, 5
      %v5965 = vrot.slane %v5964, 4
      %v5966 = vrot.slane %v5559, 5
      %v5967 = vsel %vm1353, %v5965, %v5966
      %v5968 = vrot.slane %v5966, 4
      %v5969 = vrot.slane %v5560, 5
      %v5970 = vsel %vm1353, %v5968, %v5969
      %v5971 = vrot.slane %v5915, 5
      %v5972 = vrot.slane %v5971, 4
      %v5973 = vrot.slane %v5562, 5
      %v5974 = vsel %vm1353, %v5972, %v5973
      %v5975 = vrot.slane %v5973, 4
      %v5976 = vrot.slane %v5563, 5
      %v5977 = vsel %vm1353, %v5975, %v5976
      %v5978 = vrot.slane %v5916, 5
      %v5979 = vrot.slane %v5978, 4
      %v5980 = vrot.slane %v5565, 5
      %v5981 = vsel %vm1353, %v5979, %v5980
      %v5982 = vrot.slane %v5980, 4
      %v5983 = vrot.slane %v5566, 5
      %v5984 = vsel %vm1353, %v5982, %v5983
      %v5985 = vrot.slane %v5917, 5
      %v5986 = vrot.slane %v5985, 4
      %v5987 = vrot.slane %v5568, 5
      %v5988 = vsel %vm1353, %v5986, %v5987
      %v5989 = vrot.slane %v5987, 4
      %v5990 = vrot.slane %v5569, 5
      %v5991 = vsel %vm1353, %v5989, %v5990
      %v5992 = vrot.slane %v5918, 5
      %v5993 = vrot.slane %v5992, 4
      %v5994 = vrot.slane %v5571, 5
      %v5995 = vsel %vm1353, %v5993, %v5994
      %v5996 = vrot.slane %v5994, 4
      %v5997 = vrot.slane %v5572, 5
      %v5998 = vsel %vm1353, %v5996, %v5997
      %s5999 = scalar_lea.vmem %s3, 256
      %v6000 = vld [vmem:[%s5999] sm:$0xf]
      %v6001 = vld [vmem:[%s5999 + $0x4] sm:$0xf]
      %v6002 = vld [vmem:[%s5999 + $0x8] sm:$0xf]
      %v6003 = vld [vmem:[%s5999 + $0xc] sm:$0xf]
      %v6004 = vld [vmem:[%s5999 + $0x10] sm:$0xf]
      %v6005 = vld [vmem:[%s5999 + $0x14] sm:$0xf]
      %v6006 = vld [vmem:[%s5999 + $0x18] sm:$0xf]
      %v6007 = vld [vmem:[%s5999 + $0x1c] sm:$0xf]
      %v6008 = vunpack.c.l.b16 %v5946
      %v6009 = vunpack.c.l.b16 %v5949
      %v6010 = vunpack.c.l.b16 %v5953
      %v6011 = vunpack.c.l.b16 %v5956
      %v6012 = vunpack.c.l.b16 %v5960
      %v6013 = vunpack.c.l.b16 %v5963
      %v6014 = vunpack.c.l.b16 %v5967
      %v6015 = vunpack.c.l.b16 %v5970
      %v6016 = vunpack.c.l.b16 %v5974
      %v6017 = vunpack.c.l.b16 %v5977
      %v6018 = vunpack.c.l.b16 %v5981
      %v6019 = vunpack.c.l.b16 %v5984
      %v6020 = vunpack.c.l.b16 %v5988
      %v6021 = vunpack.c.l.b16 %v5991
      %v6022 = vunpack.c.l.b16 %v5995
      %v6023 = vunpack.c.l.b16 %v5998
      %v6024 = vpack.c.b16 %v6009, %v6008
      %v6025 = vpack.c.b16 %v6011, %v6010
      %v6026 = vpack.c.b16 %v6013, %v6012
      %v6027 = vpack.c.b16 %v6015, %v6014
      %v6028 = vpack.c.b16 %v6017, %v6016
      %v6029 = vpack.c.b16 %v6019, %v6018
      %v6030 = vpack.c.b16 %v6021, %v6020
      %v6031 = vpack.c.b16 %v6023, %v6022
      %v6040 = vunpack.c.l.b16 %v6000
      %v6041 = vunpack.c.l.b16 %v6001
      %v6042 = vunpack.c.l.b16 %v6002
      %v6043 = vunpack.c.l.b16 %v6003
      %v6044 = vunpack.c.l.b16 %v6004
      %v6045 = vunpack.c.l.b16 %v6005
      %v6046 = vunpack.c.l.b16 %v6006
      %v6047 = vunpack.c.l.b16 %v6007
      %v6048 = vpack.c.b16 %v6041, %v6040
      %v6049 = vpack.c.b16 %v6043, %v6042
      %v6050 = vpack.c.b16 %v6045, %v6044
      %v6051 = vpack.c.b16 %v6047, %v6046
      %v6057 = vsel %vm1068, %v6024, 0
      %v6060 = vsel %vm1068, %v6025, 0
      %v6063 = vsel %vm1068, %v6026, 0
      %v6066 = vsel %vm1068, %v6027, 0
      %v6069 = vsel %vm1068, %v6028, 0
      %v6072 = vsel %vm1068, %v6029, 0
      %v6075 = vsel %vm1068, %v6030, 0
      %v6078 = vsel %vm1068, %v6031, 0
      %6080 = vmatpush.bf16.msra.mxu0 0
      %6081 = vmatpush.bf16.msra.mxu0 0
      %6082 = vmatpush.bf16.msra.mxu0 0
      %6083 = vmatpush.bf16.msra.mxu0 0
      %6084 = vmatpush.bf16.msra.mxu0 %v6051
      %6085 = vmatpush.bf16.msra.mxu0 %v6050
      %6086 = vmatpush.bf16.msra.mxu0 %v6049
      %6087 = vmatpush.bf16.msra.mxu0 %v6048
      %6088 = vmatmul.bf16.gmra.mxu0 %v6057
      %v6089 = vpop.f32.mrf.mxu0
      %v6090 = vadd.f32 0.0, %v6089
      %v6091 = vpop.f32.mrf.mxu0
      %v6092 = vadd.f32 0.0, %v6091
      %6093 = vmatmul.bf16.gmra.mxu0 %v6060
      %v6094 = vpop.f32.mrf.mxu0
      %v6095 = vadd.f32 0.0, %v6094
      %v6096 = vpop.f32.mrf.mxu0
      %v6097 = vadd.f32 0.0, %v6096
      %6098 = vmatmul.bf16.gmra.mxu0 %v6063
      %v6099 = vpop.f32.mrf.mxu0
      %v6100 = vadd.f32 0.0, %v6099
      %v6101 = vpop.f32.mrf.mxu0
      %v6102 = vadd.f32 0.0, %v6101
      %6103 = vmatmul.bf16.gmra.mxu0 %v6066
      %v6104 = vpop.f32.mrf.mxu0
      %v6105 = vadd.f32 0.0, %v6104
      %v6106 = vpop.f32.mrf.mxu0
      %v6107 = vadd.f32 0.0, %v6106
      %6108 = vmatmul.bf16.gmra.mxu0 %v6069
      %v6109 = vpop.f32.mrf.mxu0
      %v6110 = vadd.f32 0.0, %v6109
      %v6111 = vpop.f32.mrf.mxu0
      %v6112 = vadd.f32 0.0, %v6111
      %6113 = vmatmul.bf16.gmra.mxu0 %v6072
      %v6114 = vpop.f32.mrf.mxu0
      %v6115 = vadd.f32 0.0, %v6114
      %v6116 = vpop.f32.mrf.mxu0
      %v6117 = vadd.f32 0.0, %v6116
      %6118 = vmatmul.bf16.gmra.mxu0 %v6075
      %v6119 = vpop.f32.mrf.mxu0
      %v6120 = vadd.f32 0.0, %v6119
      %v6121 = vpop.f32.mrf.mxu0
      %v6122 = vadd.f32 0.0, %v6121
      %6123 = vmatmul.bf16.gmra.mxu0 %v6078
      %v6124 = vpop.f32.mrf.mxu0
      %v6125 = vadd.f32 0.0, %v6124
      %v6126 = vpop.f32.mrf.mxu0
      %v6127 = vadd.f32 0.0, %v6126
      %6128 = vdwg.mxu0
      %v6129 = vadd.f32 %v5895, %v6090
      %v6130 = vadd.f32 %v5896, %v6092
      %v6131 = vadd.f32 %v5897, %v6095
      %v6132 = vadd.f32 %v5898, %v6097
      %v6133 = vadd.f32 %v5899, %v6100
      %v6134 = vadd.f32 %v5900, %v6102
      %v6135 = vadd.f32 %v5901, %v6105
      %v6136 = vadd.f32 %v5902, %v6107
      %v6137 = vadd.f32 %v5903, %v6110
      %v6138 = vadd.f32 %v5904, %v6112
      %v6139 = vadd.f32 %v5905, %v6115
      %v6140 = vadd.f32 %v5906, %v6117
      %v6141 = vadd.f32 %v5907, %v6120
      %v6142 = vadd.f32 %v5908, %v6122
      %v6143 = vadd.f32 %v5909, %v6125
      %v6144 = vadd.f32 %v5910, %v6127
      %v6145 = vld [vmem:[%s4] sm:$0x1]
      %v6147 = vperm.slane %v6145, 0
      %v6149 = vadd.f32 %v6129, %v6147
      %v6150 = vadd.f32 %v6130, %v6147
      %v6151 = vadd.f32 %v6131, %v6147
      %v6152 = vadd.f32 %v6132, %v6147
      %v6153 = vadd.f32 %v6133, %v6147
      %v6154 = vadd.f32 %v6134, %v6147
      %v6155 = vadd.f32 %v6135, %v6147
      %v6156 = vadd.f32 %v6136, %v6147
      %v6157 = vadd.f32 %v6137, %v6147
      %v6158 = vadd.f32 %v6138, %v6147
      %v6159 = vadd.f32 %v6139, %v6147
      %v6160 = vadd.f32 %v6140, %v6147
      %v6161 = vadd.f32 %v6141, %v6147
      %v6162 = vadd.f32 %v6142, %v6147
      %v6163 = vadd.f32 %v6143, %v6147
      %v6164 = vadd.f32 %v6144, %v6147
      %v6165 = vpack.c.bf16 %v6149, %v6149
      %v6166 = vpack.c.bf16 %v6150, %v6150
      %v6167 = vpack.c.bf16 %v6151, %v6151
      %v6168 = vpack.c.bf16 %v6152, %v6152
      %v6169 = vpack.c.bf16 %v6153, %v6153
      %v6170 = vpack.c.bf16 %v6154, %v6154
      %v6171 = vpack.c.bf16 %v6155, %v6155
      %v6172 = vpack.c.bf16 %v6156, %v6156
      %v6173 = vpack.c.bf16 %v6157, %v6157
      %v6174 = vpack.c.bf16 %v6158, %v6158
      %v6175 = vpack.c.bf16 %v6159, %v6159
      %v6176 = vpack.c.bf16 %v6160, %v6160
      %v6177 = vpack.c.bf16 %v6161, %v6161
      %v6178 = vpack.c.bf16 %v6162, %v6162
      %v6179 = vpack.c.bf16 %v6163, %v6163
      %v6180 = vpack.c.bf16 %v6164, %v6164
      %6181 = vst [vmem:[%s246] sm:$0xf] %v6165
      %6182 = vst [vmem:[%s246 + $0x4] sm:$0xf] %v6166
      %6183 = vst [vmem:[%s246 + $0x8] sm:$0xf] %v6167
      %6184 = vst [vmem:[%s246 + $0xc] sm:$0xf] %v6168
      %6185 = vst [vmem:[%s246 + $0x10] sm:$0xf] %v6169
      %6186 = vst [vmem:[%s246 + $0x14] sm:$0xf] %v6170
      %6187 = vst [vmem:[%s246 + $0x18] sm:$0xf] %v6171
      %6188 = vst [vmem:[%s246 + $0x1c] sm:$0xf] %v6172
      %6189 = vst [vmem:[%s246 + $0x20] sm:$0xf] %v6173
      %6190 = vst [vmem:[%s246 + $0x24] sm:$0xf] %v6174
      %6191 = vst [vmem:[%s246 + $0x28] sm:$0xf] %v6175
      %6192 = vst [vmem:[%s246 + $0x2c] sm:$0xf] %v6176
      %6193 = vst [vmem:[%s246 + $0x30] sm:$0xf] %v6177
      %6194 = vst [vmem:[%s246 + $0x34] sm:$0xf] %v6178
      %6195 = vst [vmem:[%s246 + $0x38] sm:$0xf] %v6179
      %6196 = vst [vmem:[%s246 + $0x3c] sm:$0xf] %v6180
      %s6197 = smul.u32 16, %s21
      %p6198 = scmp.lt.s32.totalorder %s20, 1
      %s6199 = scalar_select %p6198, %s20, 1
      %p6200 = scmp.lt.s32.totalorder %s6197, 31
      %s6201 = scalar_select %p6200, %s6197, 31
      %s6202 = smul.addr %s6199, 32
      %s6203 = sadd.s32 %s6201, %s6202
      %s6204 = smul.addr %s6203, 4
      %s6205 = scalar_lea.vmem %s5, %s6204
      // Predicated region
      $region65: #{plain_cnn_forward.1} parent=39 // pred_check
        %p6206 = pneg %p158
      $region66: #{plain_cnn_forward.1} parent=39 // pred_check_branch
        %6208 = sbr.rel (%p6206) target = $region68
      $region67: #{plain_cnn_forward.1} parent=39 // pred_region
        %s6209 = smul.u32 16, %s21
      $region68: #{plain_cnn_forward.1} parent=39 // pred_fallthru
        _
    $region40: #{plain_cnn_forward.1} parent=5 // pred_fallthru
      _
    %p6210 = scmp.le.s32.totalorder 2, %s11
    // Predicated region
    $region69: #{plain_cnn_forward.1} parent=5 // pred_check
      %p6211 = pneg %p6210
    $region70: #{plain_cnn_forward.1} parent=5 // pred_check_branch
      %6213 = sbr.rel (%p6211) target = $region72
    $region71: #{plain_cnn_forward.1} parent=5 // pred_region
      %s6214 = ssub.s32 %s11, 2
      // Predicated region
      $region73: #{plain_cnn_forward.1} parent=71 // pred_check
        %p6215 = pneg %p164
      $region74: #{plain_cnn_forward.1} parent=71 // pred_check_branch
        %6217 = sbr.rel (%p6215) target = $region76
      $region75: #{plain_cnn_forward.1} parent=71 // pred_region
        %s6218 = smul.u32 16, %s23
        %p6219 = scmp.lt.s32.totalorder %s22, 1
        %s6220 = scalar_select %p6219, %s22, 1
        %p6221 = scmp.lt.s32.totalorder %s6218, 31
        %s6222 = scalar_select %p6221, %s6218, 31
        %s6223 = smul.addr %s6220, 32
        %s6224 = sadd.s32 %s6222, %s6223
        %s6225 = smul.addr %s6224, 4
        %s6226 = scalar_lea.vmem %s5, %s6225
      $region76: #{plain_cnn_forward.1} parent=71 // pred_fallthru
        _
    $region72: #{plain_cnn_forward.1} parent=5 // pred_fallthru
      _
  $region6: #{plain_cnn_forward.1} parent=0 // loop_footer
    %s15 = sadd.s32 1, %s11
  $region7: #{plain_cnn_forward.1} parent=0 // loop_footer_branch
    %10 = sbr.rel target = $region3
  $region8: #{plain_cnn_forward.1} parent=0 // loop_exit
    _

</llo_original>
